<compile_context>
chip_gen: v7x
topology: tpu7x:2x2x1
jax: 0.10.0
libtpu: 0.0.40
codegen_flags: <defaults>
</compile_context>

<pallas_src>
import jax
import jax.numpy as jnp
import numpy as np
from jax.experimental import pallas as pl
from jax.experimental.pallas import tpu as pltpu

_EPS = 1e-5
# kh taps per output-row parity; matching row sources are (same, prev) / (next, same).
_KH = ((1, 3), (0, 2))


# ----------------------------------------------------------------------------
# Fused kernel
# ----------------------------------------------------------------------------
def make_generator_kernel(block_cfgs, compute_dtype):
    def kernel(*refs):
        out_ref = refs[-1]
        it = iter(refs[:-1])

        # fc (nn.Linear, bias=False): emits the packed (N*H0, W0*C0) layout directly.
        zexp_ref = next(it)
        wfc_ref = next(it)
        x2 = jnp.dot(zexp_ref[...], wfc_ref[...], preferred_element_type=jnp.float32)

        for cfg in block_cfgs:
            psum_ref = next(it)     # (WC, WC) 0/1: per-channel sum over w, re-tiled (f32)
            gamma_t_ref = next(it)  # (1, WC)  BN gamma tiled over w (f32)
            beta_t_ref = next(it)   # (1, WC)  BN beta  tiled over w (f32)
            h = cfg['h']
            inv_count = cfg['inv_count']
            nh, wc = x2.shape

            # ---- BatchNorm2d (training-mode batch stats, biased var) + ReLU -------
            # Single pass: sum and sum-of-squares; stats stay in f32.
            sum_wc = jnp.sum(x2, axis=0, keepdims=True)
            sq_wc = jnp.sum(x2 * x2, axis=0, keepdims=True)
            mean_wc = jnp.dot(sum_wc, psum_ref[...],
                              preferred_element_type=jnp.float32) * inv_count
            ex2_wc = jnp.dot(sq_wc, psum_ref[...],
                             preferred_element_type=jnp.float32) * inv_count
            var_wc = ex2_wc - mean_wc * mean_wc
            scale_wc = gamma_t_ref[...] * jax.lax.rsqrt(var_wc + _EPS)
            a2 = jnp.maximum((x2 - mean_wc) * scale_wc + beta_t_ref[...], 0.0)

            # ---- ConvTranspose2d(4, stride=2, padding=1) ---------------------------
            # Row taps = +-1 sublane rolls with zeroed image-boundary rows (XLU + VPU,
            # no MXU); column taps / boundaries / column interleave live in packed R.
            rowm = jax.lax.broadcasted_iota(jnp.int32, (nh, 1), 0) % h
            a_prev = pltpu.roll(a2, 1, 0) * (rowm != 0).astype(jnp.float32)
            a_next = pltpu.roll(a2, nh - 1, 0) * (rowm != h - 1).astype(jnp.float32)

            if cfg['final']:
                rfull_ref = next(it)   # (4WC, 2*2W*Cout) block-diag stacked taps
                bias_t_ref = next(it)  # (1, 2*2W*Cout)   conv bias, pre-tiled (f32)
                lhs = jnp.concatenate([a2, a_prev, a_next, a2],
                                      axis=1).astype(compute_dtype)
                o = jnp.dot(lhs, rfull_ref[...], preferred_element_type=jnp.float32)
                # Single unmasked lane-dense store (even-row half | odd-row half).
                out_ref[...] = jnp.tanh(o + bias_t_ref[...])
            else:
                rs0_ref = next(it)     # (2WC, 2W*Cout) stacked taps, even output rows
                rs1_ref = next(it)     # (2WC, 2W*Cout) stacked taps, odd output rows
                g_ref = next(it)       # (2NH, 2NH)     fused row interleave [Ge | Go]
                lhs0 = jnp.concatenate([a2, a_prev], axis=1).astype(compute_dtype)
                lhs1 = jnp.concatenate([a_next, a2], axis=1).astype(compute_dtype)
                o0 = jnp.dot(lhs0, rs0_ref[...], preferred_element_type=jnp.float32)
                o1 = jnp.dot(lhs1, rs1_ref[...], preferred_element_type=jnp.float32)
                oc = jnp.concatenate([o0, o1], axis=0).astype(compute_dtype)
                # Interleave even/odd output rows -> packed input of the next block.
                x2 = jnp.dot(g_ref[...], oc, preferred_element_type=jnp.float32)

    return kernel


# ----------------------------------------------------------------------------
# Host-side packing (pure layout / constant construction, done once)
# ----------------------------------------------------------------------------
def _pack_fc(fc_w, init_size, c0, latent):
    w = np.asarray(fc_w, np.float32).reshape(c0, init_size, init_size, latent)
    # rows: (i, k), cols: (j, c)  so that  zexp @ wfc == packed NHWC fc output
    return w.transpose(1, 3, 2, 0).reshape(init_size * latent, init_size * c0)


def _pack_deconv(wt, width):
    """torch ConvTranspose2d weight (Cin, Cout, 4, 4) -> R[2][2] of (W*Cin, 2W*Cout)."""
    wt = np.asarray(wt, np.float32)
    cin, cout = wt.shape[0], wt.shape[1]
    r = np.zeros((2, 2, width * cin, 2 * width * cout), np.float32)
    for pa in range(2):
        for t in range(2):
            kh = _KH[pa][t]
            for iw in range(width):
                for ow in range(2 * width):
                    kw = ow - 2 * iw + 1
                    if 0 <= kw <= 3:
                        r[pa, t, iw * cin:(iw + 1) * cin,
                          ow * cout:(ow + 1) * cout] = wt[:, :, kh, kw]
    return r


def _gather_mats(n, h):
    nh = n * h
    ge = np.zeros((2 * nh, nh), np.float32)
    go = np.zeros((2 * nh, nh), np.float32)
    for b in range(n):
        for p in range(h):
            ge[b * 2 * h + 2 * p, b * h + p] = 1.0
            go[b * 2 * h + 2 * p + 1, b * h + p] = 1.0
    return ge, go


def build_packed(params, layer_list, img_channels, init_size, batch,
                 compute_dtype=jnp.bfloat16):
    latent = params['fc_w'].shape[1]
    chans = list(layer_list) + [img_channels]
    n_blocks = len(layer_list)
    packed = {
        'dtype': compute_dtype,
        'wfc': jnp.asarray(_pack_fc(params['fc_w'], init_size, layer_list[0], latent),
                           compute_dtype),
        'blocks': [],
        'cfgs': [],
        'init_size': init_size,
        'img_channels': img_channels,
    }
    h = w = init_size
    for i in range(n_blocks):
        cin, cout = chans[i], chans[i + 1]
        final = i == n_blocks - 1
        bp = params['blocks'][i]
        r = _pack_deconv(bp['w'], w)
        # Stack the two row-tap matrices per parity: LHS = [same | prev] / [next | same]
        rs0 = np.concatenate([r[0, 0], r[0, 1]], axis=0)   # (2WC, 2W*Cout)
        rs1 = np.concatenate([r[1, 0], r[1, 1]], axis=0)
        psum = np.tile(np.eye(cin, dtype=np.float32), (w, w))   # (WC, WC) 0/1
        blk = {
            'psum': jnp.asarray(psum, jnp.float32),
            'gamma_t': jnp.asarray(np.tile(np.asarray(bp['gamma'], np.float32), w)
                                   .reshape(1, w * cin)),
            'beta_t': jnp.asarray(np.tile(np.asarray(bp['beta'], np.float32), w)
                                  .reshape(1, w * cin)),
        }
        if final:
            half = 2 * w * cout
            wc = w * cin
            rfull = np.zeros((4 * wc, 2 * half), np.float32)
            rfull[:2 * wc, :half] = rs0      # even output rows <- [a2 | a_prev]
            rfull[2 * wc:, half:] = rs1      # odd  output rows <- [a_next | a2]
            blk['rfull'] = jnp.asarray(rfull, compute_dtype)
            blk['bias_t'] = jnp.asarray(
                np.tile(np.asarray(bp['bias'], np.float32), 2 * 2 * w)
                .reshape(1, 2 * half))
        else:
            ge, go = _gather_mats(batch, h)
            blk['rs0'] = jnp.asarray(rs0, compute_dtype)
            blk['rs1'] = jnp.asarray(rs1, compute_dtype)
            blk['gfull'] = jnp.asarray(np.concatenate([ge, go], axis=1), compute_dtype)
        packed['blocks'].append(blk)
        packed['cfgs'].append({'h': h, 'final': final,
                               'inv_count': 1.0 / float(batch * h * w)})
        packed['h_last'], packed['w_last'] = h, w
        h, w = 2 * h, 2 * w
    return packed


# ----------------------------------------------------------------------------
# Forward wrapper (single pallas_call; all host glue is free reshapes)
# ----------------------------------------------------------------------------
def generator_forward(z, packed):
    n, latent = z.shape
    init = packed['init_size']
    c_img = packed['img_channels']
    h_last, w_last = packed['h_last'], packed['w_last']
    cdt = packed['dtype']

    # zexp[n*init + i, i2*latent + k] = z[n, k] * (i == i2): the in-kernel fc matmul
    # then emits the packed NHWC layout directly (no lane-splitting reshape in-kernel).
    eye = jnp.eye(init, dtype=z.dtype)
    zexp = (z[:, None, None, :] * eye[None, :, :, None]) \
        .reshape(n * init, init * latent).astype(cdt)

    args = [zexp, packed['wfc']]
    for blk, cfg in zip(packed['blocks'], packed['cfgs']):
        args += [blk['psum'], blk['gamma_t'], blk['beta_t']]
        if cfg['final']:
            args += [blk['rfull'], blk['bias_t']]
        else:
            args += [blk['rs0'], blk['rs1'], blk['gfull']]

    out_rows = n * h_last
    out_cols = 2 * (2 * w_last * c_img)       # [even-row half | odd-row half]
    vspec = pl.BlockSpec(memory_space=pltpu.MemorySpace.VMEM)

    out2d = pl.pallas_call(
        make_generator_kernel(packed['cfgs'], cdt),
        out_shape=jax.ShapeDtypeStruct((out_rows, out_cols), jnp.float32),
        in_specs=[vspec] * len(args),
        out_specs=vspec,
    )(*args)

    # Memory order is already (n, p, parity, ow, c) == (n, oh, ow, c): free reshape.
    y = out2d.reshape(n, 2 * h_last, 2 * w_last, c_img)
    return y.transpose(0, 3, 1, 2)            # NCHW to match the PyTorch interface


# ----------------------------------------------------------------------------
# Pure-JAX reference (PyTorch semantics) + parameter construction
# ----------------------------------------------------------------------------
def reference_forward(z, params, init_size):
    def bn_relu(x, g, b):
        mean = jnp.mean(x, axis=(0, 2, 3), keepdims=True)
        var = jnp.mean(jnp.square(x - mean), axis=(0, 2, 3), keepdims=True)
        xh = (x - mean) / jnp.sqrt(var + _EPS)
        xh = xh * g.reshape(1, -1, 1, 1) + b.reshape(1, -1, 1, 1)
        return jnp.maximum(xh, 0.0)

    def conv_transpose(x, w, bias):
        n, cin, h, wd = x.shape
        cout = w.shape[1]
        full = jnp.zeros((n, cout, 2 * h + 2, 2 * wd + 2), jnp.float32)
        for kh in range(4):
            for kw in range(4):
                contrib = jnp.einsum('nchw,cd->ndhw', x, w[:, :, kh, kw])
                full = full.at[:, :, kh:kh + 2 * h:2, kw:kw + 2 * wd:2].add(contrib)
        out = full[:, :, 1:2 * h + 1, 1:2 * wd + 1]
        if bias is not None:
            out = out + bias.reshape(1, -1, 1, 1)
        return out

    c0 = params['blocks'][0]['w'].shape[0]
    h = z @ params['fc_w'].T
    x = h.reshape(z.shape[0], c0, init_size, init_size)
    for bp in params['blocks'][:-1]:
        x = conv_transpose(bn_relu(x, bp['gamma'], bp['beta']), bp['w'], None)
    fp = params['blocks'][-1]
    x = conv_transpose(bn_relu(x, fp['gamma'], fp['beta']), fp['w'], fp['bias'])
    return jnp.tanh(x)


def init_module_params(key, latent_dim, layer_list, img_channels, init_size):
    chans = list(layer_list) + [img_channels]
    n_layers = len(layer_list)
    keys = jax.random.split(key, 1 + 4 * n_layers)
    k = iter(keys)
    fc_w = 0.08 * jax.random.normal(next(k), (layer_list[0] * init_size ** 2, latent_dim),
                                    jnp.float32)
    blocks = []
    for i in range(n_layers):
        cin, cout = chans[i], chans[i + 1]
        w = 0.1 * jax.random.normal(next(k), (cin, cout, 4, 4), jnp.float32)
        gamma = 1.0 + 0.1 * jax.random.normal(next(k), (cin,), jnp.float32)
        beta = 0.1 * jax.random.normal(next(k), (cin,), jnp.float32)
        blk = {'w': w, 'gamma': gamma, 'beta': beta}
        if i == n_layers - 1:
            blk['bias'] = 0.1 * jax.random.normal(next(k), (cout,), jnp.float32)
        blocks.append(blk)
    return {'fc_w': fc_w, 'blocks': blocks}


# ----------------------------------------------------------------------------
if __name__ == "__main__":
    latent_dim = 32
    layer_list = [32, 16, 8]
    img_channels = 1
    batch = 2
    init_size = 64 // 2 ** len(layer_list)          # = 8

    key = jax.random.PRNGKey(0)
    k_param, k_input = jax.random.split(key)
    params = init_module_params(k_param, latent_dim, layer_list, img_channels, init_size)
    z = jax.random.normal(k_input, (batch, latent_dim), jnp.float32)

    ref = jax.block_until_ready(reference_forward(z, params, init_size))

    # 1) f32-operand run: tight value check of all tap/shift/interleave/BN packing.
    packed_f32 = build_packed(params, layer_list, img_channels, init_size, batch,
                              compute_dtype=jnp.float32)
    out_f32 = jax.block_until_ready(generator_forward(z, packed_f32))
    assert out_f32.shape == (batch, img_channels, 64, 64), out_f32.shape
    diff_f32 = float(jnp.max(jnp.abs(out_f32 - ref)))
    assert diff_f32 < 5e-4, diff_f32

    # 2) bf16-operand production run (MXU at bf16 rate; BN/elementwise math stays f32).
    packed_bf16 = build_packed(params, layer_list, img_channels, init_size, batch,
                               compute_dtype=jnp.bfloat16)
    out = jax.block_until_ready(generator_forward(z, packed_bf16))
    assert out.shape == (batch, img_channels, 64, 64), out.shape
    assert bool(jnp.all(jnp.isfinite(out)))
    assert bool(jnp.all(jnp.abs(out) <= 1.0 + 1e-6))          # tanh range
    diff_bf16 = float(jnp.max(jnp.abs(out - ref)))
    mean_diff_bf16 = float(jnp.mean(jnp.abs(out - ref)))
    # Tolerances reflect intentional bf16 matmul-operand rounding; structural/packing
    # correctness is already guaranteed by the tight f32 check above.
    assert diff_bf16 < 1e-1, diff_bf16
    assert mean_diff_bf16 < 1e-2, mean_diff_bf16

    print("KERNEL_OK")
</pallas_src>

<mosaic_0001>
module attributes {stable_mosaic.version = 11 : i64} {
  func.func @kernel(%arg0: memref<16x256xf32, #tpu.memory_space<vmem>>, %arg1: memref<256x256xf32, #tpu.memory_space<vmem>>, %arg2: memref<256x256xf32, #tpu.memory_space<vmem>>, %arg3: memref<1x256xf32, #tpu.memory_space<vmem>>, %arg4: memref<1x256xf32, #tpu.memory_space<vmem>>, %arg5: memref<512x256xf32, #tpu.memory_space<vmem>>, %arg6: memref<512x256xf32, #tpu.memory_space<vmem>>, %arg7: memref<32x32xf32, #tpu.memory_space<vmem>>, %arg8: memref<256x256xf32, #tpu.memory_space<vmem>>, %arg9: memref<1x256xf32, #tpu.memory_space<vmem>>, %arg10: memref<1x256xf32, #tpu.memory_space<vmem>>, %arg11: memref<512x256xf32, #tpu.memory_space<vmem>>, %arg12: memref<512x256xf32, #tpu.memory_space<vmem>>, %arg13: memref<64x64xf32, #tpu.memory_space<vmem>>, %arg14: memref<256x256xf32, #tpu.memory_space<vmem>>, %arg15: memref<1x256xf32, #tpu.memory_space<vmem>>, %arg16: memref<1x256xf32, #tpu.memory_space<vmem>>, %arg17: memref<1024x128xf32, #tpu.memory_space<vmem>>, %arg18: memref<1x128xf32, #tpu.memory_space<vmem>>, %arg19: memref<64x128xf32, #tpu.memory_space<vmem>>) attributes {dimension_semantics = [], scalar_prefetch = 0 : i64, scratch_operands = 0 : i64, tpu.core_type = #tpu.core_type<tc>} {
    %c0 = arith.constant 0 : index
    %c0_0 = arith.constant 0 : index
    %0 = vector.load %arg0[%c0, %c0_0] : memref<16x256xf32, #tpu.memory_space<vmem>>, vector<16x256xf32>
    %c0_1 = arith.constant 0 : index
    %c0_2 = arith.constant 0 : index
    %1 = vector.load %arg1[%c0_1, %c0_2] : memref<256x256xf32, #tpu.memory_space<vmem>>, vector<256x256xf32>
    %cst = arith.constant dense<0.000000e+00> : vector<16x256xf32>
    %2 = tpu.matmul %0, %1, %cst {dimension_numbers = #tpu.dot_dimension_numbers<[1], [0], [0], [1], [0, 0, 1, 1], [], []>} : vector<16x256xf32>, vector<256x256xf32>, vector<16x256xf32> -> vector<16x256xf32>
    %cst_3 = arith.constant dense<0.000000e+00> : vector<256xf32>
    %3 = vector.multi_reduction <add>, %2, %cst_3 [0] : vector<16x256xf32> to vector<256xf32>
    %4 = vector.shape_cast %3 : vector<256xf32> to vector<1x256xf32>
    %5 = arith.mulf %2, %2 : vector<16x256xf32>
    %cst_4 = arith.constant dense<0.000000e+00> : vector<256xf32>
    %6 = vector.multi_reduction <add>, %5, %cst_4 [0] : vector<16x256xf32> to vector<256xf32>
    %7 = vector.shape_cast %6 : vector<256xf32> to vector<1x256xf32>
    %c0_5 = arith.constant 0 : index
    %c0_6 = arith.constant 0 : index
    %8 = vector.load %arg2[%c0_5, %c0_6] : memref<256x256xf32, #tpu.memory_space<vmem>>, vector<256x256xf32>
    %cst_7 = arith.constant dense<0.000000e+00> : vector<1x256xf32>
    %9 = tpu.matmul %4, %8, %cst_7 {dimension_numbers = #tpu.dot_dimension_numbers<[1], [0], [0], [1], [0, 0, 1, 1], [], []>} : vector<1x256xf32>, vector<256x256xf32>, vector<1x256xf32> -> vector<1x256xf32>
    %cst_8 = arith.constant 7.812500e-03 : f32
    %10 = vector.broadcast %cst_8 : f32 to vector<1x256xf32>
    %11 = arith.mulf %9, %10 : vector<1x256xf32>
    %c0_9 = arith.constant 0 : index
    %c0_10 = arith.constant 0 : index
    %12 = vector.load %arg2[%c0_9, %c0_10] : memref<256x256xf32, #tpu.memory_space<vmem>>, vector<256x256xf32>
    %cst_11 = arith.constant dense<0.000000e+00> : vector<1x256xf32>
    %13 = tpu.matmul %7, %12, %cst_11 {dimension_numbers = #tpu.dot_dimension_numbers<[1], [0], [0], [1], [0, 0, 1, 1], [], []>} : vector<1x256xf32>, vector<256x256xf32>, vector<1x256xf32> -> vector<1x256xf32>
    %cst_12 = arith.constant 7.812500e-03 : f32
    %14 = vector.broadcast %cst_12 : f32 to vector<1x256xf32>
    %15 = arith.mulf %13, %14 : vector<1x256xf32>
    %16 = arith.mulf %11, %11 : vector<1x256xf32>
    %17 = arith.subf %15, %16 : vector<1x256xf32>
    %c0_13 = arith.constant 0 : index
    %c0_14 = arith.constant 0 : index
    %18 = vector.load %arg3[%c0_13, %c0_14] : memref<1x256xf32, #tpu.memory_space<vmem>>, vector<1x256xf32>
    %cst_15 = arith.constant 9.99999974E-6 : f32
    %19 = vector.broadcast %cst_15 : f32 to vector<1x256xf32>
    %20 = arith.addf %17, %19 : vector<1x256xf32>
    %21 = math.rsqrt %20 : vector<1x256xf32>
    %22 = arith.mulf %18, %21 : vector<1x256xf32>
    %23 = vector.broadcast %11 : vector<1x256xf32> to vector<16x256xf32>
    %24 = arith.subf %2, %23 : vector<16x256xf32>
    %25 = vector.broadcast %22 : vector<1x256xf32> to vector<16x256xf32>
    %26 = arith.mulf %24, %25 : vector<16x256xf32>
    %c0_16 = arith.constant 0 : index
    %c0_17 = arith.constant 0 : index
    %27 = vector.load %arg4[%c0_16, %c0_17] : memref<1x256xf32, #tpu.memory_space<vmem>>, vector<1x256xf32>
    %28 = vector.broadcast %27 : vector<1x256xf32> to vector<16x256xf32>
    %29 = arith.addf %26, %28 : vector<16x256xf32>
    %cst_18 = arith.constant 0.000000e+00 : f32
    %30 = vector.broadcast %cst_18 : f32 to vector<16x256xf32>
    %31 = arith.maximumf %29, %30 : vector<16x256xf32>
    %32 = tpu.iota {dimensions = array<i32: 0>} : vector<16x1xi32>
    %c8_i32 = arith.constant 8 : i32
    %c0_i32 = arith.constant 0 : i32
    %33 = arith.cmpi eq, %c8_i32, %c0_i32 : i32
    %c1_i32 = arith.constant 1 : i32
    %34 = arith.select %33, %c1_i32, %c8_i32 : i32
    %35 = vector.broadcast %34 : i32 to vector<16x1xi32>
    %36 = arith.remsi %32, %35 : vector<16x1xi32>
    %c0_i32_19 = arith.constant 0 : i32
    %37 = vector.broadcast %c0_i32_19 : i32 to vector<16x1xi32>
    %38 = arith.cmpi ne, %36, %37 : vector<16x1xi32>
    %c0_i32_20 = arith.constant 0 : i32
    %39 = vector.broadcast %c0_i32_20 : i32 to vector<16x1xi32>
    %40 = arith.cmpi slt, %36, %39 : vector<16x1xi32>
    %c0_i32_21 = arith.constant 0 : i32
    %41 = arith.cmpi slt, %34, %c0_i32_21 : i32
    %42 = vector.broadcast %41 : i1 to vector<16x1xi1>
    %43 = vector.broadcast %42 : vector<16x1xi1> to vector<16x1xi1>
    %44 = arith.xori %40, %43 : vector<16x1xi1>
    %45 = arith.andi %44, %38 : vector<16x1xi1>
    %46 = vector.broadcast %34 : i32 to vector<16x1xi32>
    %47 = arith.addi %36, %46 : vector<16x1xi32>
    %48 = arith.select %45, %47, %36 : vector<16x1xi1>, vector<16x1xi32>
    %c1_i32_22 = arith.constant 1 : i32
    %49 = tpu.dynamic_rotate %31 by %c1_i32_22 dim 0 : vector<16x256xf32>, i32 -> vector<16x256xf32>
    %c0_i32_23 = arith.constant 0 : i32
    %50 = vector.broadcast %c0_i32_23 : i32 to vector<16x1xi32>
    %51 = arith.cmpi ne, %48, %50 : vector<16x1xi32>
    %52 = arith.extui %51 : vector<16x1xi1> to vector<16x1xi32>
    %53 = arith.sitofp %52 : vector<16x1xi32> to vector<16x1xf32>
    %54 = vector.broadcast %53 : vector<16x1xf32> to vector<16x256xf32>
    %55 = arith.mulf %49, %54 : vector<16x256xf32>
    %c15_i32 = arith.constant 15 : i32
    %56 = tpu.dynamic_rotate %31 by %c15_i32 dim 0 : vector<16x256xf32>, i32 -> vector<16x256xf32>
    %c7_i32 = arith.constant 7 : i32
    %57 = vector.broadcast %c7_i32 : i32 to vector<16x1xi32>
    %58 = arith.cmpi ne, %48, %57 : vector<16x1xi32>
    %59 = arith.extui %58 : vector<16x1xi1> to vector<16x1xi32>
    %60 = arith.sitofp %59 : vector<16x1xi32> to vector<16x1xf32>
    %61 = vector.broadcast %60 : vector<16x1xf32> to vector<16x256xf32>
    %62 = arith.mulf %56, %61 : vector<16x256xf32>
    %63 = tpu.concatenate %31, %55 in 1 : vector<16x256xf32>, vector<16x256xf32> -> vector<16x512xf32>
    %64 = tpu.concatenate %62, %31 in 1 : vector<16x256xf32>, vector<16x256xf32> -> vector<16x512xf32>
    %c0_24 = arith.constant 0 : index
    %c0_25 = arith.constant 0 : index
    %65 = vector.load %arg5[%c0_24, %c0_25] : memref<512x256xf32, #tpu.memory_space<vmem>>, vector<512x256xf32>
    %cst_26 = arith.constant dense<0.000000e+00> : vector<16x256xf32>
    %66 = tpu.matmul %63, %65, %cst_26 {dimension_numbers = #tpu.dot_dimension_numbers<[1], [0], [0], [1], [0, 0, 1, 1], [], []>} : vector<16x512xf32>, vector<512x256xf32>, vector<16x256xf32> -> vector<16x256xf32>
    %c0_27 = arith.constant 0 : index
    %c0_28 = arith.constant 0 : index
    %67 = vector.load %arg6[%c0_27, %c0_28] : memref<512x256xf32, #tpu.memory_space<vmem>>, vector<512x256xf32>
    %cst_29 = arith.constant dense<0.000000e+00> : vector<16x256xf32>
    %68 = tpu.matmul %64, %67, %cst_29 {dimension_numbers = #tpu.dot_dimension_numbers<[1], [0], [0], [1], [0, 0, 1, 1], [], []>} : vector<16x512xf32>, vector<512x256xf32>, vector<16x256xf32> -> vector<16x256xf32>
    %69 = tpu.concatenate %66, %68 in 0 : vector<16x256xf32>, vector<16x256xf32> -> vector<32x256xf32>
    %c0_30 = arith.constant 0 : index
    %c0_31 = arith.constant 0 : index
    %70 = vector.load %arg7[%c0_30, %c0_31] : memref<32x32xf32, #tpu.memory_space<vmem>>, vector<32x32xf32>
    %cst_32 = arith.constant dense<0.000000e+00> : vector<32x256xf32>
    %71 = tpu.matmul %70, %69, %cst_32 {dimension_numbers = #tpu.dot_dimension_numbers<[1], [0], [0], [1], [0, 0, 1, 1], [], []>} : vector<32x32xf32>, vector<32x256xf32>, vector<32x256xf32> -> vector<32x256xf32>
    %cst_33 = arith.constant dense<0.000000e+00> : vector<256xf32>
    %72 = vector.multi_reduction <add>, %71, %cst_33 [0] : vector<32x256xf32> to vector<256xf32>
    %73 = vector.shape_cast %72 : vector<256xf32> to vector<1x256xf32>
    %74 = arith.mulf %71, %71 : vector<32x256xf32>
    %cst_34 = arith.constant dense<0.000000e+00> : vector<256xf32>
    %75 = vector.multi_reduction <add>, %74, %cst_34 [0] : vector<32x256xf32> to vector<256xf32>
    %76 = vector.shape_cast %75 : vector<256xf32> to vector<1x256xf32>
    %c0_35 = arith.constant 0 : index
    %c0_36 = arith.constant 0 : index
    %77 = vector.load %arg8[%c0_35, %c0_36] : memref<256x256xf32, #tpu.memory_space<vmem>>, vector<256x256xf32>
    %cst_37 = arith.constant dense<0.000000e+00> : vector<1x256xf32>
    %78 = tpu.matmul %73, %77, %cst_37 {dimension_numbers = #tpu.dot_dimension_numbers<[1], [0], [0], [1], [0, 0, 1, 1], [], []>} : vector<1x256xf32>, vector<256x256xf32>, vector<1x256xf32> -> vector<1x256xf32>
    %cst_38 = arith.constant 0.001953125 : f32
    %79 = vector.broadcast %cst_38 : f32 to vector<1x256xf32>
    %80 = arith.mulf %78, %79 : vector<1x256xf32>
    %c0_39 = arith.constant 0 : index
    %c0_40 = arith.constant 0 : index
    %81 = vector.load %arg8[%c0_39, %c0_40] : memref<256x256xf32, #tpu.memory_space<vmem>>, vector<256x256xf32>
    %cst_41 = arith.constant dense<0.000000e+00> : vector<1x256xf32>
    %82 = tpu.matmul %76, %81, %cst_41 {dimension_numbers = #tpu.dot_dimension_numbers<[1], [0], [0], [1], [0, 0, 1, 1], [], []>} : vector<1x256xf32>, vector<256x256xf32>, vector<1x256xf32> -> vector<1x256xf32>
    %cst_42 = arith.constant 0.001953125 : f32
    %83 = vector.broadcast %cst_42 : f32 to vector<1x256xf32>
    %84 = arith.mulf %82, %83 : vector<1x256xf32>
    %85 = arith.mulf %80, %80 : vector<1x256xf32>
    %86 = arith.subf %84, %85 : vector<1x256xf32>
    %c0_43 = arith.constant 0 : index
    %c0_44 = arith.constant 0 : index
    %87 = vector.load %arg9[%c0_43, %c0_44] : memref<1x256xf32, #tpu.memory_space<vmem>>, vector<1x256xf32>
    %cst_45 = arith.constant 9.99999974E-6 : f32
    %88 = vector.broadcast %cst_45 : f32 to vector<1x256xf32>
    %89 = arith.addf %86, %88 : vector<1x256xf32>
    %90 = math.rsqrt %89 : vector<1x256xf32>
    %91 = arith.mulf %87, %90 : vector<1x256xf32>
    %92 = vector.broadcast %80 : vector<1x256xf32> to vector<32x256xf32>
    %93 = arith.subf %71, %92 : vector<32x256xf32>
    %94 = vector.broadcast %91 : vector<1x256xf32> to vector<32x256xf32>
    %95 = arith.mulf %93, %94 : vector<32x256xf32>
    %c0_46 = arith.constant 0 : index
    %c0_47 = arith.constant 0 : index
    %96 = vector.load %arg10[%c0_46, %c0_47] : memref<1x256xf32, #tpu.memory_space<vmem>>, vector<1x256xf32>
    %97 = vector.broadcast %96 : vector<1x256xf32> to vector<32x256xf32>
    %98 = arith.addf %95, %97 : vector<32x256xf32>
    %cst_48 = arith.constant 0.000000e+00 : f32
    %99 = vector.broadcast %cst_48 : f32 to vector<32x256xf32>
    %100 = arith.maximumf %98, %99 : vector<32x256xf32>
    %101 = tpu.iota {dimensions = array<i32: 0>} : vector<32x1xi32>
    %c16_i32 = arith.constant 16 : i32
    %c0_i32_49 = arith.constant 0 : i32
    %102 = arith.cmpi eq, %c16_i32, %c0_i32_49 : i32
    %c1_i32_50 = arith.constant 1 : i32
    %103 = arith.select %102, %c1_i32_50, %c16_i32 : i32
    %104 = vector.broadcast %103 : i32 to vector<32x1xi32>
    %105 = arith.remsi %101, %104 : vector<32x1xi32>
    %c0_i32_51 = arith.constant 0 : i32
    %106 = vector.broadcast %c0_i32_51 : i32 to vector<32x1xi32>
    %107 = arith.cmpi ne, %105, %106 : vector<32x1xi32>
    %c0_i32_52 = arith.constant 0 : i32
    %108 = vector.broadcast %c0_i32_52 : i32 to vector<32x1xi32>
    %109 = arith.cmpi slt, %105, %108 : vector<32x1xi32>
    %c0_i32_53 = arith.constant 0 : i32
    %110 = arith.cmpi slt, %103, %c0_i32_53 : i32
    %111 = vector.broadcast %110 : i1 to vector<32x1xi1>
    %112 = vector.broadcast %111 : vector<32x1xi1> to vector<32x1xi1>
    %113 = arith.xori %109, %112 : vector<32x1xi1>
    %114 = arith.andi %113, %107 : vector<32x1xi1>
    %115 = vector.broadcast %103 : i32 to vector<32x1xi32>
    %116 = arith.addi %105, %115 : vector<32x1xi32>
    %117 = arith.select %114, %116, %105 : vector<32x1xi1>, vector<32x1xi32>
    %c1_i32_54 = arith.constant 1 : i32
    %118 = tpu.dynamic_rotate %100 by %c1_i32_54 dim 0 : vector<32x256xf32>, i32 -> vector<32x256xf32>
    %c0_i32_55 = arith.constant 0 : i32
    %119 = vector.broadcast %c0_i32_55 : i32 to vector<32x1xi32>
    %120 = arith.cmpi ne, %117, %119 : vector<32x1xi32>
    %121 = arith.extui %120 : vector<32x1xi1> to vector<32x1xi32>
    %122 = arith.sitofp %121 : vector<32x1xi32> to vector<32x1xf32>
    %123 = vector.broadcast %122 : vector<32x1xf32> to vector<32x256xf32>
    %124 = arith.mulf %118, %123 : vector<32x256xf32>
    %c31_i32 = arith.constant 31 : i32
    %125 = tpu.dynamic_rotate %100 by %c31_i32 dim 0 : vector<32x256xf32>, i32 -> vector<32x256xf32>
    %c15_i32_56 = arith.constant 15 : i32
    %126 = vector.broadcast %c15_i32_56 : i32 to vector<32x1xi32>
    %127 = arith.cmpi ne, %117, %126 : vector<32x1xi32>
    %128 = arith.extui %127 : vector<32x1xi1> to vector<32x1xi32>
    %129 = arith.sitofp %128 : vector<32x1xi32> to vector<32x1xf32>
    %130 = vector.broadcast %129 : vector<32x1xf32> to vector<32x256xf32>
    %131 = arith.mulf %125, %130 : vector<32x256xf32>
    %132 = tpu.concatenate %100, %124 in 1 : vector<32x256xf32>, vector<32x256xf32> -> vector<32x512xf32>
    %133 = tpu.concatenate %131, %100 in 1 : vector<32x256xf32>, vector<32x256xf32> -> vector<32x512xf32>
    %c0_57 = arith.constant 0 : index
    %c0_58 = arith.constant 0 : index
    %134 = vector.load %arg11[%c0_57, %c0_58] : memref<512x256xf32, #tpu.memory_space<vmem>>, vector<512x256xf32>
    %cst_59 = arith.constant dense<0.000000e+00> : vector<32x256xf32>
    %135 = tpu.matmul %132, %134, %cst_59 {dimension_numbers = #tpu.dot_dimension_numbers<[1], [0], [0], [1], [0, 0, 1, 1], [], []>} : vector<32x512xf32>, vector<512x256xf32>, vector<32x256xf32> -> vector<32x256xf32>
    %c0_60 = arith.constant 0 : index
    %c0_61 = arith.constant 0 : index
    %136 = vector.load %arg12[%c0_60, %c0_61] : memref<512x256xf32, #tpu.memory_space<vmem>>, vector<512x256xf32>
    %cst_62 = arith.constant dense<0.000000e+00> : vector<32x256xf32>
    %137 = tpu.matmul %133, %136, %cst_62 {dimension_numbers = #tpu.dot_dimension_numbers<[1], [0], [0], [1], [0, 0, 1, 1], [], []>} : vector<32x512xf32>, vector<512x256xf32>, vector<32x256xf32> -> vector<32x256xf32>
    %138 = tpu.concatenate %135, %137 in 0 : vector<32x256xf32>, vector<32x256xf32> -> vector<64x256xf32>
    %c0_63 = arith.constant 0 : index
    %c0_64 = arith.constant 0 : index
    %139 = vector.load %arg13[%c0_63, %c0_64] : memref<64x64xf32, #tpu.memory_space<vmem>>, vector<64x64xf32>
    %cst_65 = arith.constant dense<0.000000e+00> : vector<64x256xf32>
    %140 = tpu.matmul %139, %138, %cst_65 {dimension_numbers = #tpu.dot_dimension_numbers<[1], [0], [0], [1], [0, 0, 1, 1], [], []>} : vector<64x64xf32>, vector<64x256xf32>, vector<64x256xf32> -> vector<64x256xf32>
    %cst_66 = arith.constant dense<0.000000e+00> : vector<256xf32>
    %141 = vector.multi_reduction <add>, %140, %cst_66 [0] : vector<64x256xf32> to vector<256xf32>
    %142 = vector.shape_cast %141 : vector<256xf32> to vector<1x256xf32>
    %143 = arith.mulf %140, %140 : vector<64x256xf32>
    %cst_67 = arith.constant dense<0.000000e+00> : vector<256xf32>
    %144 = vector.multi_reduction <add>, %143, %cst_67 [0] : vector<64x256xf32> to vector<256xf32>
    %145 = vector.shape_cast %144 : vector<256xf32> to vector<1x256xf32>
    %c0_68 = arith.constant 0 : index
    %c0_69 = arith.constant 0 : index
    %146 = vector.load %arg14[%c0_68, %c0_69] : memref<256x256xf32, #tpu.memory_space<vmem>>, vector<256x256xf32>
    %cst_70 = arith.constant dense<0.000000e+00> : vector<1x256xf32>
    %147 = tpu.matmul %142, %146, %cst_70 {dimension_numbers = #tpu.dot_dimension_numbers<[1], [0], [0], [1], [0, 0, 1, 1], [], []>} : vector<1x256xf32>, vector<256x256xf32>, vector<1x256xf32> -> vector<1x256xf32>
    %cst_71 = arith.constant 4.8828125E-4 : f32
    %148 = vector.broadcast %cst_71 : f32 to vector<1x256xf32>
    %149 = arith.mulf %147, %148 : vector<1x256xf32>
    %c0_72 = arith.constant 0 : index
    %c0_73 = arith.constant 0 : index
    %150 = vector.load %arg14[%c0_72, %c0_73] : memref<256x256xf32, #tpu.memory_space<vmem>>, vector<256x256xf32>
    %cst_74 = arith.constant dense<0.000000e+00> : vector<1x256xf32>
    %151 = tpu.matmul %145, %150, %cst_74 {dimension_numbers = #tpu.dot_dimension_numbers<[1], [0], [0], [1], [0, 0, 1, 1], [], []>} : vector<1x256xf32>, vector<256x256xf32>, vector<1x256xf32> -> vector<1x256xf32>
    %cst_75 = arith.constant 4.8828125E-4 : f32
    %152 = vector.broadcast %cst_75 : f32 to vector<1x256xf32>
    %153 = arith.mulf %151, %152 : vector<1x256xf32>
    %154 = arith.mulf %149, %149 : vector<1x256xf32>
    %155 = arith.subf %153, %154 : vector<1x256xf32>
    %c0_76 = arith.constant 0 : index
    %c0_77 = arith.constant 0 : index
    %156 = vector.load %arg15[%c0_76, %c0_77] : memref<1x256xf32, #tpu.memory_space<vmem>>, vector<1x256xf32>
    %cst_78 = arith.constant 9.99999974E-6 : f32
    %157 = vector.broadcast %cst_78 : f32 to vector<1x256xf32>
    %158 = arith.addf %155, %157 : vector<1x256xf32>
    %159 = math.rsqrt %158 : vector<1x256xf32>
    %160 = arith.mulf %156, %159 : vector<1x256xf32>
    %161 = vector.broadcast %149 : vector<1x256xf32> to vector<64x256xf32>
    %162 = arith.subf %140, %161 : vector<64x256xf32>
    %163 = vector.broadcast %160 : vector<1x256xf32> to vector<64x256xf32>
    %164 = arith.mulf %162, %163 : vector<64x256xf32>
    %c0_79 = arith.constant 0 : index
    %c0_80 = arith.constant 0 : index
    %165 = vector.load %arg16[%c0_79, %c0_80] : memref<1x256xf32, #tpu.memory_space<vmem>>, vector<1x256xf32>
    %166 = vector.broadcast %165 : vector<1x256xf32> to vector<64x256xf32>
    %167 = arith.addf %164, %166 : vector<64x256xf32>
    %cst_81 = arith.constant 0.000000e+00 : f32
    %168 = vector.broadcast %cst_81 : f32 to vector<64x256xf32>
    %169 = arith.maximumf %167, %168 : vector<64x256xf32>
    %170 = tpu.iota {dimensions = array<i32: 0>} : vector<64x1xi32>
    %c32_i32 = arith.constant 32 : i32
    %c0_i32_82 = arith.constant 0 : i32
    %171 = arith.cmpi eq, %c32_i32, %c0_i32_82 : i32
    %c1_i32_83 = arith.constant 1 : i32
    %172 = arith.select %171, %c1_i32_83, %c32_i32 : i32
    %173 = vector.broadcast %172 : i32 to vector<64x1xi32>
    %174 = arith.remsi %170, %173 : vector<64x1xi32>
    %c0_i32_84 = arith.constant 0 : i32
    %175 = vector.broadcast %c0_i32_84 : i32 to vector<64x1xi32>
    %176 = arith.cmpi ne, %174, %175 : vector<64x1xi32>
    %c0_i32_85 = arith.constant 0 : i32
    %177 = vector.broadcast %c0_i32_85 : i32 to vector<64x1xi32>
    %178 = arith.cmpi slt, %174, %177 : vector<64x1xi32>
    %c0_i32_86 = arith.constant 0 : i32
    %179 = arith.cmpi slt, %172, %c0_i32_86 : i32
    %180 = vector.broadcast %179 : i1 to vector<64x1xi1>
    %181 = vector.broadcast %180 : vector<64x1xi1> to vector<64x1xi1>
    %182 = arith.xori %178, %181 : vector<64x1xi1>
    %183 = arith.andi %182, %176 : vector<64x1xi1>
    %184 = vector.broadcast %172 : i32 to vector<64x1xi32>
    %185 = arith.addi %174, %184 : vector<64x1xi32>
    %186 = arith.select %183, %185, %174 : vector<64x1xi1>, vector<64x1xi32>
    %c1_i32_87 = arith.constant 1 : i32
    %187 = tpu.dynamic_rotate %169 by %c1_i32_87 dim 0 : vector<64x256xf32>, i32 -> vector<64x256xf32>
    %c0_i32_88 = arith.constant 0 : i32
    %188 = vector.broadcast %c0_i32_88 : i32 to vector<64x1xi32>
    %189 = arith.cmpi ne, %186, %188 : vector<64x1xi32>
    %190 = arith.extui %189 : vector<64x1xi1> to vector<64x1xi32>
    %191 = arith.sitofp %190 : vector<64x1xi32> to vector<64x1xf32>
    %192 = vector.broadcast %191 : vector<64x1xf32> to vector<64x256xf32>
    %193 = arith.mulf %187, %192 : vector<64x256xf32>
    %c63_i32 = arith.constant 63 : i32
    %194 = tpu.dynamic_rotate %169 by %c63_i32 dim 0 : vector<64x256xf32>, i32 -> vector<64x256xf32>
    %c31_i32_89 = arith.constant 31 : i32
    %195 = vector.broadcast %c31_i32_89 : i32 to vector<64x1xi32>
    %196 = arith.cmpi ne, %186, %195 : vector<64x1xi32>
    %197 = arith.extui %196 : vector<64x1xi1> to vector<64x1xi32>
    %198 = arith.sitofp %197 : vector<64x1xi32> to vector<64x1xf32>
    %199 = vector.broadcast %198 : vector<64x1xf32> to vector<64x256xf32>
    %200 = arith.mulf %194, %199 : vector<64x256xf32>
    %201 = tpu.concatenate %169, %193, %200, %169 in 1 : vector<64x256xf32>, vector<64x256xf32>, vector<64x256xf32>, vector<64x256xf32> -> vector<64x1024xf32>
    %c0_90 = arith.constant 0 : index
    %c0_91 = arith.constant 0 : index
    %202 = vector.load %arg17[%c0_90, %c0_91] : memref<1024x128xf32, #tpu.memory_space<vmem>>, vector<1024x128xf32>
    %cst_92 = arith.constant dense<0.000000e+00> : vector<64x128xf32>
    %203 = tpu.matmul %201, %202, %cst_92 {dimension_numbers = #tpu.dot_dimension_numbers<[1], [0], [0], [1], [0, 0, 1, 1], [], []>} : vector<64x1024xf32>, vector<1024x128xf32>, vector<64x128xf32> -> vector<64x128xf32>
    %c0_93 = arith.constant 0 : index
    %c0_94 = arith.constant 0 : index
    %204 = vector.load %arg18[%c0_93, %c0_94] : memref<1x128xf32, #tpu.memory_space<vmem>>, vector<1x128xf32>
    %205 = vector.broadcast %204 : vector<1x128xf32> to vector<64x128xf32>
    %206 = arith.addf %203, %205 : vector<64x128xf32>
    %207 = math.tanh %206 : vector<64x128xf32>
    %c0_95 = arith.constant 0 : index
    %c0_96 = arith.constant 0 : index
    %208 = vector.load %arg19[%c0_95, %c0_96] : memref<64x128xf32, #tpu.memory_space<vmem>>, vector<64x128xf32>
    tpu.vector_store %arg19[%c0_95, %c0_96], %207 {strides = array<i32>} : memref<64x128xf32, #tpu.memory_space<vmem>>, vector<64x128xf32>,
    return
  }
}

</mosaic_0001>

<llo_original>
// kernel: tpu_custom_call.1
$region0: #{tpu_custom_call.1}
  #allocation0 [shape = 'u32[]', space=smem, size = 0x4, offset = 0x4, fixed_abs, tag = 'smem constant byte address 0x4 - core index']
  #allocation1 [shape = 'u32[144,128]{1,0:T(1,128)}', space=vmem, size = 0x12000, scoped, tag = 'internal scratch']
  %s0 = inlined_call_operand.hbm [shape: f32[16,256], index: 0, kind: input, shape index: {}]
  %s1 = inlined_call_operand.hbm [shape: f32[256,256], index: 1, kind: input, shape index: {}]
  %s2 = inlined_call_operand.hbm [shape: f32[256,256], index: 2, kind: input, shape index: {}]
  %s3 = inlined_call_operand.vmem [shape: f32[1,256], index: 3, kind: input, shape index: {}]
  %s4 = inlined_call_operand.vmem [shape: f32[1,256], index: 4, kind: input, shape index: {}]
  %s5 = inlined_call_operand.hbm [shape: f32[512,256], index: 5, kind: input, shape index: {}]
  %s6 = inlined_call_operand.hbm [shape: f32[512,256], index: 6, kind: input, shape index: {}]
  %s7 = inlined_call_operand.hbm [shape: f32[32,32], index: 7, kind: input, shape index: {}]
  %s8 = inlined_call_operand.hbm [shape: f32[256,256], index: 8, kind: input, shape index: {}]
  %s9 = inlined_call_operand.vmem [shape: f32[1,256], index: 9, kind: input, shape index: {}]
  %s10 = inlined_call_operand.vmem [shape: f32[1,256], index: 10, kind: input, shape index: {}]
  %s11 = inlined_call_operand.hbm [shape: f32[512,256], index: 11, kind: input, shape index: {}]
  %s12 = inlined_call_operand.hbm [shape: f32[512,256], index: 12, kind: input, shape index: {}]
  %s13 = inlined_call_operand.hbm [shape: f32[64,64], index: 13, kind: input, shape index: {}]
  %s14 = inlined_call_operand.hbm [shape: f32[256,256], index: 14, kind: input, shape index: {}]
  %s15 = inlined_call_operand.vmem [shape: f32[1,256], index: 15, kind: input, shape index: {}]
  %s16 = inlined_call_operand.vmem [shape: f32[1,256], index: 16, kind: input, shape index: {}]
  %s17 = inlined_call_operand.hbm [shape: f32[1024,128], index: 17, kind: input, shape index: {}]
  %s18 = inlined_call_operand.vmem [shape: f32[1,128], index: 18, kind: input, shape index: {}]
  %s19 = inlined_call_operand.hbm [shape: f32[64,128], index: 19, kind: output, shape index: {}]
  %s20 = sld [smem:[#allocation0]]
  $region134: #{tpu_custom_call.1} parent=0
    _
  %s22 = ssub.s32 1, %s20
  %s23 = scalar_select 0, %s22, %s20
  $region1: #{tpu_custom_call.1} parent=0
    #allocation2 [shape = 'u8[16384]{0}', space=vmem, size = 0x4000, scoped, tag = 'input window, operand 0, single buffered']
    #allocation3 [shape = 's32[1]{0}', space=sflag, size = 0x4, scoped, tag = 'scoped memory for tpu_custom_call.1']
    #allocation4 [shape = 's32[1]{0}', space=sflag, size = 0x4, scoped, tag = 'scoped memory for tpu_custom_call.1']
    #allocation5 [shape = 'u8[262144]{0}', space=vmem, size = 0x40000, scoped, tag = 'input window, operand 1, single buffered']
    #allocation6 [shape = 's32[1]{0}', space=sflag, size = 0x4, scoped, tag = 'scoped memory for tpu_custom_call.1']
    #allocation7 [shape = 'u8[262144]{0}', space=vmem, size = 0x40000, scoped, tag = 'input window, operand 2, single buffered']
    #allocation8 [shape = 'u8[524288]{0}', space=vmem, size = 0x80000, scoped, tag = 'input window, operand 5, single buffered']
    #allocation9 [shape = 's32[1]{0}', space=sflag, size = 0x4, scoped, tag = 'scoped memory for tpu_custom_call.1']
    #allocation10 [shape = 'u8[524288]{0}', space=vmem, size = 0x80000, scoped, tag = 'input window, operand 6, single buffered']
    #allocation11 [shape = 'u8[16384]{0}', space=vmem, size = 0x4000, scoped, tag = 'input window, operand 7, single buffered']
    #allocation12 [shape = 's32[1]{0}', space=sflag, size = 0x4, scoped, tag = 'scoped memory for tpu_custom_call.1']
    #allocation13 [shape = 'u8[262144]{0}', space=vmem, size = 0x40000, scoped, tag = 'input window, operand 8, single buffered']
    #allocation14 [shape = 'u8[524288]{0}', space=vmem, size = 0x80000, scoped, tag = 'input window, operand 11, single buffered']
    #allocation15 [shape = 's32[1]{0}', space=sflag, size = 0x4, scoped, tag = 'scoped memory for tpu_custom_call.1']
    #allocation16 [shape = 'u8[524288]{0}', space=vmem, size = 0x80000, scoped, tag = 'input window, operand 12, single buffered']
    #allocation17 [shape = 'u8[32768]{0}', space=vmem, size = 0x8000, scoped, tag = 'input window, operand 13, single buffered']
    #allocation18 [shape = 's32[1]{0}', space=sflag, size = 0x4, scoped, tag = 'scoped memory for tpu_custom_call.1']
    #allocation19 [shape = 'u8[262144]{0}', space=vmem, size = 0x40000, scoped, tag = 'input window, operand 14, single buffered']
    #allocation20 [shape = 'u8[524288]{0}', space=vmem, size = 0x80000, scoped, tag = 'input window, operand 17, single buffered']
    #allocation21 [shape = 's32[1]{0}', space=sflag, size = 0x4, scoped, tag = 'scoped memory for tpu_custom_call.1']
    #allocation22 [shape = 'u8[32768]{0}', space=vmem, size = 0x8000, scoped, tag = 'output window, operand 0, single buffered']
    %24 = vsyncpa [#allocation3], 0
    %25 = vsyncpa [#allocation6], 0
    %26 = vsyncpa [#allocation9], 0
    %27 = vsyncpa [#allocation12], 0
    %28 = vsyncpa [#allocation15], 0
    %29 = vsyncpa [#allocation18], 0
    %30 = vsyncpa [#allocation21], 0
    %31 = vsyncpa [#allocation4], 0
    // Predicated region
    $region2: #{tpu_custom_call.1} parent=1 // pred_check
      _
    $region3: #{tpu_custom_call.1} parent=1 // pred_check_branch
      %33 = sbr.rel (0) target = $region5
    $region4: #{tpu_custom_call.1} parent=1 // pred_region
      %s35 = ssub.s32 512, 512
      %36 = vsyncadd [#allocation3], %s35
      %s37 = sshll.u32 [#allocation2], 4
      %s38 = int_to_ptr.vmem [resolvable:$true] %s37
      %43 = dma.hbm_to_vmem [thread:$0]  %s0, 512, %s38, [#allocation3], 256, 256, 16
    $region5: #{tpu_custom_call.1} parent=1 // pred_fallthru
      _
    // Predicated region
    $region6: #{tpu_custom_call.1} parent=1 // pred_check
      _
    $region7: #{tpu_custom_call.1} parent=1 // pred_check_branch
      %45 = sbr.rel (0) target = $region9
    $region8: #{tpu_custom_call.1} parent=1 // pred_region
      %s47 = ssub.s32 8192, 8192
      %48 = vsyncadd [#allocation6], %s47
      %s49 = sshll.u32 [#allocation5], 4
      %s50 = int_to_ptr.vmem [resolvable:$true] %s49
      %55 = dma.hbm_to_vmem [thread:$0]  %s1, 8192, %s50, [#allocation6], 256, 256, 16
    $region9: #{tpu_custom_call.1} parent=1 // pred_fallthru
      _
    // Predicated region
    $region10: #{tpu_custom_call.1} parent=1 // pred_check
      _
    $region11: #{tpu_custom_call.1} parent=1 // pred_check_branch
      %57 = sbr.rel (0) target = $region13
    $region12: #{tpu_custom_call.1} parent=1 // pred_region
      %s59 = ssub.s32 8192, 8192
      %60 = vsyncadd [#allocation6], %s59
      %s61 = sshll.u32 [#allocation7], 4
      %s62 = int_to_ptr.vmem [resolvable:$true] %s61
      %67 = dma.hbm_to_vmem [thread:$0]  %s2, 8192, %s62, [#allocation6], 256, 256, 16
    $region13: #{tpu_custom_call.1} parent=1 // pred_fallthru
      _
    // Predicated region
    $region14: #{tpu_custom_call.1} parent=1 // pred_check
      _
    $region15: #{tpu_custom_call.1} parent=1 // pred_check_branch
      %69 = sbr.rel (0) target = $region17
    $region16: #{tpu_custom_call.1} parent=1 // pred_region
      _
    $region17: #{tpu_custom_call.1} parent=1 // pred_fallthru
      _
    // Predicated region
    $region18: #{tpu_custom_call.1} parent=1 // pred_check
      _
    $region19: #{tpu_custom_call.1} parent=1 // pred_check_branch
      %71 = sbr.rel (0) target = $region21
    $region20: #{tpu_custom_call.1} parent=1 // pred_region
      _
    $region21: #{tpu_custom_call.1} parent=1 // pred_fallthru
      _
    // Predicated region
    $region22: #{tpu_custom_call.1} parent=1 // pred_check
      _
    $region23: #{tpu_custom_call.1} parent=1 // pred_check_branch
      %73 = sbr.rel (0) target = $region25
    $region24: #{tpu_custom_call.1} parent=1 // pred_region
      %s75 = ssub.s32 16384, 16384
      %76 = vsyncadd [#allocation9], %s75
      %s77 = sshll.u32 [#allocation8], 4
      %s78 = int_to_ptr.vmem [resolvable:$true] %s77
      %83 = dma.hbm_to_vmem [thread:$0]  %s5, 16384, %s78, [#allocation9], 256, 256, 16
    $region25: #{tpu_custom_call.1} parent=1 // pred_fallthru
      _
    // Predicated region
    $region26: #{tpu_custom_call.1} parent=1 // pred_check
      _
    $region27: #{tpu_custom_call.1} parent=1 // pred_check_branch
      %85 = sbr.rel (0) target = $region29
    $region28: #{tpu_custom_call.1} parent=1 // pred_region
      %s87 = ssub.s32 16384, 16384
      %88 = vsyncadd [#allocation9], %s87
      %s89 = sshll.u32 [#allocation10], 4
      %s90 = int_to_ptr.vmem [resolvable:$true] %s89
      %95 = dma.hbm_to_vmem [thread:$0]  %s6, 16384, %s90, [#allocation9], 256, 256, 16
    $region29: #{tpu_custom_call.1} parent=1 // pred_fallthru
      _
    // Predicated region
    $region30: #{tpu_custom_call.1} parent=1 // pred_check
      _
    $region31: #{tpu_custom_call.1} parent=1 // pred_check_branch
      %97 = sbr.rel (0) target = $region33
    $region32: #{tpu_custom_call.1} parent=1 // pred_region
      %s99 = ssub.s32 512, 512
      %100 = vsyncadd [#allocation12], %s99
      %s101 = sshll.u32 [#allocation11], 4
      %s102 = int_to_ptr.vmem [resolvable:$true] %s101
      %107 = dma.hbm_to_vmem [thread:$0]  %s7, 512, %s102, [#allocation12], 128, 128, 8
    $region33: #{tpu_custom_call.1} parent=1 // pred_fallthru
      _
    // Predicated region
    $region34: #{tpu_custom_call.1} parent=1 // pred_check
      _
    $region35: #{tpu_custom_call.1} parent=1 // pred_check_branch
      %109 = sbr.rel (0) target = $region37
    $region36: #{tpu_custom_call.1} parent=1 // pred_region
      %s111 = ssub.s32 8192, 8192
      %112 = vsyncadd [#allocation12], %s111
      %s113 = sshll.u32 [#allocation13], 4
      %s114 = int_to_ptr.vmem [resolvable:$true] %s113
      %119 = dma.hbm_to_vmem [thread:$0]  %s8, 8192, %s114, [#allocation12], 256, 256, 16
    $region37: #{tpu_custom_call.1} parent=1 // pred_fallthru
      _
    // Predicated region
    $region38: #{tpu_custom_call.1} parent=1 // pred_check
      _
    $region39: #{tpu_custom_call.1} parent=1 // pred_check_branch
      %121 = sbr.rel (0) target = $region41
    $region40: #{tpu_custom_call.1} parent=1 // pred_region
      _
    $region41: #{tpu_custom_call.1} parent=1 // pred_fallthru
      _
    // Predicated region
    $region42: #{tpu_custom_call.1} parent=1 // pred_check
      _
    $region43: #{tpu_custom_call.1} parent=1 // pred_check_branch
      %123 = sbr.rel (0) target = $region45
    $region44: #{tpu_custom_call.1} parent=1 // pred_region
      _
    $region45: #{tpu_custom_call.1} parent=1 // pred_fallthru
      _
    // Predicated region
    $region46: #{tpu_custom_call.1} parent=1 // pred_check
      _
    $region47: #{tpu_custom_call.1} parent=1 // pred_check_branch
      %125 = sbr.rel (0) target = $region49
    $region48: #{tpu_custom_call.1} parent=1 // pred_region
      %s127 = ssub.s32 16384, 16384
      %128 = vsyncadd [#allocation15], %s127
      %s129 = sshll.u32 [#allocation14], 4
      %s130 = int_to_ptr.vmem [resolvable:$true] %s129
      %135 = dma.hbm_to_vmem [thread:$0]  %s11, 16384, %s130, [#allocation15], 256, 256, 16
    $region49: #{tpu_custom_call.1} parent=1 // pred_fallthru
      _
    // Predicated region
    $region50: #{tpu_custom_call.1} parent=1 // pred_check
      _
    $region51: #{tpu_custom_call.1} parent=1 // pred_check_branch
      %137 = sbr.rel (0) target = $region53
    $region52: #{tpu_custom_call.1} parent=1 // pred_region
      %s139 = ssub.s32 16384, 16384
      %140 = vsyncadd [#allocation15], %s139
      %s141 = sshll.u32 [#allocation16], 4
      %s142 = int_to_ptr.vmem [resolvable:$true] %s141
      %147 = dma.hbm_to_vmem [thread:$0]  %s12, 16384, %s142, [#allocation15], 256, 256, 16
    $region53: #{tpu_custom_call.1} parent=1 // pred_fallthru
      _
    // Predicated region
    $region54: #{tpu_custom_call.1} parent=1 // pred_check
      _
    $region55: #{tpu_custom_call.1} parent=1 // pred_check_branch
      %149 = sbr.rel (0) target = $region57
    $region56: #{tpu_custom_call.1} parent=1 // pred_region
      %s151 = ssub.s32 1024, 1024
      %152 = vsyncadd [#allocation18], %s151
      %s153 = sshll.u32 [#allocation17], 4
      %s154 = int_to_ptr.vmem [resolvable:$true] %s153
      %159 = dma.hbm_to_vmem [thread:$0]  %s13, 1024, %s154, [#allocation18], 128, 128, 8
    $region57: #{tpu_custom_call.1} parent=1 // pred_fallthru
      _
    // Predicated region
    $region58: #{tpu_custom_call.1} parent=1 // pred_check
      _
    $region59: #{tpu_custom_call.1} parent=1 // pred_check_branch
      %161 = sbr.rel (0) target = $region61
    $region60: #{tpu_custom_call.1} parent=1 // pred_region
      %s163 = ssub.s32 8192, 8192
      %164 = vsyncadd [#allocation18], %s163
      %s165 = sshll.u32 [#allocation19], 4
      %s166 = int_to_ptr.vmem [resolvable:$true] %s165
      %171 = dma.hbm_to_vmem [thread:$0]  %s14, 8192, %s166, [#allocation18], 256, 256, 16
    $region61: #{tpu_custom_call.1} parent=1 // pred_fallthru
      _
    // Predicated region
    $region62: #{tpu_custom_call.1} parent=1 // pred_check
      _
    $region63: #{tpu_custom_call.1} parent=1 // pred_check_branch
      %173 = sbr.rel (0) target = $region65
    $region64: #{tpu_custom_call.1} parent=1 // pred_region
      _
    $region65: #{tpu_custom_call.1} parent=1 // pred_fallthru
      _
    // Predicated region
    $region66: #{tpu_custom_call.1} parent=1 // pred_check
      _
    $region67: #{tpu_custom_call.1} parent=1 // pred_check_branch
      %175 = sbr.rel (0) target = $region69
    $region68: #{tpu_custom_call.1} parent=1 // pred_region
      _
    $region69: #{tpu_custom_call.1} parent=1 // pred_fallthru
      _
    // Predicated region
    $region70: #{tpu_custom_call.1} parent=1 // pred_check
      _
    $region71: #{tpu_custom_call.1} parent=1 // pred_check_branch
      %177 = sbr.rel (0) target = $region73
    $region72: #{tpu_custom_call.1} parent=1 // pred_region
      %s179 = ssub.s32 16384, 16384
      %180 = vsyncadd [#allocation21], %s179
      %s181 = sshll.u32 [#allocation20], 4
      %s182 = int_to_ptr.vmem [resolvable:$true] %s181
      %187 = dma.hbm_to_vmem [thread:$0]  %s17, 16384, %s182, [#allocation21], 128, 128, 8
    $region73: #{tpu_custom_call.1} parent=1 // pred_fallthru
      _
    // Predicated region
    $region74: #{tpu_custom_call.1} parent=1 // pred_check
      _
    $region75: #{tpu_custom_call.1} parent=1 // pred_check_branch
      %189 = sbr.rel (0) target = $region77
    $region76: #{tpu_custom_call.1} parent=1 // pred_region
      _
    $region77: #{tpu_custom_call.1} parent=1 // pred_fallthru
      _
    // Predicated region
    $region78: #{tpu_custom_call.1} parent=1 // pred_check
      _
    $region79: #{tpu_custom_call.1} parent=1 // pred_check_branch
      %191 = sbr.rel (0) target = $region81
    $region80: #{tpu_custom_call.1} parent=1 // pred_region
      %192 = dma.done [#allocation3], 512
    $region81: #{tpu_custom_call.1} parent=1 // pred_fallthru
      _
    // Predicated region
    $region82: #{tpu_custom_call.1} parent=1 // pred_check
      _
    $region83: #{tpu_custom_call.1} parent=1 // pred_check_branch
      %194 = sbr.rel (0) target = $region85
    $region84: #{tpu_custom_call.1} parent=1 // pred_region
      %195 = dma.done [#allocation6], 8192
    $region85: #{tpu_custom_call.1} parent=1 // pred_fallthru
      _
    // Predicated region
    $region86: #{tpu_custom_call.1} parent=1 // pred_check
      _
    $region87: #{tpu_custom_call.1} parent=1 // pred_check_branch
      %197 = sbr.rel (0) target = $region89
    $region88: #{tpu_custom_call.1} parent=1 // pred_region
      %198 = dma.done [#allocation6], 8192
    $region89: #{tpu_custom_call.1} parent=1 // pred_fallthru
      _
    // Predicated region
    $region90: #{tpu_custom_call.1} parent=1 // pred_check
      _
    $region91: #{tpu_custom_call.1} parent=1 // pred_check_branch
      %200 = sbr.rel (0) target = $region93
    $region92: #{tpu_custom_call.1} parent=1 // pred_region
      %201 = dma.done [#allocation9], 16384
    $region93: #{tpu_custom_call.1} parent=1 // pred_fallthru
      _
    // Predicated region
    $region94: #{tpu_custom_call.1} parent=1 // pred_check
      _
    $region95: #{tpu_custom_call.1} parent=1 // pred_check_branch
      %203 = sbr.rel (0) target = $region97
    $region96: #{tpu_custom_call.1} parent=1 // pred_region
      %204 = dma.done [#allocation9], 16384
    $region97: #{tpu_custom_call.1} parent=1 // pred_fallthru
      _
    // Predicated region
    $region98: #{tpu_custom_call.1} parent=1 // pred_check
      _
    $region99: #{tpu_custom_call.1} parent=1 // pred_check_branch
      %206 = sbr.rel (0) target = $region101
    $region100: #{tpu_custom_call.1} parent=1 // pred_region
      %207 = dma.done [#allocation12], 512
    $region101: #{tpu_custom_call.1} parent=1 // pred_fallthru
      _
    // Predicated region
    $region102: #{tpu_custom_call.1} parent=1 // pred_check
      _
    $region103: #{tpu_custom_call.1} parent=1 // pred_check_branch
      %209 = sbr.rel (0) target = $region105
    $region104: #{tpu_custom_call.1} parent=1 // pred_region
      %210 = dma.done [#allocation12], 8192
    $region105: #{tpu_custom_call.1} parent=1 // pred_fallthru
      _
    // Predicated region
    $region106: #{tpu_custom_call.1} parent=1 // pred_check
      _
    $region107: #{tpu_custom_call.1} parent=1 // pred_check_branch
      %212 = sbr.rel (0) target = $region109
    $region108: #{tpu_custom_call.1} parent=1 // pred_region
      %213 = dma.done [#allocation15], 16384
    $region109: #{tpu_custom_call.1} parent=1 // pred_fallthru
      _
    // Predicated region
    $region110: #{tpu_custom_call.1} parent=1 // pred_check
      _
    $region111: #{tpu_custom_call.1} parent=1 // pred_check_branch
      %215 = sbr.rel (0) target = $region113
    $region112: #{tpu_custom_call.1} parent=1 // pred_region
      %216 = dma.done [#allocation15], 16384
    $region113: #{tpu_custom_call.1} parent=1 // pred_fallthru
      _
    // Predicated region
    $region114: #{tpu_custom_call.1} parent=1 // pred_check
      _
    $region115: #{tpu_custom_call.1} parent=1 // pred_check_branch
      %218 = sbr.rel (0) target = $region117
    $region116: #{tpu_custom_call.1} parent=1 // pred_region
      %219 = dma.done [#allocation18], 1024
    $region117: #{tpu_custom_call.1} parent=1 // pred_fallthru
      _
    // Predicated region
    $region118: #{tpu_custom_call.1} parent=1 // pred_check
      _
    $region119: #{tpu_custom_call.1} parent=1 // pred_check_branch
      %221 = sbr.rel (0) target = $region121
    $region120: #{tpu_custom_call.1} parent=1 // pred_region
      %222 = dma.done [#allocation18], 8192
    $region121: #{tpu_custom_call.1} parent=1 // pred_fallthru
      _
    // Predicated region
    $region122: #{tpu_custom_call.1} parent=1 // pred_check
      _
    $region123: #{tpu_custom_call.1} parent=1 // pred_check_branch
      %224 = sbr.rel (0) target = $region125
    $region124: #{tpu_custom_call.1} parent=1 // pred_region
      %225 = dma.done [#allocation21], 16384
    $region125: #{tpu_custom_call.1} parent=1 // pred_fallthru
      _
    %v226 = vld [vmem:[#allocation2] sm:$0xff]
    %v227 = vld [vmem:[#allocation2 + $0x8] sm:$0xff]
    %v228 = vld [vmem:[#allocation2 + $0x10] sm:$0xff]
    %v229 = vld [vmem:[#allocation2 + $0x18] sm:$0xff]
    %v230 = vld [vmem:[#allocation5] sm:$0xff]
    %v231 = vld [vmem:[#allocation5 + $0x8] sm:$0xff]
    %v232 = vld [vmem:[#allocation5 + $0x10] sm:$0xff]
    %v233 = vld [vmem:[#allocation5 + $0x18] sm:$0xff]
    %v234 = vld [vmem:[#allocation5 + $0x20] sm:$0xff]
    %v235 = vld [vmem:[#allocation5 + $0x28] sm:$0xff]
    %v236 = vld [vmem:[#allocation5 + $0x30] sm:$0xff]
    %v237 = vld [vmem:[#allocation5 + $0x38] sm:$0xff]
    %v238 = vld [vmem:[#allocation5 + $0x40] sm:$0xff]
    %v239 = vld [vmem:[#allocation5 + $0x48] sm:$0xff]
    %v240 = vld [vmem:[#allocation5 + $0x50] sm:$0xff]
    %v241 = vld [vmem:[#allocation5 + $0x58] sm:$0xff]
    %v242 = vld [vmem:[#allocation5 + $0x60] sm:$0xff]
    %v243 = vld [vmem:[#allocation5 + $0x68] sm:$0xff]
    %v244 = vld [vmem:[#allocation5 + $0x70] sm:$0xff]
    %v245 = vld [vmem:[#allocation5 + $0x78] sm:$0xff]
    %v246 = vld [vmem:[#allocation5 + $0x80] sm:$0xff]
    %v247 = vld [vmem:[#allocation5 + $0x88] sm:$0xff]
    %v248 = vld [vmem:[#allocation5 + $0x90] sm:$0xff]
    %v249 = vld [vmem:[#allocation5 + $0x98] sm:$0xff]
    %v250 = vld [vmem:[#allocation5 + $0xa0] sm:$0xff]
    %v251 = vld [vmem:[#allocation5 + $0xa8] sm:$0xff]
    %v252 = vld [vmem:[#allocation5 + $0xb0] sm:$0xff]
    %v253 = vld [vmem:[#allocation5 + $0xb8] sm:$0xff]
    %v254 = vld [vmem:[#allocation5 + $0xc0] sm:$0xff]
    %v255 = vld [vmem:[#allocation5 + $0xc8] sm:$0xff]
    %v256 = vld [vmem:[#allocation5 + $0xd0] sm:$0xff]
    %v257 = vld [vmem:[#allocation5 + $0xd8] sm:$0xff]
    %v258 = vld [vmem:[#allocation5 + $0xe0] sm:$0xff]
    %v259 = vld [vmem:[#allocation5 + $0xe8] sm:$0xff]
    %v260 = vld [vmem:[#allocation5 + $0xf0] sm:$0xff]
    %v261 = vld [vmem:[#allocation5 + $0xf8] sm:$0xff]
    %v262 = vld [vmem:[#allocation5 + $0x100] sm:$0xff]
    %v263 = vld [vmem:[#allocation5 + $0x108] sm:$0xff]
    %v264 = vld [vmem:[#allocation5 + $0x110] sm:$0xff]
    %v265 = vld [vmem:[#allocation5 + $0x118] sm:$0xff]
    %v266 = vld [vmem:[#allocation5 + $0x120] sm:$0xff]
    %v267 = vld [vmem:[#allocation5 + $0x128] sm:$0xff]
    %v268 = vld [vmem:[#allocation5 + $0x130] sm:$0xff]
    %v269 = vld [vmem:[#allocation5 + $0x138] sm:$0xff]
    %v270 = vld [vmem:[#allocation5 + $0x140] sm:$0xff]
    %v271 = vld [vmem:[#allocation5 + $0x148] sm:$0xff]
    %v272 = vld [vmem:[#allocation5 + $0x150] sm:$0xff]
    %v273 = vld [vmem:[#allocation5 + $0x158] sm:$0xff]
    %v274 = vld [vmem:[#allocation5 + $0x160] sm:$0xff]
    %v275 = vld [vmem:[#allocation5 + $0x168] sm:$0xff]
    %v276 = vld [vmem:[#allocation5 + $0x170] sm:$0xff]
    %v277 = vld [vmem:[#allocation5 + $0x178] sm:$0xff]
    %v278 = vld [vmem:[#allocation5 + $0x180] sm:$0xff]
    %v279 = vld [vmem:[#allocation5 + $0x188] sm:$0xff]
    %v280 = vld [vmem:[#allocation5 + $0x190] sm:$0xff]
    %v281 = vld [vmem:[#allocation5 + $0x198] sm:$0xff]
    %v282 = vld [vmem:[#allocation5 + $0x1a0] sm:$0xff]
    %v283 = vld [vmem:[#allocation5 + $0x1a8] sm:$0xff]
    %v284 = vld [vmem:[#allocation5 + $0x1b0] sm:$0xff]
    %v285 = vld [vmem:[#allocation5 + $0x1b8] sm:$0xff]
    %v286 = vld [vmem:[#allocation5 + $0x1c0] sm:$0xff]
    %v287 = vld [vmem:[#allocation5 + $0x1c8] sm:$0xff]
    %v288 = vld [vmem:[#allocation5 + $0x1d0] sm:$0xff]
    %v289 = vld [vmem:[#allocation5 + $0x1d8] sm:$0xff]
    %v290 = vld [vmem:[#allocation5 + $0x1e0] sm:$0xff]
    %v291 = vld [vmem:[#allocation5 + $0x1e8] sm:$0xff]
    %v292 = vld [vmem:[#allocation5 + $0x1f0] sm:$0xff]
    %v293 = vld [vmem:[#allocation5 + $0x1f8] sm:$0xff]
    %294 = vmatprep.subr.mxu0 %v231
    %295 = vmatpush1.msra.mxu0 %v230
    %296 = vmatprep.subr.mxu0 %v233
    %297 = vmatpush1.msra.mxu0 %v232
    %298 = vmatprep.subr.mxu0 %v235
    %299 = vmatpush1.msra.mxu0 %v234
    %300 = vmatprep.subr.mxu0 %v237
    %301 = vmatpush1.msra.mxu0 %v236
    %302 = vmatprep.subr.mxu0 %v239
    %303 = vmatpush1.msra.mxu0 %v238
    %304 = vmatprep.subr.mxu0 %v241
    %305 = vmatpush1.msra.mxu0 %v240
    %306 = vmatprep.subr.mxu0 %v243
    %307 = vmatpush1.msra.mxu0 %v242
    %308 = vmatprep.subr.mxu0 %v245
    %309 = vmatpush1.msra.mxu0 %v244
    %310 = vmatprep.subr.mxu0 %v247
    %311 = vmatpush1.msra.mxu0 %v246
    %312 = vmatprep.subr.mxu0 %v249
    %313 = vmatpush1.msra.mxu0 %v248
    %314 = vmatprep.subr.mxu0 %v251
    %315 = vmatpush1.msra.mxu0 %v250
    %316 = vmatprep.subr.mxu0 %v253
    %317 = vmatpush1.msra.mxu0 %v252
    %318 = vmatprep.subr.mxu0 %v255
    %319 = vmatpush1.msra.mxu0 %v254
    %320 = vmatprep.subr.mxu0 %v257
    %321 = vmatpush1.msra.mxu0 %v256
    %322 = vmatprep.subr.mxu0 %v259
    %323 = vmatpush1.msra.mxu0 %v258
    %324 = vmatprep.subr.mxu0 %v261
    %325 = vmatpush1.msra.mxu0 %v260
    %326 = vmatprep.subr.mxu0 %v263
    %327 = vmatpush1.msra.mxu0 %v262
    %328 = vmatprep.subr.mxu0 %v265
    %329 = vmatpush1.msra.mxu0 %v264
    %330 = vmatprep.subr.mxu0 %v267
    %331 = vmatpush1.msra.mxu0 %v266
    %332 = vmatprep.subr.mxu0 %v269
    %333 = vmatpush1.msra.mxu0 %v268
    %334 = vmatprep.subr.mxu0 %v271
    %335 = vmatpush1.msra.mxu0 %v270
    %336 = vmatprep.subr.mxu0 %v273
    %337 = vmatpush1.msra.mxu0 %v272
    %338 = vmatprep.subr.mxu0 %v275
    %339 = vmatpush1.msra.mxu0 %v274
    %340 = vmatprep.subr.mxu0 %v277
    %341 = vmatpush1.msra.mxu0 %v276
    %342 = vmatprep.subr.mxu0 %v279
    %343 = vmatpush1.msra.mxu0 %v278
    %344 = vmatprep.subr.mxu0 %v281
    %345 = vmatpush1.msra.mxu0 %v280
    %346 = vmatprep.subr.mxu0 %v283
    %347 = vmatpush1.msra.mxu0 %v282
    %348 = vmatprep.subr.mxu0 %v285
    %349 = vmatpush1.msra.mxu0 %v284
    %350 = vmatprep.subr.mxu0 %v287
    %351 = vmatpush1.msra.mxu0 %v286
    %352 = vmatprep.subr.mxu0 %v289
    %353 = vmatpush1.msra.mxu0 %v288
    %354 = vmatprep.subr.mxu0 %v291
    %355 = vmatpush1.msra.mxu0 %v290
    %356 = vmatprep.subr.mxu0 %v293
    %357 = vmatpush1.msra.mxu0 %v292
    %358 = vmatprep.mubr.f32.mxu0 %v227
    %359 = vmatmul.mubr.f32.gmra.mrb[0].mxu0 %v226
    %v360 = vpop.f32.mrb[0].mxu0
    %v361 = vadd.f32 0.0, %v360
    %v362 = vpop.f32.mrb[0].mxu0
    %v363 = vadd.f32 0.0, %v362
    %364 = vmatprep.mubr.f32.mxu0 %v229
    %365 = vmatmul.mubr.f32.gmra.mrb[0].mxu0 %v228
    %v366 = vpop.f32.mrb[0].mxu0
    %v367 = vadd.f32 0.0, %v366
    %v368 = vpop.f32.mrb[0].mxu0
    %v369 = vadd.f32 0.0, %v368
    %370 = vdwg.mxu0
    %v371 = vadd.f32 %v361, %v367
    %v372 = vrot.slane %v371, 4
    %v373 = vadd.f32 %v371, %v372
    %v374 = vrot.slane %v373, 2
    %v375 = vadd.f32 %v373, %v374
    %v376 = vrot.slane %v375, 1
    %v377 = vadd.f32 %v375, %v376
    %v378 = vadd.f32 %v363, %v369
    %v379 = vrot.slane %v378, 4
    %v380 = vadd.f32 %v378, %v379
    %v381 = vrot.slane %v380, 2
    %v382 = vadd.f32 %v380, %v381
    %v383 = vrot.slane %v382, 1
    %v384 = vadd.f32 %v382, %v383
    %v385 = vmul.f32 %v361, %v361
    %v386 = vmul.f32 %v363, %v363
    %v387 = vmul.f32 %v367, %v367
    %v388 = vmul.f32 %v369, %v369
    %v389 = vadd.f32 %v385, %v387
    %v390 = vrot.slane %v389, 4
    %v391 = vadd.f32 %v389, %v390
    %v392 = vrot.slane %v391, 2
    %v393 = vadd.f32 %v391, %v392
    %v394 = vrot.slane %v393, 1
    %v395 = vadd.f32 %v393, %v394
    %v396 = vadd.f32 %v386, %v388
    %v397 = vrot.slane %v396, 4
    %v398 = vadd.f32 %v396, %v397
    %v399 = vrot.slane %v398, 2
    %v400 = vadd.f32 %v398, %v399
    %v401 = vrot.slane %v400, 1
    %v402 = vadd.f32 %v400, %v401
    %v403 = vld [vmem:[#allocation7] sm:$0xff]
    %v404 = vld [vmem:[#allocation7 + $0x8] sm:$0xff]
    %v405 = vld [vmem:[#allocation7 + $0x10] sm:$0xff]
    %v406 = vld [vmem:[#allocation7 + $0x18] sm:$0xff]
    %v407 = vld [vmem:[#allocation7 + $0x20] sm:$0xff]
    %v408 = vld [vmem:[#allocation7 + $0x28] sm:$0xff]
    %v409 = vld [vmem:[#allocation7 + $0x30] sm:$0xff]
    %v410 = vld [vmem:[#allocation7 + $0x38] sm:$0xff]
    %v411 = vld [vmem:[#allocation7 + $0x40] sm:$0xff]
    %v412 = vld [vmem:[#allocation7 + $0x48] sm:$0xff]
    %v413 = vld [vmem:[#allocation7 + $0x50] sm:$0xff]
    %v414 = vld [vmem:[#allocation7 + $0x58] sm:$0xff]
    %v415 = vld [vmem:[#allocation7 + $0x60] sm:$0xff]
    %v416 = vld [vmem:[#allocation7 + $0x68] sm:$0xff]
    %v417 = vld [vmem:[#allocation7 + $0x70] sm:$0xff]
    %v418 = vld [vmem:[#allocation7 + $0x78] sm:$0xff]
    %v419 = vld [vmem:[#allocation7 + $0x80] sm:$0xff]
    %v420 = vld [vmem:[#allocation7 + $0x88] sm:$0xff]
    %v421 = vld [vmem:[#allocation7 + $0x90] sm:$0xff]
    %v422 = vld [vmem:[#allocation7 + $0x98] sm:$0xff]
    %v423 = vld [vmem:[#allocation7 + $0xa0] sm:$0xff]
    %v424 = vld [vmem:[#allocation7 + $0xa8] sm:$0xff]
    %v425 = vld [vmem:[#allocation7 + $0xb0] sm:$0xff]
    %v426 = vld [vmem:[#allocation7 + $0xb8] sm:$0xff]
    %v427 = vld [vmem:[#allocation7 + $0xc0] sm:$0xff]
    %v428 = vld [vmem:[#allocation7 + $0xc8] sm:$0xff]
    %v429 = vld [vmem:[#allocation7 + $0xd0] sm:$0xff]
    %v430 = vld [vmem:[#allocation7 + $0xd8] sm:$0xff]
    %v431 = vld [vmem:[#allocation7 + $0xe0] sm:$0xff]
    %v432 = vld [vmem:[#allocation7 + $0xe8] sm:$0xff]
    %v433 = vld [vmem:[#allocation7 + $0xf0] sm:$0xff]
    %v434 = vld [vmem:[#allocation7 + $0xf8] sm:$0xff]
    %v435 = vld [vmem:[#allocation7 + $0x100] sm:$0xff]
    %v436 = vld [vmem:[#allocation7 + $0x108] sm:$0xff]
    %v437 = vld [vmem:[#allocation7 + $0x110] sm:$0xff]
    %v438 = vld [vmem:[#allocation7 + $0x118] sm:$0xff]
    %v439 = vld [vmem:[#allocation7 + $0x120] sm:$0xff]
    %v440 = vld [vmem:[#allocation7 + $0x128] sm:$0xff]
    %v441 = vld [vmem:[#allocation7 + $0x130] sm:$0xff]
    %v442 = vld [vmem:[#allocation7 + $0x138] sm:$0xff]
    %v443 = vld [vmem:[#allocation7 + $0x140] sm:$0xff]
    %v444 = vld [vmem:[#allocation7 + $0x148] sm:$0xff]
    %v445 = vld [vmem:[#allocation7 + $0x150] sm:$0xff]
    %v446 = vld [vmem:[#allocation7 + $0x158] sm:$0xff]
    %v447 = vld [vmem:[#allocation7 + $0x160] sm:$0xff]
    %v448 = vld [vmem:[#allocation7 + $0x168] sm:$0xff]
    %v449 = vld [vmem:[#allocation7 + $0x170] sm:$0xff]
    %v450 = vld [vmem:[#allocation7 + $0x178] sm:$0xff]
    %v451 = vld [vmem:[#allocation7 + $0x180] sm:$0xff]
    %v452 = vld [vmem:[#allocation7 + $0x188] sm:$0xff]
    %v453 = vld [vmem:[#allocation7 + $0x190] sm:$0xff]
    %v454 = vld [vmem:[#allocation7 + $0x198] sm:$0xff]
    %v455 = vld [vmem:[#allocation7 + $0x1a0] sm:$0xff]
    %v456 = vld [vmem:[#allocation7 + $0x1a8] sm:$0xff]
    %v457 = vld [vmem:[#allocation7 + $0x1b0] sm:$0xff]
    %v458 = vld [vmem:[#allocation7 + $0x1b8] sm:$0xff]
    %v459 = vld [vmem:[#allocation7 + $0x1c0] sm:$0xff]
    %v460 = vld [vmem:[#allocation7 + $0x1c8] sm:$0xff]
    %v461 = vld [vmem:[#allocation7 + $0x1d0] sm:$0xff]
    %v462 = vld [vmem:[#allocation7 + $0x1d8] sm:$0xff]
    %v463 = vld [vmem:[#allocation7 + $0x1e0] sm:$0xff]
    %v464 = vld [vmem:[#allocation7 + $0x1e8] sm:$0xff]
    %v465 = vld [vmem:[#allocation7 + $0x1f0] sm:$0xff]
    %v466 = vld [vmem:[#allocation7 + $0x1f8] sm:$0xff]
    %467 = vmatprep.subr.mxu0 %v404
    %468 = vmatpush1.msra.mxu0 %v403
    %469 = vmatprep.subr.mxu0 %v406
    %470 = vmatpush1.msra.mxu0 %v405
    %471 = vmatprep.subr.mxu0 %v408
    %472 = vmatpush1.msra.mxu0 %v407
    %473 = vmatprep.subr.mxu0 %v410
    %474 = vmatpush1.msra.mxu0 %v409
    %475 = vmatprep.subr.mxu0 %v412
    %476 = vmatpush1.msra.mxu0 %v411
    %477 = vmatprep.subr.mxu0 %v414
    %478 = vmatpush1.msra.mxu0 %v413
    %479 = vmatprep.subr.mxu0 %v416
    %480 = vmatpush1.msra.mxu0 %v415
    %481 = vmatprep.subr.mxu0 %v418
    %482 = vmatpush1.msra.mxu0 %v417
    %483 = vmatprep.subr.mxu0 %v420
    %484 = vmatpush1.msra.mxu0 %v419
    %485 = vmatprep.subr.mxu0 %v422
    %486 = vmatpush1.msra.mxu0 %v421
    %487 = vmatprep.subr.mxu0 %v424
    %488 = vmatpush1.msra.mxu0 %v423
    %489 = vmatprep.subr.mxu0 %v426
    %490 = vmatpush1.msra.mxu0 %v425
    %491 = vmatprep.subr.mxu0 %v428
    %492 = vmatpush1.msra.mxu0 %v427
    %493 = vmatprep.subr.mxu0 %v430
    %494 = vmatpush1.msra.mxu0 %v429
    %495 = vmatprep.subr.mxu0 %v432
    %496 = vmatpush1.msra.mxu0 %v431
    %497 = vmatprep.subr.mxu0 %v434
    %498 = vmatpush1.msra.mxu0 %v433
    %499 = vmatprep.subr.mxu0 %v436
    %500 = vmatpush1.msra.mxu0 %v435
    %501 = vmatprep.subr.mxu0 %v438
    %502 = vmatpush1.msra.mxu0 %v437
    %503 = vmatprep.subr.mxu0 %v440
    %504 = vmatpush1.msra.mxu0 %v439
    %505 = vmatprep.subr.mxu0 %v442
    %506 = vmatpush1.msra.mxu0 %v441
    %507 = vmatprep.subr.mxu0 %v444
    %508 = vmatpush1.msra.mxu0 %v443
    %509 = vmatprep.subr.mxu0 %v446
    %510 = vmatpush1.msra.mxu0 %v445
    %511 = vmatprep.subr.mxu0 %v448
    %512 = vmatpush1.msra.mxu0 %v447
    %513 = vmatprep.subr.mxu0 %v450
    %514 = vmatpush1.msra.mxu0 %v449
    %515 = vmatprep.subr.mxu0 %v452
    %516 = vmatpush1.msra.mxu0 %v451
    %517 = vmatprep.subr.mxu0 %v454
    %518 = vmatpush1.msra.mxu0 %v453
    %519 = vmatprep.subr.mxu0 %v456
    %520 = vmatpush1.msra.mxu0 %v455
    %521 = vmatprep.subr.mxu0 %v458
    %522 = vmatpush1.msra.mxu0 %v457
    %523 = vmatprep.subr.mxu0 %v460
    %524 = vmatpush1.msra.mxu0 %v459
    %525 = vmatprep.subr.mxu0 %v462
    %526 = vmatpush1.msra.mxu0 %v461
    %527 = vmatprep.subr.mxu0 %v464
    %528 = vmatpush1.msra.mxu0 %v463
    %529 = vmatprep.subr.mxu0 %v466
    %530 = vmatpush1.msra.mxu0 %v465
    %531 = vmatprep.mubr.f32.mxu0 %v384
    %532 = vmatmul.mubr.f32.gmra.mrb[0].mxu0 %v377
    %v533 = vpop.f32.mrb[0].mxu0
    %v534 = vadd.f32 0.0, %v533
    %v535 = vpop.f32.mrb[0].mxu0
    %v536 = vadd.f32 0.0, %v535
    %537 = vdwg.mxu0
    %v538 = vmul.f32 %v534, 0.0078125
    %v539 = vmul.f32 %v536, 0.0078125
    %540 = vmatprep.subr.mxu0 %v404
    %541 = vmatpush1.msra.mxu0 %v403
    %542 = vmatprep.subr.mxu0 %v406
    %543 = vmatpush1.msra.mxu0 %v405
    %544 = vmatprep.subr.mxu0 %v408
    %545 = vmatpush1.msra.mxu0 %v407
    %546 = vmatprep.subr.mxu0 %v410
    %547 = vmatpush1.msra.mxu0 %v409
    %548 = vmatprep.subr.mxu0 %v412
    %549 = vmatpush1.msra.mxu0 %v411
    %550 = vmatprep.subr.mxu0 %v414
    %551 = vmatpush1.msra.mxu0 %v413
    %552 = vmatprep.subr.mxu0 %v416
    %553 = vmatpush1.msra.mxu0 %v415
    %554 = vmatprep.subr.mxu0 %v418
    %555 = vmatpush1.msra.mxu0 %v417
    %556 = vmatprep.subr.mxu0 %v420
    %557 = vmatpush1.msra.mxu0 %v419
    %558 = vmatprep.subr.mxu0 %v422
    %559 = vmatpush1.msra.mxu0 %v421
    %560 = vmatprep.subr.mxu0 %v424
    %561 = vmatpush1.msra.mxu0 %v423
    %562 = vmatprep.subr.mxu0 %v426
    %563 = vmatpush1.msra.mxu0 %v425
    %564 = vmatprep.subr.mxu0 %v428
    %565 = vmatpush1.msra.mxu0 %v427
    %566 = vmatprep.subr.mxu0 %v430
    %567 = vmatpush1.msra.mxu0 %v429
    %568 = vmatprep.subr.mxu0 %v432
    %569 = vmatpush1.msra.mxu0 %v431
    %570 = vmatprep.subr.mxu0 %v434
    %571 = vmatpush1.msra.mxu0 %v433
    %572 = vmatprep.subr.mxu0 %v436
    %573 = vmatpush1.msra.mxu0 %v435
    %574 = vmatprep.subr.mxu0 %v438
    %575 = vmatpush1.msra.mxu0 %v437
    %576 = vmatprep.subr.mxu0 %v440
    %577 = vmatpush1.msra.mxu0 %v439
    %578 = vmatprep.subr.mxu0 %v442
    %579 = vmatpush1.msra.mxu0 %v441
    %580 = vmatprep.subr.mxu0 %v444
    %581 = vmatpush1.msra.mxu0 %v443
    %582 = vmatprep.subr.mxu0 %v446
    %583 = vmatpush1.msra.mxu0 %v445
    %584 = vmatprep.subr.mxu0 %v448
    %585 = vmatpush1.msra.mxu0 %v447
    %586 = vmatprep.subr.mxu0 %v450
    %587 = vmatpush1.msra.mxu0 %v449
    %588 = vmatprep.subr.mxu0 %v452
    %589 = vmatpush1.msra.mxu0 %v451
    %590 = vmatprep.subr.mxu0 %v454
    %591 = vmatpush1.msra.mxu0 %v453
    %592 = vmatprep.subr.mxu0 %v456
    %593 = vmatpush1.msra.mxu0 %v455
    %594 = vmatprep.subr.mxu0 %v458
    %595 = vmatpush1.msra.mxu0 %v457
    %596 = vmatprep.subr.mxu0 %v460
    %597 = vmatpush1.msra.mxu0 %v459
    %598 = vmatprep.subr.mxu0 %v462
    %599 = vmatpush1.msra.mxu0 %v461
    %600 = vmatprep.subr.mxu0 %v464
    %601 = vmatpush1.msra.mxu0 %v463
    %602 = vmatprep.subr.mxu0 %v466
    %603 = vmatpush1.msra.mxu0 %v465
    %604 = vmatprep.mubr.f32.mxu0 %v402
    %605 = vmatmul.mubr.f32.gmra.mrb[0].mxu0 %v395
    %v606 = vpop.f32.mrb[0].mxu0
    %v607 = vadd.f32 0.0, %v606
    %v608 = vpop.f32.mrb[0].mxu0
    %v609 = vadd.f32 0.0, %v608
    %610 = vdwg.mxu0
    %v611 = vmul.f32 %v607, 0.0078125
    %v612 = vmul.f32 %v609, 0.0078125
    %v613 = vmul.f32 %v538, %v538
    %v614 = vmul.f32 %v539, %v539
    %v615 = vsub.f32 %v611, %v613
    %v616 = vsub.f32 %v612, %v614
    %v617 = vld [vmem:[%s3] sm:$0x3]
    %v618 = vadd.f32 %v615, 1e-05
    %v619 = vadd.f32 %v616, 1e-05
    %v620 = vrsqrt.pop %v618
    %v621 = vrsqrt.pop %v619
    %v624 = vcombine.low %v620, %v621
    %v626 = vunpack.c.l.s4 1966171168
    %v627 = vunpack.c.0.s8 %v626
    %v628 = vlaneseq
    %v629 = vshrl.u32 %v628, 7
    %v630 = vsub.s32 %v627, %v629
    %v631 = vrot.slane %v624, %v630
    %v633 = vunpack.c.l.s4 1966171168
    %v634 = vunpack.c.0.s8 %v633
    %v635 = vlaneseq
    %v636 = vshrl.u32 %v635, 7
    %v637 = vsub.s32 %v634, %v636
    %v638 = vrot.slane %v631, %v637
    %v640 = vmul.f32 %v617, %v638
    %v641 = vlaneseq
    %v642 = vshrl.u32 %v641, 7
    %v643 = vsub.s32 0, %v642
    %v644 = vrot.slane %v538, %v643
    %v645 = vlaneseq
    %v646 = vshrl.u32 %v645, 7
    %v647 = vsub.s32 0, %v646
    %v648 = vrot.slane %v539, %v647
    %v649 = vsub.f32 %v361, %v644
    %v650 = vsub.f32 %v363, %v648
    %v651 = vsub.f32 %v367, %v644
    %v652 = vsub.f32 %v369, %v648
    %v654 = vlaneseq
    %v655 = vshrl.u32 %v654, 7
    %v656 = vsub.s32 0, %v655
    %v657 = vrot.slane %v640, %v656
    %v658 = vlaneseq
    %v659 = vshrl.u32 %v658, 7
    %v660 = vsub.s32 1, %v659
    %v661 = vrot.slane %v640, %v660
    %v664 = vmul.f32 %v649, %v657
    %v665 = vmul.f32 %v650, %v661
    %v666 = vmul.f32 %v651, %v657
    %v667 = vmul.f32 %v652, %v661
    %v668 = vld [vmem:[%s4] sm:$0x3]
    %v670 = vlaneseq
    %v671 = vshrl.u32 %v670, 7
    %v672 = vsub.s32 0, %v671
    %v673 = vrot.slane %v668, %v672
    %v674 = vlaneseq
    %v675 = vshrl.u32 %v674, 7
    %v676 = vsub.s32 1, %v675
    %v677 = vrot.slane %v668, %v676
    %v680 = vadd.f32 %v664, %v673
    %v681 = vadd.f32 %v665, %v677
    %v682 = vadd.f32 %v666, %v673
    %v683 = vadd.f32 %v667, %v677
    %v684 = vmax.f32 %v680, 0.0
    %v685 = vmax.f32 %v681, 0.0
    %v686 = vmax.f32 %v682, 0.0
    %v687 = vmax.f32 %v683, 0.0
    %v688 = vlaneseq
    %v689 = vshrl.u32 %v688, 7
    %v690 = vadd.s32 %v689, 8
    %vm691 = vcmp.lt.s32.totalorder %v689, 0
    %v692 = vsub.s32 0, %v689
    %v693 = vsel %vm691, %v692, %v689
    %v694 = vshrl.u32 %v693, 3
    %v695 = vand.u32 %v693, 7
    %v696 = vsub.s32 0, %v695
    %v697 = vsel %vm691, %v696, %v695
    %vm698 = vcmp.lt.s32.totalorder %v690, 0
    %v699 = vsub.s32 0, %v690
    %v700 = vsel %vm698, %v699, %v690
    %v701 = vshrl.u32 %v700, 3
    %v702 = vand.u32 %v700, 7
    %v703 = vsub.s32 0, %v702
    %v704 = vsel %vm698, %v703, %v702
    %vm705 = vcmp.ne.s32.totalorder %v697, 0
    %vm706 = vcmp.ne.s32.totalorder %v704, 0
    %vm707 = vcmp.lt.s32.totalorder %v697, 0
    %vm708 = vcmp.lt.s32.totalorder %v704, 0
    %vm709 = vmand %vm707, %vm705
    %vm710 = vmand %vm708, %vm706
    %v711 = vadd.s32 %v697, 8
    %v712 = vadd.s32 %v704, 8
    %v713 = vsel %vm709, %v711, %v697
    %v714 = vsel %vm710, %v712, %v704
    %v715 = vrot.slane %v684, 7
    %v716 = vrot.slane %v685, 7
    %v717 = vrot.slane %v686, 7
    %v718 = vrot.slane %v687, 7
    %vm719 = vcmp.lt.s32.totalorder %v689, 1
    %v720 = vsel %vm719, %v715, %v717
    %v721 = vsel %vm719, %v716, %v718
    %v722 = vsel %vm719, %v717, %v715
    %v723 = vsel %vm719, %v718, %v716
    %vm724 = vcmp.ne.s32.totalorder %v713, 0
    %vm725 = vcmp.ne.s32.totalorder %v714, 0
    %v726 = vsel %vm724, 1, 0
    %v727 = vsel %vm725, 1, 0
    %v728 = vcvt.s32.f32 %v726
    %v729 = vcvt.s32.f32 %v727
    %v730 = vmul.f32 %v722, %v728
    %v731 = vmul.f32 %v723, %v728
    %v732 = vmul.f32 %v720, %v729
    %v733 = vmul.f32 %v721, %v729
    %v734 = vrot.slane %v684, 1
    %v735 = vrot.slane %v685, 1
    %v736 = vrot.slane %v686, 1
    %v737 = vrot.slane %v687, 1
    %vm738 = vcmp.lt.s32.totalorder %v689, 7
    %v739 = vsel %vm738, %v734, %v736
    %v740 = vsel %vm738, %v735, %v737
    %v741 = vsel %vm738, %v736, %v734
    %v742 = vsel %vm738, %v737, %v735
    %vm743 = vcmp.ne.s32.totalorder %v713, 7
    %vm744 = vcmp.ne.s32.totalorder %v714, 7
    %v745 = vsel %vm743, 1, 0
    %v746 = vsel %vm744, 1, 0
    %v747 = vcvt.s32.f32 %v745
    %v748 = vcvt.s32.f32 %v746
    %v749 = vmul.f32 %v739, %v747
    %v750 = vmul.f32 %v740, %v747
    %v751 = vmul.f32 %v741, %v748
    %v752 = vmul.f32 %v742, %v748
    %v753 = vld [vmem:[#allocation8] sm:$0xff]
    %v754 = vld [vmem:[#allocation8 + $0x8] sm:$0xff]
    %v755 = vld [vmem:[#allocation8 + $0x10] sm:$0xff]
    %v756 = vld [vmem:[#allocation8 + $0x18] sm:$0xff]
    %v757 = vld [vmem:[#allocation8 + $0x20] sm:$0xff]
    %v758 = vld [vmem:[#allocation8 + $0x28] sm:$0xff]
    %v759 = vld [vmem:[#allocation8 + $0x30] sm:$0xff]
    %v760 = vld [vmem:[#allocation8 + $0x38] sm:$0xff]
    %v761 = vld [vmem:[#allocation8 + $0x40] sm:$0xff]
    %v762 = vld [vmem:[#allocation8 + $0x48] sm:$0xff]
    %v763 = vld [vmem:[#allocation8 + $0x50] sm:$0xff]
    %v764 = vld [vmem:[#allocation8 + $0x58] sm:$0xff]
    %v765 = vld [vmem:[#allocation8 + $0x60] sm:$0xff]
    %v766 = vld [vmem:[#allocation8 + $0x68] sm:$0xff]
    %v767 = vld [vmem:[#allocation8 + $0x70] sm:$0xff]
    %v768 = vld [vmem:[#allocation8 + $0x78] sm:$0xff]
    %v769 = vld [vmem:[#allocation8 + $0x80] sm:$0xff]
    %v770 = vld [vmem:[#allocation8 + $0x88] sm:$0xff]
    %v771 = vld [vmem:[#allocation8 + $0x90] sm:$0xff]
    %v772 = vld [vmem:[#allocation8 + $0x98] sm:$0xff]
    %v773 = vld [vmem:[#allocation8 + $0xa0] sm:$0xff]
    %v774 = vld [vmem:[#allocation8 + $0xa8] sm:$0xff]
    %v775 = vld [vmem:[#allocation8 + $0xb0] sm:$0xff]
    %v776 = vld [vmem:[#allocation8 + $0xb8] sm:$0xff]
    %v777 = vld [vmem:[#allocation8 + $0xc0] sm:$0xff]
    %v778 = vld [vmem:[#allocation8 + $0xc8] sm:$0xff]
    %v779 = vld [vmem:[#allocation8 + $0xd0] sm:$0xff]
    %v780 = vld [vmem:[#allocation8 + $0xd8] sm:$0xff]
    %v781 = vld [vmem:[#allocation8 + $0xe0] sm:$0xff]
    %v782 = vld [vmem:[#allocation8 + $0xe8] sm:$0xff]
    %v783 = vld [vmem:[#allocation8 + $0xf0] sm:$0xff]
    %v784 = vld [vmem:[#allocation8 + $0xf8] sm:$0xff]
    %v785 = vld [vmem:[#allocation8 + $0x100] sm:$0xff]
    %v786 = vld [vmem:[#allocation8 + $0x108] sm:$0xff]
    %v787 = vld [vmem:[#allocation8 + $0x110] sm:$0xff]
    %v788 = vld [vmem:[#allocation8 + $0x118] sm:$0xff]
    %v789 = vld [vmem:[#allocation8 + $0x120] sm:$0xff]
    %v790 = vld [vmem:[#allocation8 + $0x128] sm:$0xff]
    %v791 = vld [vmem:[#allocation8 + $0x130] sm:$0xff]
    %v792 = vld [vmem:[#allocation8 + $0x138] sm:$0xff]
    %v793 = vld [vmem:[#allocation8 + $0x140] sm:$0xff]
    %v794 = vld [vmem:[#allocation8 + $0x148] sm:$0xff]
    %v795 = vld [vmem:[#allocation8 + $0x150] sm:$0xff]
    %v796 = vld [vmem:[#allocation8 + $0x158] sm:$0xff]
    %v797 = vld [vmem:[#allocation8 + $0x160] sm:$0xff]
    %v798 = vld [vmem:[#allocation8 + $0x168] sm:$0xff]
    %v799 = vld [vmem:[#allocation8 + $0x170] sm:$0xff]
    %v800 = vld [vmem:[#allocation8 + $0x178] sm:$0xff]
    %v801 = vld [vmem:[#allocation8 + $0x180] sm:$0xff]
    %v802 = vld [vmem:[#allocation8 + $0x188] sm:$0xff]
    %v803 = vld [vmem:[#allocation8 + $0x190] sm:$0xff]
    %v804 = vld [vmem:[#allocation8 + $0x198] sm:$0xff]
    %v805 = vld [vmem:[#allocation8 + $0x1a0] sm:$0xff]
    %v806 = vld [vmem:[#allocation8 + $0x1a8] sm:$0xff]
    %v807 = vld [vmem:[#allocation8 + $0x1b0] sm:$0xff]
    %v808 = vld [vmem:[#allocation8 + $0x1b8] sm:$0xff]
    %v809 = vld [vmem:[#allocation8 + $0x1c0] sm:$0xff]
    %v810 = vld [vmem:[#allocation8 + $0x1c8] sm:$0xff]
    %v811 = vld [vmem:[#allocation8 + $0x1d0] sm:$0xff]
    %v812 = vld [vmem:[#allocation8 + $0x1d8] sm:$0xff]
    %v813 = vld [vmem:[#allocation8 + $0x1e0] sm:$0xff]
    %v814 = vld [vmem:[#allocation8 + $0x1e8] sm:$0xff]
    %v815 = vld [vmem:[#allocation8 + $0x1f0] sm:$0xff]
    %v816 = vld [vmem:[#allocation8 + $0x1f8] sm:$0xff]
    %v817 = vld [vmem:[#allocation8 + $0x200] sm:$0xff]
    %v818 = vld [vmem:[#allocation8 + $0x208] sm:$0xff]
    %v819 = vld [vmem:[#allocation8 + $0x210] sm:$0xff]
    %v820 = vld [vmem:[#allocation8 + $0x218] sm:$0xff]
    %v821 = vld [vmem:[#allocation8 + $0x220] sm:$0xff]
    %v822 = vld [vmem:[#allocation8 + $0x228] sm:$0xff]
    %v823 = vld [vmem:[#allocation8 + $0x230] sm:$0xff]
    %v824 = vld [vmem:[#allocation8 + $0x238] sm:$0xff]
    %v825 = vld [vmem:[#allocation8 + $0x240] sm:$0xff]
    %v826 = vld [vmem:[#allocation8 + $0x248] sm:$0xff]
    %v827 = vld [vmem:[#allocation8 + $0x250] sm:$0xff]
    %v828 = vld [vmem:[#allocation8 + $0x258] sm:$0xff]
    %v829 = vld [vmem:[#allocation8 + $0x260] sm:$0xff]
    %v830 = vld [vmem:[#allocation8 + $0x268] sm:$0xff]
    %v831 = vld [vmem:[#allocation8 + $0x270] sm:$0xff]
    %v832 = vld [vmem:[#allocation8 + $0x278] sm:$0xff]
    %v833 = vld [vmem:[#allocation8 + $0x280] sm:$0xff]
    %v834 = vld [vmem:[#allocation8 + $0x288] sm:$0xff]
    %v835 = vld [vmem:[#allocation8 + $0x290] sm:$0xff]
    %v836 = vld [vmem:[#allocation8 + $0x298] sm:$0xff]
    %v837 = vld [vmem:[#allocation8 + $0x2a0] sm:$0xff]
    %v838 = vld [vmem:[#allocation8 + $0x2a8] sm:$0xff]
    %v839 = vld [vmem:[#allocation8 + $0x2b0] sm:$0xff]
    %v840 = vld [vmem:[#allocation8 + $0x2b8] sm:$0xff]
    %v841 = vld [vmem:[#allocation8 + $0x2c0] sm:$0xff]
    %v842 = vld [vmem:[#allocation8 + $0x2c8] sm:$0xff]
    %v843 = vld [vmem:[#allocation8 + $0x2d0] sm:$0xff]
    %v844 = vld [vmem:[#allocation8 + $0x2d8] sm:$0xff]
    %v845 = vld [vmem:[#allocation8 + $0x2e0] sm:$0xff]
    %v846 = vld [vmem:[#allocation8 + $0x2e8] sm:$0xff]
    %v847 = vld [vmem:[#allocation8 + $0x2f0] sm:$0xff]
    %v848 = vld [vmem:[#allocation8 + $0x2f8] sm:$0xff]
    %v849 = vld [vmem:[#allocation8 + $0x300] sm:$0xff]
    %v850 = vld [vmem:[#allocation8 + $0x308] sm:$0xff]
    %v851 = vld [vmem:[#allocation8 + $0x310] sm:$0xff]
    %v852 = vld [vmem:[#allocation8 + $0x318] sm:$0xff]
    %v853 = vld [vmem:[#allocation8 + $0x320] sm:$0xff]
    %v854 = vld [vmem:[#allocation8 + $0x328] sm:$0xff]
    %v855 = vld [vmem:[#allocation8 + $0x330] sm:$0xff]
    %v856 = vld [vmem:[#allocation8 + $0x338] sm:$0xff]
    %v857 = vld [vmem:[#allocation8 + $0x340] sm:$0xff]
    %v858 = vld [vmem:[#allocation8 + $0x348] sm:$0xff]
    %v859 = vld [vmem:[#allocation8 + $0x350] sm:$0xff]
    %v860 = vld [vmem:[#allocation8 + $0x358] sm:$0xff]
    %v861 = vld [vmem:[#allocation8 + $0x360] sm:$0xff]
    %v862 = vld [vmem:[#allocation8 + $0x368] sm:$0xff]
    %v863 = vld [vmem:[#allocation8 + $0x370] sm:$0xff]
    %v864 = vld [vmem:[#allocation8 + $0x378] sm:$0xff]
    %v865 = vld [vmem:[#allocation8 + $0x380] sm:$0xff]
    %v866 = vld [vmem:[#allocation8 + $0x388] sm:$0xff]
    %v867 = vld [vmem:[#allocation8 + $0x390] sm:$0xff]
    %v868 = vld [vmem:[#allocation8 + $0x398] sm:$0xff]
    %v869 = vld [vmem:[#allocation8 + $0x3a0] sm:$0xff]
    %v870 = vld [vmem:[#allocation8 + $0x3a8] sm:$0xff]
    %v871 = vld [vmem:[#allocation8 + $0x3b0] sm:$0xff]
    %v872 = vld [vmem:[#allocation8 + $0x3b8] sm:$0xff]
    %v873 = vld [vmem:[#allocation8 + $0x3c0] sm:$0xff]
    %v874 = vld [vmem:[#allocation8 + $0x3c8] sm:$0xff]
    %v875 = vld [vmem:[#allocation8 + $0x3d0] sm:$0xff]
    %v876 = vld [vmem:[#allocation8 + $0x3d8] sm:$0xff]
    %v877 = vld [vmem:[#allocation8 + $0x3e0] sm:$0xff]
    %v878 = vld [vmem:[#allocation8 + $0x3e8] sm:$0xff]
    %v879 = vld [vmem:[#allocation8 + $0x3f0] sm:$0xff]
    %v880 = vld [vmem:[#allocation8 + $0x3f8] sm:$0xff]
    %881 = vmatprep.subr.mxu0 %v754
    %882 = vmatpush1.msra.mxu0 %v753
    %883 = vmatprep.subr.mxu0 %v756
    %884 = vmatpush1.msra.mxu0 %v755
    %885 = vmatprep.subr.mxu0 %v758
    %886 = vmatpush1.msra.mxu0 %v757
    %887 = vmatprep.subr.mxu0 %v760
    %888 = vmatpush1.msra.mxu0 %v759
    %889 = vmatprep.subr.mxu0 %v762
    %890 = vmatpush1.msra.mxu0 %v761
    %891 = vmatprep.subr.mxu0 %v764
    %892 = vmatpush1.msra.mxu0 %v763
    %893 = vmatprep.subr.mxu0 %v766
    %894 = vmatpush1.msra.mxu0 %v765
    %895 = vmatprep.subr.mxu0 %v768
    %896 = vmatpush1.msra.mxu0 %v767
    %897 = vmatprep.subr.mxu0 %v770
    %898 = vmatpush1.msra.mxu0 %v769
    %899 = vmatprep.subr.mxu0 %v772
    %900 = vmatpush1.msra.mxu0 %v771
    %901 = vmatprep.subr.mxu0 %v774
    %902 = vmatpush1.msra.mxu0 %v773
    %903 = vmatprep.subr.mxu0 %v776
    %904 = vmatpush1.msra.mxu0 %v775
    %905 = vmatprep.subr.mxu0 %v778
    %906 = vmatpush1.msra.mxu0 %v777
    %907 = vmatprep.subr.mxu0 %v780
    %908 = vmatpush1.msra.mxu0 %v779
    %909 = vmatprep.subr.mxu0 %v782
    %910 = vmatpush1.msra.mxu0 %v781
    %911 = vmatprep.subr.mxu0 %v784
    %912 = vmatpush1.msra.mxu0 %v783
    %913 = vmatprep.subr.mxu0 %v786
    %914 = vmatpush1.msra.mxu0 %v785
    %915 = vmatprep.subr.mxu0 %v788
    %916 = vmatpush1.msra.mxu0 %v787
    %917 = vmatprep.subr.mxu0 %v790
    %918 = vmatpush1.msra.mxu0 %v789
    %919 = vmatprep.subr.mxu0 %v792
    %920 = vmatpush1.msra.mxu0 %v791
    %921 = vmatprep.subr.mxu0 %v794
    %922 = vmatpush1.msra.mxu0 %v793
    %923 = vmatprep.subr.mxu0 %v796
    %924 = vmatpush1.msra.mxu0 %v795
    %925 = vmatprep.subr.mxu0 %v798
    %926 = vmatpush1.msra.mxu0 %v797
    %927 = vmatprep.subr.mxu0 %v800
    %928 = vmatpush1.msra.mxu0 %v799
    %929 = vmatprep.subr.mxu0 %v802
    %930 = vmatpush1.msra.mxu0 %v801
    %931 = vmatprep.subr.mxu0 %v804
    %932 = vmatpush1.msra.mxu0 %v803
    %933 = vmatprep.subr.mxu0 %v806
    %934 = vmatpush1.msra.mxu0 %v805
    %935 = vmatprep.subr.mxu0 %v808
    %936 = vmatpush1.msra.mxu0 %v807
    %937 = vmatprep.subr.mxu0 %v810
    %938 = vmatpush1.msra.mxu0 %v809
    %939 = vmatprep.subr.mxu0 %v812
    %940 = vmatpush1.msra.mxu0 %v811
    %941 = vmatprep.subr.mxu0 %v814
    %942 = vmatpush1.msra.mxu0 %v813
    %943 = vmatprep.subr.mxu0 %v816
    %944 = vmatpush1.msra.mxu0 %v815
    %945 = vmatprep.mubr.f32.mxu0 %v685
    %946 = vmatmul.mubr.f32.gmra.mrb[0].mxu0 %v684
    %v947 = vpop.f32.mrb[0].mxu0
    %v948 = vadd.f32 0.0, %v947
    %v949 = vpop.f32.mrb[0].mxu0
    %v950 = vadd.f32 0.0, %v949
    %951 = vmatprep.mubr.f32.mxu0 %v687
    %952 = vmatmul.mubr.f32.gmra.mrb[0].mxu0 %v686
    %v953 = vpop.f32.mrb[0].mxu0
    %v954 = vadd.f32 0.0, %v953
    %v955 = vpop.f32.mrb[0].mxu0
    %v956 = vadd.f32 0.0, %v955
    %957 = vdwg.mxu0
    %958 = vmatprep.subr.mxu0 %v818
    %959 = vmatpush1.msra.mxu0 %v817
    %960 = vmatprep.subr.mxu0 %v820
    %961 = vmatpush1.msra.mxu0 %v819
    %962 = vmatprep.subr.mxu0 %v822
    %963 = vmatpush1.msra.mxu0 %v821
    %964 = vmatprep.subr.mxu0 %v824
    %965 = vmatpush1.msra.mxu0 %v823
    %966 = vmatprep.subr.mxu0 %v826
    %967 = vmatpush1.msra.mxu0 %v825
    %968 = vmatprep.subr.mxu0 %v828
    %969 = vmatpush1.msra.mxu0 %v827
    %970 = vmatprep.subr.mxu0 %v830
    %971 = vmatpush1.msra.mxu0 %v829
    %972 = vmatprep.subr.mxu0 %v832
    %973 = vmatpush1.msra.mxu0 %v831
    %974 = vmatprep.subr.mxu0 %v834
    %975 = vmatpush1.msra.mxu0 %v833
    %976 = vmatprep.subr.mxu0 %v836
    %977 = vmatpush1.msra.mxu0 %v835
    %978 = vmatprep.subr.mxu0 %v838
    %979 = vmatpush1.msra.mxu0 %v837
    %980 = vmatprep.subr.mxu0 %v840
    %981 = vmatpush1.msra.mxu0 %v839
    %982 = vmatprep.subr.mxu0 %v842
    %983 = vmatpush1.msra.mxu0 %v841
    %984 = vmatprep.subr.mxu0 %v844
    %985 = vmatpush1.msra.mxu0 %v843
    %986 = vmatprep.subr.mxu0 %v846
    %987 = vmatpush1.msra.mxu0 %v845
    %988 = vmatprep.subr.mxu0 %v848
    %989 = vmatpush1.msra.mxu0 %v847
    %990 = vmatprep.subr.mxu0 %v850
    %991 = vmatpush1.msra.mxu0 %v849
    %992 = vmatprep.subr.mxu0 %v852
    %993 = vmatpush1.msra.mxu0 %v851
    %994 = vmatprep.subr.mxu0 %v854
    %995 = vmatpush1.msra.mxu0 %v853
    %996 = vmatprep.subr.mxu0 %v856
    %997 = vmatpush1.msra.mxu0 %v855
    %998 = vmatprep.subr.mxu0 %v858
    %999 = vmatpush1.msra.mxu0 %v857
    %1000 = vmatprep.subr.mxu0 %v860
    %1001 = vmatpush1.msra.mxu0 %v859
    %1002 = vmatprep.subr.mxu0 %v862
    %1003 = vmatpush1.msra.mxu0 %v861
    %1004 = vmatprep.subr.mxu0 %v864
    %1005 = vmatpush1.msra.mxu0 %v863
    %1006 = vmatprep.subr.mxu0 %v866
    %1007 = vmatpush1.msra.mxu0 %v865
    %1008 = vmatprep.subr.mxu0 %v868
    %1009 = vmatpush1.msra.mxu0 %v867
    %1010 = vmatprep.subr.mxu0 %v870
    %1011 = vmatpush1.msra.mxu0 %v869
    %1012 = vmatprep.subr.mxu0 %v872
    %1013 = vmatpush1.msra.mxu0 %v871
    %1014 = vmatprep.subr.mxu0 %v874
    %1015 = vmatpush1.msra.mxu0 %v873
    %1016 = vmatprep.subr.mxu0 %v876
    %1017 = vmatpush1.msra.mxu0 %v875
    %1018 = vmatprep.subr.mxu0 %v878
    %1019 = vmatpush1.msra.mxu0 %v877
    %1020 = vmatprep.subr.mxu0 %v880
    %1021 = vmatpush1.msra.mxu0 %v879
    %1022 = vmatprep.mubr.f32.mxu0 %v731
    %1023 = vmatmul.mubr.f32.gmra.mrb[0].mxu0 %v730
    %v1024 = vpop.f32.mrb[0].mxu0
    %v1025 = vadd.f32 %v948, %v1024
    %v1026 = vpop.f32.mrb[0].mxu0
    %v1027 = vadd.f32 %v950, %v1026
    %1028 = vmatprep.mubr.f32.mxu0 %v733
    %1029 = vmatmul.mubr.f32.gmra.mrb[0].mxu0 %v732
    %v1030 = vpop.f32.mrb[0].mxu0
    %v1031 = vadd.f32 %v954, %v1030
    %v1032 = vpop.f32.mrb[0].mxu0
    %v1033 = vadd.f32 %v956, %v1032
    %1034 = vdwg.mxu0
    %v1035 = vld [vmem:[#allocation10] sm:$0xff]
    %v1036 = vld [vmem:[#allocation10 + $0x8] sm:$0xff]
    %v1037 = vld [vmem:[#allocation10 + $0x10] sm:$0xff]
    %v1038 = vld [vmem:[#allocation10 + $0x18] sm:$0xff]
    %v1039 = vld [vmem:[#allocation10 + $0x20] sm:$0xff]
    %v1040 = vld [vmem:[#allocation10 + $0x28] sm:$0xff]
    %v1041 = vld [vmem:[#allocation10 + $0x30] sm:$0xff]
    %v1042 = vld [vmem:[#allocation10 + $0x38] sm:$0xff]
    %v1043 = vld [vmem:[#allocation10 + $0x40] sm:$0xff]
    %v1044 = vld [vmem:[#allocation10 + $0x48] sm:$0xff]
    %v1045 = vld [vmem:[#allocation10 + $0x50] sm:$0xff]
    %v1046 = vld [vmem:[#allocation10 + $0x58] sm:$0xff]
    %v1047 = vld [vmem:[#allocation10 + $0x60] sm:$0xff]
    %v1048 = vld [vmem:[#allocation10 + $0x68] sm:$0xff]
    %v1049 = vld [vmem:[#allocation10 + $0x70] sm:$0xff]
    %v1050 = vld [vmem:[#allocation10 + $0x78] sm:$0xff]
    %v1051 = vld [vmem:[#allocation10 + $0x80] sm:$0xff]
    %v1052 = vld [vmem:[#allocation10 + $0x88] sm:$0xff]
    %v1053 = vld [vmem:[#allocation10 + $0x90] sm:$0xff]
    %v1054 = vld [vmem:[#allocation10 + $0x98] sm:$0xff]
    %v1055 = vld [vmem:[#allocation10 + $0xa0] sm:$0xff]
    %v1056 = vld [vmem:[#allocation10 + $0xa8] sm:$0xff]
    %v1057 = vld [vmem:[#allocation10 + $0xb0] sm:$0xff]
    %v1058 = vld [vmem:[#allocation10 + $0xb8] sm:$0xff]
    %v1059 = vld [vmem:[#allocation10 + $0xc0] sm:$0xff]
    %v1060 = vld [vmem:[#allocation10 + $0xc8] sm:$0xff]
    %v1061 = vld [vmem:[#allocation10 + $0xd0] sm:$0xff]
    %v1062 = vld [vmem:[#allocation10 + $0xd8] sm:$0xff]
    %v1063 = vld [vmem:[#allocation10 + $0xe0] sm:$0xff]
    %v1064 = vld [vmem:[#allocation10 + $0xe8] sm:$0xff]
    %v1065 = vld [vmem:[#allocation10 + $0xf0] sm:$0xff]
    %v1066 = vld [vmem:[#allocation10 + $0xf8] sm:$0xff]
    %v1067 = vld [vmem:[#allocation10 + $0x100] sm:$0xff]
    %v1068 = vld [vmem:[#allocation10 + $0x108] sm:$0xff]
    %v1069 = vld [vmem:[#allocation10 + $0x110] sm:$0xff]
    %v1070 = vld [vmem:[#allocation10 + $0x118] sm:$0xff]
    %v1071 = vld [vmem:[#allocation10 + $0x120] sm:$0xff]
    %v1072 = vld [vmem:[#allocation10 + $0x128] sm:$0xff]
    %v1073 = vld [vmem:[#allocation10 + $0x130] sm:$0xff]
    %v1074 = vld [vmem:[#allocation10 + $0x138] sm:$0xff]
    %v1075 = vld [vmem:[#allocation10 + $0x140] sm:$0xff]
    %v1076 = vld [vmem:[#allocation10 + $0x148] sm:$0xff]
    %v1077 = vld [vmem:[#allocation10 + $0x150] sm:$0xff]
    %v1078 = vld [vmem:[#allocation10 + $0x158] sm:$0xff]
    %v1079 = vld [vmem:[#allocation10 + $0x160] sm:$0xff]
    %v1080 = vld [vmem:[#allocation10 + $0x168] sm:$0xff]
    %v1081 = vld [vmem:[#allocation10 + $0x170] sm:$0xff]
    %v1082 = vld [vmem:[#allocation10 + $0x178] sm:$0xff]
    %v1083 = vld [vmem:[#allocation10 + $0x180] sm:$0xff]
    %v1084 = vld [vmem:[#allocation10 + $0x188] sm:$0xff]
    %v1085 = vld [vmem:[#allocation10 + $0x190] sm:$0xff]
    %v1086 = vld [vmem:[#allocation10 + $0x198] sm:$0xff]
    %v1087 = vld [vmem:[#allocation10 + $0x1a0] sm:$0xff]
    %v1088 = vld [vmem:[#allocation10 + $0x1a8] sm:$0xff]
    %v1089 = vld [vmem:[#allocation10 + $0x1b0] sm:$0xff]
    %v1090 = vld [vmem:[#allocation10 + $0x1b8] sm:$0xff]
    %v1091 = vld [vmem:[#allocation10 + $0x1c0] sm:$0xff]
    %v1092 = vld [vmem:[#allocation10 + $0x1c8] sm:$0xff]
    %v1093 = vld [vmem:[#allocation10 + $0x1d0] sm:$0xff]
    %v1094 = vld [vmem:[#allocation10 + $0x1d8] sm:$0xff]
    %v1095 = vld [vmem:[#allocation10 + $0x1e0] sm:$0xff]
    %v1096 = vld [vmem:[#allocation10 + $0x1e8] sm:$0xff]
    %v1097 = vld [vmem:[#allocation10 + $0x1f0] sm:$0xff]
    %v1098 = vld [vmem:[#allocation10 + $0x1f8] sm:$0xff]
    %v1099 = vld [vmem:[#allocation10 + $0x200] sm:$0xff]
    %v1100 = vld [vmem:[#allocation10 + $0x208] sm:$0xff]
    %v1101 = vld [vmem:[#allocation10 + $0x210] sm:$0xff]
    %v1102 = vld [vmem:[#allocation10 + $0x218] sm:$0xff]
    %v1103 = vld [vmem:[#allocation10 + $0x220] sm:$0xff]
    %v1104 = vld [vmem:[#allocation10 + $0x228] sm:$0xff]
    %v1105 = vld [vmem:[#allocation10 + $0x230] sm:$0xff]
    %v1106 = vld [vmem:[#allocation10 + $0x238] sm:$0xff]
    %v1107 = vld [vmem:[#allocation10 + $0x240] sm:$0xff]
    %v1108 = vld [vmem:[#allocation10 + $0x248] sm:$0xff]
    %v1109 = vld [vmem:[#allocation10 + $0x250] sm:$0xff]
    %v1110 = vld [vmem:[#allocation10 + $0x258] sm:$0xff]
    %v1111 = vld [vmem:[#allocation10 + $0x260] sm:$0xff]
    %v1112 = vld [vmem:[#allocation10 + $0x268] sm:$0xff]
    %v1113 = vld [vmem:[#allocation10 + $0x270] sm:$0xff]
    %v1114 = vld [vmem:[#allocation10 + $0x278] sm:$0xff]
    %v1115 = vld [vmem:[#allocation10 + $0x280] sm:$0xff]
    %v1116 = vld [vmem:[#allocation10 + $0x288] sm:$0xff]
    %v1117 = vld [vmem:[#allocation10 + $0x290] sm:$0xff]
    %v1118 = vld [vmem:[#allocation10 + $0x298] sm:$0xff]
    %v1119 = vld [vmem:[#allocation10 + $0x2a0] sm:$0xff]
    %v1120 = vld [vmem:[#allocation10 + $0x2a8] sm:$0xff]
    %v1121 = vld [vmem:[#allocation10 + $0x2b0] sm:$0xff]
    %v1122 = vld [vmem:[#allocation10 + $0x2b8] sm:$0xff]
    %v1123 = vld [vmem:[#allocation10 + $0x2c0] sm:$0xff]
    %v1124 = vld [vmem:[#allocation10 + $0x2c8] sm:$0xff]
    %v1125 = vld [vmem:[#allocation10 + $0x2d0] sm:$0xff]
    %v1126 = vld [vmem:[#allocation10 + $0x2d8] sm:$0xff]
    %v1127 = vld [vmem:[#allocation10 + $0x2e0] sm:$0xff]
    %v1128 = vld [vmem:[#allocation10 + $0x2e8] sm:$0xff]
    %v1129 = vld [vmem:[#allocation10 + $0x2f0] sm:$0xff]
    %v1130 = vld [vmem:[#allocation10 + $0x2f8] sm:$0xff]
    %v1131 = vld [vmem:[#allocation10 + $0x300] sm:$0xff]
    %v1132 = vld [vmem:[#allocation10 + $0x308] sm:$0xff]
    %v1133 = vld [vmem:[#allocation10 + $0x310] sm:$0xff]
    %v1134 = vld [vmem:[#allocation10 + $0x318] sm:$0xff]
    %v1135 = vld [vmem:[#allocation10 + $0x320] sm:$0xff]
    %v1136 = vld [vmem:[#allocation10 + $0x328] sm:$0xff]
    %v1137 = vld [vmem:[#allocation10 + $0x330] sm:$0xff]
    %v1138 = vld [vmem:[#allocation10 + $0x338] sm:$0xff]
    %v1139 = vld [vmem:[#allocation10 + $0x340] sm:$0xff]
    %v1140 = vld [vmem:[#allocation10 + $0x348] sm:$0xff]
    %v1141 = vld [vmem:[#allocation10 + $0x350] sm:$0xff]
    %v1142 = vld [vmem:[#allocation10 + $0x358] sm:$0xff]
    %v1143 = vld [vmem:[#allocation10 + $0x360] sm:$0xff]
    %v1144 = vld [vmem:[#allocation10 + $0x368] sm:$0xff]
    %v1145 = vld [vmem:[#allocation10 + $0x370] sm:$0xff]
    %v1146 = vld [vmem:[#allocation10 + $0x378] sm:$0xff]
    %v1147 = vld [vmem:[#allocation10 + $0x380] sm:$0xff]
    %v1148 = vld [vmem:[#allocation10 + $0x388] sm:$0xff]
    %v1149 = vld [vmem:[#allocation10 + $0x390] sm:$0xff]
    %v1150 = vld [vmem:[#allocation10 + $0x398] sm:$0xff]
    %v1151 = vld [vmem:[#allocation10 + $0x3a0] sm:$0xff]
    %v1152 = vld [vmem:[#allocation10 + $0x3a8] sm:$0xff]
    %v1153 = vld [vmem:[#allocation10 + $0x3b0] sm:$0xff]
    %v1154 = vld [vmem:[#allocation10 + $0x3b8] sm:$0xff]
    %v1155 = vld [vmem:[#allocation10 + $0x3c0] sm:$0xff]
    %v1156 = vld [vmem:[#allocation10 + $0x3c8] sm:$0xff]
    %v1157 = vld [vmem:[#allocation10 + $0x3d0] sm:$0xff]
    %v1158 = vld [vmem:[#allocation10 + $0x3d8] sm:$0xff]
    %v1159 = vld [vmem:[#allocation10 + $0x3e0] sm:$0xff]
    %v1160 = vld [vmem:[#allocation10 + $0x3e8] sm:$0xff]
    %v1161 = vld [vmem:[#allocation10 + $0x3f0] sm:$0xff]
    %v1162 = vld [vmem:[#allocation10 + $0x3f8] sm:$0xff]
    %1163 = vmatprep.subr.mxu0 %v1036
    %1164 = vmatpush1.msra.mxu0 %v1035
    %1165 = vmatprep.subr.mxu0 %v1038
    %1166 = vmatpush1.msra.mxu0 %v1037
    %1167 = vmatprep.subr.mxu0 %v1040
    %1168 = vmatpush1.msra.mxu0 %v1039
    %1169 = vmatprep.subr.mxu0 %v1042
    %1170 = vmatpush1.msra.mxu0 %v1041
    %1171 = vmatprep.subr.mxu0 %v1044
    %1172 = vmatpush1.msra.mxu0 %v1043
    %1173 = vmatprep.subr.mxu0 %v1046
    %1174 = vmatpush1.msra.mxu0 %v1045
    %1175 = vmatprep.subr.mxu0 %v1048
    %1176 = vmatpush1.msra.mxu0 %v1047
    %1177 = vmatprep.subr.mxu0 %v1050
    %1178 = vmatpush1.msra.mxu0 %v1049
    %1179 = vmatprep.subr.mxu0 %v1052
    %1180 = vmatpush1.msra.mxu0 %v1051
    %1181 = vmatprep.subr.mxu0 %v1054
    %1182 = vmatpush1.msra.mxu0 %v1053
    %1183 = vmatprep.subr.mxu0 %v1056
    %1184 = vmatpush1.msra.mxu0 %v1055
    %1185 = vmatprep.subr.mxu0 %v1058
    %1186 = vmatpush1.msra.mxu0 %v1057
    %1187 = vmatprep.subr.mxu0 %v1060
    %1188 = vmatpush1.msra.mxu0 %v1059
    %1189 = vmatprep.subr.mxu0 %v1062
    %1190 = vmatpush1.msra.mxu0 %v1061
    %1191 = vmatprep.subr.mxu0 %v1064
    %1192 = vmatpush1.msra.mxu0 %v1063
    %1193 = vmatprep.subr.mxu0 %v1066
    %1194 = vmatpush1.msra.mxu0 %v1065
    %1195 = vmatprep.subr.mxu0 %v1068
    %1196 = vmatpush1.msra.mxu0 %v1067
    %1197 = vmatprep.subr.mxu0 %v1070
    %1198 = vmatpush1.msra.mxu0 %v1069
    %1199 = vmatprep.subr.mxu0 %v1072
    %1200 = vmatpush1.msra.mxu0 %v1071
    %1201 = vmatprep.subr.mxu0 %v1074
    %1202 = vmatpush1.msra.mxu0 %v1073
    %1203 = vmatprep.subr.mxu0 %v1076
    %1204 = vmatpush1.msra.mxu0 %v1075
    %1205 = vmatprep.subr.mxu0 %v1078
    %1206 = vmatpush1.msra.mxu0 %v1077
    %1207 = vmatprep.subr.mxu0 %v1080
    %1208 = vmatpush1.msra.mxu0 %v1079
    %1209 = vmatprep.subr.mxu0 %v1082
    %1210 = vmatpush1.msra.mxu0 %v1081
    %1211 = vmatprep.subr.mxu0 %v1084
    %1212 = vmatpush1.msra.mxu0 %v1083
    %1213 = vmatprep.subr.mxu0 %v1086
    %1214 = vmatpush1.msra.mxu0 %v1085
    %1215 = vmatprep.subr.mxu0 %v1088
    %1216 = vmatpush1.msra.mxu0 %v1087
    %1217 = vmatprep.subr.mxu0 %v1090
    %1218 = vmatpush1.msra.mxu0 %v1089
    %1219 = vmatprep.subr.mxu0 %v1092
    %1220 = vmatpush1.msra.mxu0 %v1091
    %1221 = vmatprep.subr.mxu0 %v1094
    %1222 = vmatpush1.msra.mxu0 %v1093
    %1223 = vmatprep.subr.mxu0 %v1096
    %1224 = vmatpush1.msra.mxu0 %v1095
    %1225 = vmatprep.subr.mxu0 %v1098
    %1226 = vmatpush1.msra.mxu0 %v1097
    %1227 = vmatprep.mubr.f32.mxu0 %v750
    %1228 = vmatmul.mubr.f32.gmra.mrb[0].mxu0 %v749
    %v1229 = vpop.f32.mrb[0].mxu0
    %v1230 = vadd.f32 0.0, %v1229
    %v1231 = vpop.f32.mrb[0].mxu0
    %v1232 = vadd.f32 0.0, %v1231
    %1233 = vmatprep.mubr.f32.mxu0 %v752
    %1234 = vmatmul.mubr.f32.gmra.mrb[0].mxu0 %v751
    %v1235 = vpop.f32.mrb[0].mxu0
    %v1236 = vadd.f32 0.0, %v1235
    %v1237 = vpop.f32.mrb[0].mxu0
    %v1238 = vadd.f32 0.0, %v1237
    %1239 = vdwg.mxu0
    %1240 = vmatprep.subr.mxu0 %v1100
    %1241 = vmatpush1.msra.mxu0 %v1099
    %1242 = vmatprep.subr.mxu0 %v1102
    %1243 = vmatpush1.msra.mxu0 %v1101
    %1244 = vmatprep.subr.mxu0 %v1104
    %1245 = vmatpush1.msra.mxu0 %v1103
    %1246 = vmatprep.subr.mxu0 %v1106
    %1247 = vmatpush1.msra.mxu0 %v1105
    %1248 = vmatprep.subr.mxu0 %v1108
    %1249 = vmatpush1.msra.mxu0 %v1107
    %1250 = vmatprep.subr.mxu0 %v1110
    %1251 = vmatpush1.msra.mxu0 %v1109
    %1252 = vmatprep.subr.mxu0 %v1112
    %1253 = vmatpush1.msra.mxu0 %v1111
    %1254 = vmatprep.subr.mxu0 %v1114
    %1255 = vmatpush1.msra.mxu0 %v1113
    %1256 = vmatprep.subr.mxu0 %v1116
    %1257 = vmatpush1.msra.mxu0 %v1115
    %1258 = vmatprep.subr.mxu0 %v1118
    %1259 = vmatpush1.msra.mxu0 %v1117
    %1260 = vmatprep.subr.mxu0 %v1120
    %1261 = vmatpush1.msra.mxu0 %v1119
    %1262 = vmatprep.subr.mxu0 %v1122
    %1263 = vmatpush1.msra.mxu0 %v1121
    %1264 = vmatprep.subr.mxu0 %v1124
    %1265 = vmatpush1.msra.mxu0 %v1123
    %1266 = vmatprep.subr.mxu0 %v1126
    %1267 = vmatpush1.msra.mxu0 %v1125
    %1268 = vmatprep.subr.mxu0 %v1128
    %1269 = vmatpush1.msra.mxu0 %v1127
    %1270 = vmatprep.subr.mxu0 %v1130
    %1271 = vmatpush1.msra.mxu0 %v1129
    %1272 = vmatprep.subr.mxu0 %v1132
    %1273 = vmatpush1.msra.mxu0 %v1131
    %1274 = vmatprep.subr.mxu0 %v1134
    %1275 = vmatpush1.msra.mxu0 %v1133
    %1276 = vmatprep.subr.mxu0 %v1136
    %1277 = vmatpush1.msra.mxu0 %v1135
    %1278 = vmatprep.subr.mxu0 %v1138
    %1279 = vmatpush1.msra.mxu0 %v1137
    %1280 = vmatprep.subr.mxu0 %v1140
    %1281 = vmatpush1.msra.mxu0 %v1139
    %1282 = vmatprep.subr.mxu0 %v1142
    %1283 = vmatpush1.msra.mxu0 %v1141
    %1284 = vmatprep.subr.mxu0 %v1144
    %1285 = vmatpush1.msra.mxu0 %v1143
    %1286 = vmatprep.subr.mxu0 %v1146
    %1287 = vmatpush1.msra.mxu0 %v1145
    %1288 = vmatprep.subr.mxu0 %v1148
    %1289 = vmatpush1.msra.mxu0 %v1147
    %1290 = vmatprep.subr.mxu0 %v1150
    %1291 = vmatpush1.msra.mxu0 %v1149
    %1292 = vmatprep.subr.mxu0 %v1152
    %1293 = vmatpush1.msra.mxu0 %v1151
    %1294 = vmatprep.subr.mxu0 %v1154
    %1295 = vmatpush1.msra.mxu0 %v1153
    %1296 = vmatprep.subr.mxu0 %v1156
    %1297 = vmatpush1.msra.mxu0 %v1155
    %1298 = vmatprep.subr.mxu0 %v1158
    %1299 = vmatpush1.msra.mxu0 %v1157
    %1300 = vmatprep.subr.mxu0 %v1160
    %1301 = vmatpush1.msra.mxu0 %v1159
    %1302 = vmatprep.subr.mxu0 %v1162
    %1303 = vmatpush1.msra.mxu0 %v1161
    %1304 = vmatprep.mubr.f32.mxu0 %v685
    %1305 = vmatmul.mubr.f32.gmra.mrb[0].mxu0 %v684
    %v1306 = vpop.f32.mrb[0].mxu0
    %v1307 = vadd.f32 %v1230, %v1306
    %v1308 = vpop.f32.mrb[0].mxu0
    %v1309 = vadd.f32 %v1232, %v1308
    %1310 = vmatprep.mubr.f32.mxu0 %v687
    %1311 = vmatmul.mubr.f32.gmra.mrb[0].mxu0 %v686
    %v1312 = vpop.f32.mrb[0].mxu0
    %v1313 = vadd.f32 %v1236, %v1312
    %v1314 = vpop.f32.mrb[0].mxu0
    %v1315 = vadd.f32 %v1238, %v1314
    %1316 = vdwg.mxu0
    %v1317 = vld [vmem:[#allocation11] sm:$0xff]
    %v1318 = vld [vmem:[#allocation11 + $0x8] sm:$0xff]
    %v1319 = vld [vmem:[#allocation11 + $0x10] sm:$0xff]
    %v1320 = vld [vmem:[#allocation11 + $0x18] sm:$0xff]
    %vm1321 = vcmask 261120
    %v1323 = vsel %vm1321, %v1317, 0
    %v1326 = vsel %vm1321, %v1318, 0
    %v1329 = vsel %vm1321, %v1319, 0
    %v1332 = vsel %vm1321, %v1320, 0
    %1334 = vmatprep.subr.mxu0 %v1027
    %1335 = vmatpush1.msra.mxu0 %v1025
    %1336 = vmatprep.subr.mxu0 %v1033
    %1337 = vmatpush1.msra.mxu0 %v1031
    %1338 = vmatprep.subr.mxu0 %v1309
    %1339 = vmatpush1.msra.mxu0 %v1307
    %1340 = vmatprep.subr.mxu0 %v1315
    %1341 = vmatpush1.msra.mxu0 %v1313
    %1342 = vmatprep.subr.mxu0 0.0
    %1343 = vmatpush1.msra.mxu0 0.0
    %1344 = vmatprep.subr.mxu0 0.0
    %1345 = vmatpush1.msra.mxu0 0.0
    %1346 = vmatprep.subr.mxu0 0.0
    %1347 = vmatpush1.msra.mxu0 0.0
    %1348 = vmatprep.subr.mxu0 0.0
    %1349 = vmatpush1.msra.mxu0 0.0
    %1350 = vmatprep.subr.mxu0 0.0
    %1351 = vmatpush1.msra.mxu0 0.0
    %1352 = vmatprep.subr.mxu0 0.0
    %1353 = vmatpush1.msra.mxu0 0.0
    %1354 = vmatprep.subr.mxu0 0.0
    %1355 = vmatpush1.msra.mxu0 0.0
    %1356 = vmatprep.subr.mxu0 0.0
    %1357 = vmatpush1.msra.mxu0 0.0
    %1358 = vmatprep.subr.mxu0 0.0
    %1359 = vmatpush1.msra.mxu0 0.0
    %1360 = vmatprep.subr.mxu0 0.0
    %1361 = vmatpush1.msra.mxu0 0.0
    %1362 = vmatprep.subr.mxu0 0.0
    %1363 = vmatpush1.msra.mxu0 0.0
    %1364 = vmatprep.subr.mxu0 0.0
    %1365 = vmatpush1.msra.mxu0 0.0
    %1366 = vmatprep.subr.mxu0 0.0
    %1367 = vmatpush1.msra.mxu0 0.0
    %1368 = vmatprep.subr.mxu0 0.0
    %1369 = vmatpush1.msra.mxu0 0.0
    %1370 = vmatprep.subr.mxu0 0.0
    %1371 = vmatpush1.msra.mxu0 0.0
    %1372 = vmatprep.subr.mxu0 0.0
    %1373 = vmatpush1.msra.mxu0 0.0
    %1374 = vmatprep.subr.mxu0 0.0
    %1375 = vmatpush1.msra.mxu0 0.0
    %1376 = vmatprep.subr.mxu0 0.0
    %1377 = vmatpush1.msra.mxu0 0.0
    %1378 = vmatprep.subr.mxu0 0.0
    %1379 = vmatpush1.msra.mxu0 0.0
    %1380 = vmatprep.subr.mxu0 0.0
    %1381 = vmatpush1.msra.mxu0 0.0
    %1382 = vmatprep.subr.mxu0 0.0
    %1383 = vmatpush1.msra.mxu0 0.0
    %1384 = vmatprep.subr.mxu0 0.0
    %1385 = vmatpush1.msra.mxu0 0.0
    %1386 = vmatprep.subr.mxu0 0.0
    %1387 = vmatpush1.msra.mxu0 0.0
    %1388 = vmatprep.subr.mxu0 0.0
    %1389 = vmatpush1.msra.mxu0 0.0
    %1390 = vmatprep.subr.mxu0 0.0
    %1391 = vmatpush1.msra.mxu0 0.0
    %1392 = vmatprep.subr.mxu0 0.0
    %1393 = vmatpush1.msra.mxu0 0.0
    %1394 = vmatprep.subr.mxu0 0.0
    %1395 = vmatpush1.msra.mxu0 0.0
    %1396 = vmatprep.subr.mxu0 0.0
    %1397 = vmatpush1.msra.mxu0 0.0
    %1398 = vmatprep.mubr.f32.mxu0 0.0
    %1399 = vmatmul.mubr.f32.gmra.mrb[0].mxu0 %v1323
    %v1400 = vpop.f32.mrb[0].mxu0
    %v1401 = vadd.f32 0.0, %v1400
    %v1402 = vpop.f32.mrb[0].mxu0
    %v1403 = vadd.f32 0.0, %v1402
    %1404 = vmatprep.mubr.f32.mxu0 0.0
    %1405 = vmatmul.mubr.f32.gmra.mrb[0].mxu0 %v1326
    %v1406 = vpop.f32.mrb[0].mxu0
    %v1407 = vadd.f32 0.0, %v1406
    %v1408 = vpop.f32.mrb[0].mxu0
    %v1409 = vadd.f32 0.0, %v1408
    %1410 = vmatprep.mubr.f32.mxu0 0.0
    %1411 = vmatmul.mubr.f32.gmra.mrb[0].mxu0 %v1329
    %v1412 = vpop.f32.mrb[0].mxu0
    %v1413 = vadd.f32 0.0, %v1412
    %v1414 = vpop.f32.mrb[0].mxu0
    %v1415 = vadd.f32 0.0, %v1414
    %1416 = vmatprep.mubr.f32.mxu0 0.0
    %1417 = vmatmul.mubr.f32.gmra.mrb[0].mxu0 %v1332
    %v1418 = vpop.f32.mrb[0].mxu0
    %v1419 = vadd.f32 0.0, %v1418
    %v1420 = vpop.f32.mrb[0].mxu0
    %v1421 = vadd.f32 0.0, %v1420
    %1422 = vdwg.mxu0
    %v1423 = vadd.f32 %v1401, %v1407
    %v1424 = vadd.f32 %v1423, %v1413
    %v1425 = vadd.f32 %v1424, %v1419
    %v1426 = vrot.slane %v1425, 4
    %v1427 = vadd.f32 %v1425, %v1426
    %v1428 = vrot.slane %v1427, 2
    %v1429 = vadd.f32 %v1427, %v1428
    %v1430 = vrot.slane %v1429, 1
    %v1431 = vadd.f32 %v1429, %v1430
    %v1432 = vadd.f32 %v1403, %v1409
    %v1433 = vadd.f32 %v1432, %v1415
    %v1434 = vadd.f32 %v1433, %v1421
    %v1435 = vrot.slane %v1434, 4
    %v1436 = vadd.f32 %v1434, %v1435
    %v1437 = vrot.slane %v1436, 2
    %v1438 = vadd.f32 %v1436, %v1437
    %v1439 = vrot.slane %v1438, 1
    %v1440 = vadd.f32 %v1438, %v1439
    %v1441 = vmul.f32 %v1401, %v1401
    %v1442 = vmul.f32 %v1403, %v1403
    %v1443 = vmul.f32 %v1407, %v1407
    %v1444 = vmul.f32 %v1409, %v1409
    %v1445 = vmul.f32 %v1413, %v1413
    %v1446 = vmul.f32 %v1415, %v1415
    %v1447 = vmul.f32 %v1419, %v1419
    %v1448 = vmul.f32 %v1421, %v1421
    %v1449 = vadd.f32 %v1441, %v1443
    %v1450 = vadd.f32 %v1449, %v1445
    %v1451 = vadd.f32 %v1450, %v1447
    %v1452 = vrot.slane %v1451, 4
    %v1453 = vadd.f32 %v1451, %v1452
    %v1454 = vrot.slane %v1453, 2
    %v1455 = vadd.f32 %v1453, %v1454
    %v1456 = vrot.slane %v1455, 1
    %v1457 = vadd.f32 %v1455, %v1456
    %v1458 = vadd.f32 %v1442, %v1444
    %v1459 = vadd.f32 %v1458, %v1446
    %v1460 = vadd.f32 %v1459, %v1448
    %v1461 = vrot.slane %v1460, 4
    %v1462 = vadd.f32 %v1460, %v1461
    %v1463 = vrot.slane %v1462, 2
    %v1464 = vadd.f32 %v1462, %v1463
    %v1465 = vrot.slane %v1464, 1
    %v1466 = vadd.f32 %v1464, %v1465
    %v1467 = vld [vmem:[#allocation13] sm:$0xff]
    %v1468 = vld [vmem:[#allocation13 + $0x8] sm:$0xff]
    %v1469 = vld [vmem:[#allocation13 + $0x10] sm:$0xff]
    %v1470 = vld [vmem:[#allocation13 + $0x18] sm:$0xff]
    %v1471 = vld [vmem:[#allocation13 + $0x20] sm:$0xff]
    %v1472 = vld [vmem:[#allocation13 + $0x28] sm:$0xff]
    %v1473 = vld [vmem:[#allocation13 + $0x30] sm:$0xff]
    %v1474 = vld [vmem:[#allocation13 + $0x38] sm:$0xff]
    %v1475 = vld [vmem:[#allocation13 + $0x40] sm:$0xff]
    %v1476 = vld [vmem:[#allocation13 + $0x48] sm:$0xff]
    %v1477 = vld [vmem:[#allocation13 + $0x50] sm:$0xff]
    %v1478 = vld [vmem:[#allocation13 + $0x58] sm:$0xff]
    %v1479 = vld [vmem:[#allocation13 + $0x60] sm:$0xff]
    %v1480 = vld [vmem:[#allocation13 + $0x68] sm:$0xff]
    %v1481 = vld [vmem:[#allocation13 + $0x70] sm:$0xff]
    %v1482 = vld [vmem:[#allocation13 + $0x78] sm:$0xff]
    %v1483 = vld [vmem:[#allocation13 + $0x80] sm:$0xff]
    %v1484 = vld [vmem:[#allocation13 + $0x88] sm:$0xff]
    %v1485 = vld [vmem:[#allocation13 + $0x90] sm:$0xff]
    %v1486 = vld [vmem:[#allocation13 + $0x98] sm:$0xff]
    %v1487 = vld [vmem:[#allocation13 + $0xa0] sm:$0xff]
    %v1488 = vld [vmem:[#allocation13 + $0xa8] sm:$0xff]
    %v1489 = vld [vmem:[#allocation13 + $0xb0] sm:$0xff]
    %v1490 = vld [vmem:[#allocation13 + $0xb8] sm:$0xff]
    %v1491 = vld [vmem:[#allocation13 + $0xc0] sm:$0xff]
    %v1492 = vld [vmem:[#allocation13 + $0xc8] sm:$0xff]
    %v1493 = vld [vmem:[#allocation13 + $0xd0] sm:$0xff]
    %v1494 = vld [vmem:[#allocation13 + $0xd8] sm:$0xff]
    %v1495 = vld [vmem:[#allocation13 + $0xe0] sm:$0xff]
    %v1496 = vld [vmem:[#allocation13 + $0xe8] sm:$0xff]
    %v1497 = vld [vmem:[#allocation13 + $0xf0] sm:$0xff]
    %v1498 = vld [vmem:[#allocation13 + $0xf8] sm:$0xff]
    %v1499 = vld [vmem:[#allocation13 + $0x100] sm:$0xff]
    %v1500 = vld [vmem:[#allocation13 + $0x108] sm:$0xff]
    %v1501 = vld [vmem:[#allocation13 + $0x110] sm:$0xff]
    %v1502 = vld [vmem:[#allocation13 + $0x118] sm:$0xff]
    %v1503 = vld [vmem:[#allocation13 + $0x120] sm:$0xff]
    %v1504 = vld [vmem:[#allocation13 + $0x128] sm:$0xff]
    %v1505 = vld [vmem:[#allocation13 + $0x130] sm:$0xff]
    %v1506 = vld [vmem:[#allocation13 + $0x138] sm:$0xff]
    %v1507 = vld [vmem:[#allocation13 + $0x140] sm:$0xff]
    %v1508 = vld [vmem:[#allocation13 + $0x148] sm:$0xff]
    %v1509 = vld [vmem:[#allocation13 + $0x150] sm:$0xff]
    %v1510 = vld [vmem:[#allocation13 + $0x158] sm:$0xff]
    %v1511 = vld [vmem:[#allocation13 + $0x160] sm:$0xff]
    %v1512 = vld [vmem:[#allocation13 + $0x168] sm:$0xff]
    %v1513 = vld [vmem:[#allocation13 + $0x170] sm:$0xff]
    %v1514 = vld [vmem:[#allocation13 + $0x178] sm:$0xff]
    %v1515 = vld [vmem:[#allocation13 + $0x180] sm:$0xff]
    %v1516 = vld [vmem:[#allocation13 + $0x188] sm:$0xff]
    %v1517 = vld [vmem:[#allocation13 + $0x190] sm:$0xff]
    %v1518 = vld [vmem:[#allocation13 + $0x198] sm:$0xff]
    %v1519 = vld [vmem:[#allocation13 + $0x1a0] sm:$0xff]
    %v1520 = vld [vmem:[#allocation13 + $0x1a8] sm:$0xff]
    %v1521 = vld [vmem:[#allocation13 + $0x1b0] sm:$0xff]
    %v1522 = vld [vmem:[#allocation13 + $0x1b8] sm:$0xff]
    %v1523 = vld [vmem:[#allocation13 + $0x1c0] sm:$0xff]
    %v1524 = vld [vmem:[#allocation13 + $0x1c8] sm:$0xff]
    %v1525 = vld [vmem:[#allocation13 + $0x1d0] sm:$0xff]
    %v1526 = vld [vmem:[#allocation13 + $0x1d8] sm:$0xff]
    %v1527 = vld [vmem:[#allocation13 + $0x1e0] sm:$0xff]
    %v1528 = vld [vmem:[#allocation13 + $0x1e8] sm:$0xff]
    %v1529 = vld [vmem:[#allocation13 + $0x1f0] sm:$0xff]
    %v1530 = vld [vmem:[#allocation13 + $0x1f8] sm:$0xff]
    %1531 = vmatprep.subr.mxu0 %v1468
    %1532 = vmatpush1.msra.mxu0 %v1467
    %1533 = vmatprep.subr.mxu0 %v1470
    %1534 = vmatpush1.msra.mxu0 %v1469
    %1535 = vmatprep.subr.mxu0 %v1472
    %1536 = vmatpush1.msra.mxu0 %v1471
    %1537 = vmatprep.subr.mxu0 %v1474
    %1538 = vmatpush1.msra.mxu0 %v1473
    %1539 = vmatprep.subr.mxu0 %v1476
    %1540 = vmatpush1.msra.mxu0 %v1475
    %1541 = vmatprep.subr.mxu0 %v1478
    %1542 = vmatpush1.msra.mxu0 %v1477
    %1543 = vmatprep.subr.mxu0 %v1480
    %1544 = vmatpush1.msra.mxu0 %v1479
    %1545 = vmatprep.subr.mxu0 %v1482
    %1546 = vmatpush1.msra.mxu0 %v1481
    %1547 = vmatprep.subr.mxu0 %v1484
    %1548 = vmatpush1.msra.mxu0 %v1483
    %1549 = vmatprep.subr.mxu0 %v1486
    %1550 = vmatpush1.msra.mxu0 %v1485
    %1551 = vmatprep.subr.mxu0 %v1488
    %1552 = vmatpush1.msra.mxu0 %v1487
    %1553 = vmatprep.subr.mxu0 %v1490
    %1554 = vmatpush1.msra.mxu0 %v1489
    %1555 = vmatprep.subr.mxu0 %v1492
    %1556 = vmatpush1.msra.mxu0 %v1491
    %1557 = vmatprep.subr.mxu0 %v1494
    %1558 = vmatpush1.msra.mxu0 %v1493
    %1559 = vmatprep.subr.mxu0 %v1496
    %1560 = vmatpush1.msra.mxu0 %v1495
    %1561 = vmatprep.subr.mxu0 %v1498
    %1562 = vmatpush1.msra.mxu0 %v1497
    %1563 = vmatprep.subr.mxu0 %v1500
    %1564 = vmatpush1.msra.mxu0 %v1499
    %1565 = vmatprep.subr.mxu0 %v1502
    %1566 = vmatpush1.msra.mxu0 %v1501
    %1567 = vmatprep.subr.mxu0 %v1504
    %1568 = vmatpush1.msra.mxu0 %v1503
    %1569 = vmatprep.subr.mxu0 %v1506
    %1570 = vmatpush1.msra.mxu0 %v1505
    %1571 = vmatprep.subr.mxu0 %v1508
    %1572 = vmatpush1.msra.mxu0 %v1507
    %1573 = vmatprep.subr.mxu0 %v1510
    %1574 = vmatpush1.msra.mxu0 %v1509
    %1575 = vmatprep.subr.mxu0 %v1512
    %1576 = vmatpush1.msra.mxu0 %v1511
    %1577 = vmatprep.subr.mxu0 %v1514
    %1578 = vmatpush1.msra.mxu0 %v1513
    %1579 = vmatprep.subr.mxu0 %v1516
    %1580 = vmatpush1.msra.mxu0 %v1515
    %1581 = vmatprep.subr.mxu0 %v1518
    %1582 = vmatpush1.msra.mxu0 %v1517
    %1583 = vmatprep.subr.mxu0 %v1520
    %1584 = vmatpush1.msra.mxu0 %v1519
    %1585 = vmatprep.subr.mxu0 %v1522
    %1586 = vmatpush1.msra.mxu0 %v1521
    %1587 = vmatprep.subr.mxu0 %v1524
    %1588 = vmatpush1.msra.mxu0 %v1523
    %1589 = vmatprep.subr.mxu0 %v1526
    %1590 = vmatpush1.msra.mxu0 %v1525
    %1591 = vmatprep.subr.mxu0 %v1528
    %1592 = vmatpush1.msra.mxu0 %v1527
    %1593 = vmatprep.subr.mxu0 %v1530
    %1594 = vmatpush1.msra.mxu0 %v1529
    %1595 = vmatprep.mubr.f32.mxu0 %v1440
    %1596 = vmatmul.mubr.f32.gmra.mrb[0].mxu0 %v1431
    %v1597 = vpop.f32.mrb[0].mxu0
    %v1598 = vadd.f32 0.0, %v1597
    %v1599 = vpop.f32.mrb[0].mxu0
    %v1600 = vadd.f32 0.0, %v1599
    %1601 = vdwg.mxu0
    %v1602 = vmul.f32 %v1598, 0.001953125
    %v1603 = vmul.f32 %v1600, 0.001953125
    %1604 = vmatprep.subr.mxu0 %v1468
    %1605 = vmatpush1.msra.mxu0 %v1467
    %1606 = vmatprep.subr.mxu0 %v1470
    %1607 = vmatpush1.msra.mxu0 %v1469
    %1608 = vmatprep.subr.mxu0 %v1472
    %1609 = vmatpush1.msra.mxu0 %v1471
    %1610 = vmatprep.subr.mxu0 %v1474
    %1611 = vmatpush1.msra.mxu0 %v1473
    %1612 = vmatprep.subr.mxu0 %v1476
    %1613 = vmatpush1.msra.mxu0 %v1475
    %1614 = vmatprep.subr.mxu0 %v1478
    %1615 = vmatpush1.msra.mxu0 %v1477
    %1616 = vmatprep.subr.mxu0 %v1480
    %1617 = vmatpush1.msra.mxu0 %v1479
    %1618 = vmatprep.subr.mxu0 %v1482
    %1619 = vmatpush1.msra.mxu0 %v1481
    %1620 = vmatprep.subr.mxu0 %v1484
    %1621 = vmatpush1.msra.mxu0 %v1483
    %1622 = vmatprep.subr.mxu0 %v1486
    %1623 = vmatpush1.msra.mxu0 %v1485
    %1624 = vmatprep.subr.mxu0 %v1488
    %1625 = vmatpush1.msra.mxu0 %v1487
    %1626 = vmatprep.subr.mxu0 %v1490
    %1627 = vmatpush1.msra.mxu0 %v1489
    %1628 = vmatprep.subr.mxu0 %v1492
    %1629 = vmatpush1.msra.mxu0 %v1491
    %1630 = vmatprep.subr.mxu0 %v1494
    %1631 = vmatpush1.msra.mxu0 %v1493
    %1632 = vmatprep.subr.mxu0 %v1496
    %1633 = vmatpush1.msra.mxu0 %v1495
    %1634 = vmatprep.subr.mxu0 %v1498
    %1635 = vmatpush1.msra.mxu0 %v1497
    %1636 = vmatprep.subr.mxu0 %v1500
    %1637 = vmatpush1.msra.mxu0 %v1499
    %1638 = vmatprep.subr.mxu0 %v1502
    %1639 = vmatpush1.msra.mxu0 %v1501
    %1640 = vmatprep.subr.mxu0 %v1504
    %1641 = vmatpush1.msra.mxu0 %v1503
    %1642 = vmatprep.subr.mxu0 %v1506
    %1643 = vmatpush1.msra.mxu0 %v1505
    %1644 = vmatprep.subr.mxu0 %v1508
    %1645 = vmatpush1.msra.mxu0 %v1507
    %1646 = vmatprep.subr.mxu0 %v1510
    %1647 = vmatpush1.msra.mxu0 %v1509
    %1648 = vmatprep.subr.mxu0 %v1512
    %1649 = vmatpush1.msra.mxu0 %v1511
    %1650 = vmatprep.subr.mxu0 %v1514
    %1651 = vmatpush1.msra.mxu0 %v1513
    %1652 = vmatprep.subr.mxu0 %v1516
    %1653 = vmatpush1.msra.mxu0 %v1515
    %1654 = vmatprep.subr.mxu0 %v1518
    %1655 = vmatpush1.msra.mxu0 %v1517
    %1656 = vmatprep.subr.mxu0 %v1520
    %1657 = vmatpush1.msra.mxu0 %v1519
    %1658 = vmatprep.subr.mxu0 %v1522
    %1659 = vmatpush1.msra.mxu0 %v1521
    %1660 = vmatprep.subr.mxu0 %v1524
    %1661 = vmatpush1.msra.mxu0 %v1523
    %1662 = vmatprep.subr.mxu0 %v1526
    %1663 = vmatpush1.msra.mxu0 %v1525
    %1664 = vmatprep.subr.mxu0 %v1528
    %1665 = vmatpush1.msra.mxu0 %v1527
    %1666 = vmatprep.subr.mxu0 %v1530
    %1667 = vmatpush1.msra.mxu0 %v1529
    %1668 = vmatprep.mubr.f32.mxu0 %v1466
    %1669 = vmatmul.mubr.f32.gmra.mrb[0].mxu0 %v1457
    %v1670 = vpop.f32.mrb[0].mxu0
    %v1671 = vadd.f32 0.0, %v1670
    %v1672 = vpop.f32.mrb[0].mxu0
    %v1673 = vadd.f32 0.0, %v1672
    %1674 = vdwg.mxu0
    %v1675 = vmul.f32 %v1671, 0.001953125
    %v1676 = vmul.f32 %v1673, 0.001953125
    %v1677 = vmul.f32 %v1602, %v1602
    %v1678 = vmul.f32 %v1603, %v1603
    %v1679 = vsub.f32 %v1675, %v1677
    %v1680 = vsub.f32 %v1676, %v1678
    %v1681 = vld [vmem:[%s9] sm:$0x3]
    %v1682 = vadd.f32 %v1679, 1e-05
    %v1683 = vadd.f32 %v1680, 1e-05
    %v1684 = vrsqrt.pop %v1682
    %v1685 = vrsqrt.pop %v1683
    %v1688 = vcombine.low %v1684, %v1685
    %v1690 = vunpack.c.l.s4 1966171168
    %v1691 = vunpack.c.0.s8 %v1690
    %v1692 = vlaneseq
    %v1693 = vshrl.u32 %v1692, 7
    %v1694 = vsub.s32 %v1691, %v1693
    %v1695 = vrot.slane %v1688, %v1694
    %v1697 = vunpack.c.l.s4 1966171168
    %v1698 = vunpack.c.0.s8 %v1697
    %v1699 = vlaneseq
    %v1700 = vshrl.u32 %v1699, 7
    %v1701 = vsub.s32 %v1698, %v1700
    %v1702 = vrot.slane %v1695, %v1701
    %v1704 = vmul.f32 %v1681, %v1702
    %v1705 = vlaneseq
    %v1706 = vshrl.u32 %v1705, 7
    %v1707 = vsub.s32 0, %v1706
    %v1708 = vrot.slane %v1602, %v1707
    %v1709 = vlaneseq
    %v1710 = vshrl.u32 %v1709, 7
    %v1711 = vsub.s32 0, %v1710
    %v1712 = vrot.slane %v1603, %v1711
    %v1713 = vsub.f32 %v1401, %v1708
    %v1714 = vsub.f32 %v1403, %v1712
    %v1715 = vsub.f32 %v1407, %v1708
    %v1716 = vsub.f32 %v1409, %v1712
    %v1717 = vsub.f32 %v1413, %v1708
    %v1718 = vsub.f32 %v1415, %v1712
    %v1719 = vsub.f32 %v1419, %v1708
    %v1720 = vsub.f32 %v1421, %v1712
    %v1722 = vlaneseq
    %v1723 = vshrl.u32 %v1722, 7
    %v1724 = vsub.s32 0, %v1723
    %v1725 = vrot.slane %v1704, %v1724
    %v1726 = vlaneseq
    %v1727 = vshrl.u32 %v1726, 7
    %v1728 = vsub.s32 1, %v1727
    %v1729 = vrot.slane %v1704, %v1728
    %v1732 = vmul.f32 %v1713, %v1725
    %v1733 = vmul.f32 %v1714, %v1729
    %v1734 = vmul.f32 %v1715, %v1725
    %v1735 = vmul.f32 %v1716, %v1729
    %v1736 = vmul.f32 %v1717, %v1725
    %v1737 = vmul.f32 %v1718, %v1729
    %v1738 = vmul.f32 %v1719, %v1725
    %v1739 = vmul.f32 %v1720, %v1729
    %v1740 = vld [vmem:[%s10] sm:$0x3]
    %v1742 = vlaneseq
    %v1743 = vshrl.u32 %v1742, 7
    %v1744 = vsub.s32 0, %v1743
    %v1745 = vrot.slane %v1740, %v1744
    %v1746 = vlaneseq
    %v1747 = vshrl.u32 %v1746, 7
    %v1748 = vsub.s32 1, %v1747
    %v1749 = vrot.slane %v1740, %v1748
    %v1752 = vadd.f32 %v1732, %v1745
    %v1753 = vadd.f32 %v1733, %v1749
    %v1754 = vadd.f32 %v1734, %v1745
    %v1755 = vadd.f32 %v1735, %v1749
    %v1756 = vadd.f32 %v1736, %v1745
    %v1757 = vadd.f32 %v1737, %v1749
    %v1758 = vadd.f32 %v1738, %v1745
    %v1759 = vadd.f32 %v1739, %v1749
    %v1760 = vmax.f32 %v1752, 0.0
    %v1761 = vmax.f32 %v1753, 0.0
    %v1762 = vmax.f32 %v1754, 0.0
    %v1763 = vmax.f32 %v1755, 0.0
    %v1764 = vmax.f32 %v1756, 0.0
    %v1765 = vmax.f32 %v1757, 0.0
    %v1766 = vmax.f32 %v1758, 0.0
    %v1767 = vmax.f32 %v1759, 0.0
    %v1768 = vadd.s32 %v689, 16
    %v1769 = vadd.s32 %v689, 24
    %vm1770 = vcmp.lt.s32.totalorder %v689, 0
    %v1771 = vsub.s32 0, %v689
    %v1772 = vsel %vm1770, %v1771, %v689
    %v1773 = vshrl.u32 %v1772, 4
    %v1774 = vand.u32 %v1772, 15
    %v1775 = vsub.s32 0, %v1774
    %v1776 = vsel %vm1770, %v1775, %v1774
    %vm1777 = vcmp.lt.s32.totalorder %v690, 0
    %v1778 = vsub.s32 0, %v690
    %v1779 = vsel %vm1777, %v1778, %v690
    %v1780 = vshrl.u32 %v1779, 4
    %v1781 = vand.u32 %v1779, 15
    %v1782 = vsub.s32 0, %v1781
    %v1783 = vsel %vm1777, %v1782, %v1781
    %vm1784 = vcmp.lt.s32.totalorder %v1768, 0
    %v1785 = vsub.s32 0, %v1768
    %v1786 = vsel %vm1784, %v1785, %v1768
    %v1787 = vshrl.u32 %v1786, 4
    %v1788 = vand.u32 %v1786, 15
    %v1789 = vsub.s32 0, %v1788
    %v1790 = vsel %vm1784, %v1789, %v1788
    %vm1791 = vcmp.lt.s32.totalorder %v1769, 0
    %v1792 = vsub.s32 0, %v1769
    %v1793 = vsel %vm1791, %v1792, %v1769
    %v1794 = vshrl.u32 %v1793, 4
    %v1795 = vand.u32 %v1793, 15
    %v1796 = vsub.s32 0, %v1795
    %v1797 = vsel %vm1791, %v1796, %v1795
    %vm1798 = vcmp.ne.s32.totalorder %v1776, 0
    %vm1799 = vcmp.ne.s32.totalorder %v1783, 0
    %vm1800 = vcmp.ne.s32.totalorder %v1790, 0
    %vm1801 = vcmp.ne.s32.totalorder %v1797, 0
    %vm1802 = vcmp.lt.s32.totalorder %v1776, 0
    %vm1803 = vcmp.lt.s32.totalorder %v1783, 0
    %vm1804 = vcmp.lt.s32.totalorder %v1790, 0
    %vm1805 = vcmp.lt.s32.totalorder %v1797, 0
    %vm1806 = vmand %vm1802, %vm1798
    %vm1807 = vmand %vm1803, %vm1799
    %vm1808 = vmand %vm1804, %vm1800
    %vm1809 = vmand %vm1805, %vm1801
    %v1810 = vadd.s32 %v1776, 16
    %v1811 = vadd.s32 %v1783, 16
    %v1812 = vadd.s32 %v1790, 16
    %v1813 = vadd.s32 %v1797, 16
    %v1814 = vsel %vm1806, %v1810, %v1776
    %v1815 = vsel %vm1807, %v1811, %v1783
    %v1816 = vsel %vm1808, %v1812, %v1790
    %v1817 = vsel %vm1809, %v1813, %v1797
    %v1818 = vrot.slane %v1760, 7
    %v1819 = vrot.slane %v1761, 7
    %v1820 = vrot.slane %v1762, 7
    %v1821 = vrot.slane %v1763, 7
    %v1822 = vrot.slane %v1764, 7
    %v1823 = vrot.slane %v1765, 7
    %v1824 = vrot.slane %v1766, 7
    %v1825 = vrot.slane %v1767, 7
    %v1826 = vsel %vm719, %v1822, %v1824
    %v1827 = vsel %vm719, %v1823, %v1825
    %v1828 = vsel %vm719, %v1820, %v1822
    %v1829 = vsel %vm719, %v1821, %v1823
    %v1830 = vsel %vm719, %v1818, %v1820
    %v1831 = vsel %vm719, %v1819, %v1821
    %v1832 = vsel %vm719, %v1824, %v1818
    %v1833 = vsel %vm719, %v1825, %v1819
    %vm1834 = vcmp.ne.s32.totalorder %v1814, 0
    %vm1835 = vcmp.ne.s32.totalorder %v1815, 0
    %vm1836 = vcmp.ne.s32.totalorder %v1816, 0
    %vm1837 = vcmp.ne.s32.totalorder %v1817, 0
    %v1838 = vsel %vm1834, 1, 0
    %v1839 = vsel %vm1835, 1, 0
    %v1840 = vsel %vm1836, 1, 0
    %v1841 = vsel %vm1837, 1, 0
    %v1842 = vcvt.s32.f32 %v1838
    %v1843 = vcvt.s32.f32 %v1839
    %v1844 = vcvt.s32.f32 %v1840
    %v1845 = vcvt.s32.f32 %v1841
    %v1846 = vmul.f32 %v1832, %v1842
    %v1847 = vmul.f32 %v1833, %v1842
    %v1848 = vmul.f32 %v1830, %v1843
    %v1849 = vmul.f32 %v1831, %v1843
    %v1850 = vmul.f32 %v1828, %v1844
    %v1851 = vmul.f32 %v1829, %v1844
    %v1852 = vmul.f32 %v1826, %v1845
    %v1853 = vmul.f32 %v1827, %v1845
    %v1854 = vrot.slane %v1760, 1
    %v1855 = vrot.slane %v1761, 1
    %v1856 = vrot.slane %v1762, 1
    %v1857 = vrot.slane %v1763, 1
    %v1858 = vrot.slane %v1764, 1
    %v1859 = vrot.slane %v1765, 1
    %v1860 = vrot.slane %v1766, 1
    %v1861 = vrot.slane %v1767, 1
    %v1862 = vsel %vm738, %v1858, %v1860
    %v1863 = vsel %vm738, %v1859, %v1861
    %v1864 = vsel %vm738, %v1856, %v1858
    %v1865 = vsel %vm738, %v1857, %v1859
    %v1866 = vsel %vm738, %v1854, %v1856
    %v1867 = vsel %vm738, %v1855, %v1857
    %v1868 = vsel %vm738, %v1860, %v1854
    %v1869 = vsel %vm738, %v1861, %v1855
    %vm1870 = vcmp.ne.s32.totalorder %v1814, 15
    %vm1871 = vcmp.ne.s32.totalorder %v1815, 15
    %vm1872 = vcmp.ne.s32.totalorder %v1816, 15
    %vm1873 = vcmp.ne.s32.totalorder %v1817, 15
    %v1874 = vsel %vm1870, 1, 0
    %v1875 = vsel %vm1871, 1, 0
    %v1876 = vsel %vm1872, 1, 0
    %v1877 = vsel %vm1873, 1, 0
    %v1878 = vcvt.s32.f32 %v1874
    %v1879 = vcvt.s32.f32 %v1875
    %v1880 = vcvt.s32.f32 %v1876
    %v1881 = vcvt.s32.f32 %v1877
    %v1882 = vmul.f32 %v1866, %v1878
    %v1883 = vmul.f32 %v1867, %v1878
    %v1884 = vmul.f32 %v1864, %v1879
    %v1885 = vmul.f32 %v1865, %v1879
    %v1886 = vmul.f32 %v1862, %v1880
    %v1887 = vmul.f32 %v1863, %v1880
    %v1888 = vmul.f32 %v1868, %v1881
    %v1889 = vmul.f32 %v1869, %v1881
    %v1890 = vld [vmem:[#allocation14] sm:$0xff]
    %v1891 = vld [vmem:[#allocation14 + $0x8] sm:$0xff]
    %v1892 = vld [vmem:[#allocation14 + $0x10] sm:$0xff]
    %v1893 = vld [vmem:[#allocation14 + $0x18] sm:$0xff]
    %v1894 = vld [vmem:[#allocation14 + $0x20] sm:$0xff]
    %v1895 = vld [vmem:[#allocation14 + $0x28] sm:$0xff]
    %v1896 = vld [vmem:[#allocation14 + $0x30] sm:$0xff]
    %v1897 = vld [vmem:[#allocation14 + $0x38] sm:$0xff]
    %v1898 = vld [vmem:[#allocation14 + $0x40] sm:$0xff]
    %v1899 = vld [vmem:[#allocation14 + $0x48] sm:$0xff]
    %v1900 = vld [vmem:[#allocation14 + $0x50] sm:$0xff]
    %v1901 = vld [vmem:[#allocation14 + $0x58] sm:$0xff]
    %v1902 = vld [vmem:[#allocation14 + $0x60] sm:$0xff]
    %v1903 = vld [vmem:[#allocation14 + $0x68] sm:$0xff]
    %v1904 = vld [vmem:[#allocation14 + $0x70] sm:$0xff]
    %v1905 = vld [vmem:[#allocation14 + $0x78] sm:$0xff]
    %v1906 = vld [vmem:[#allocation14 + $0x80] sm:$0xff]
    %v1907 = vld [vmem:[#allocation14 + $0x88] sm:$0xff]
    %v1908 = vld [vmem:[#allocation14 + $0x90] sm:$0xff]
    %v1909 = vld [vmem:[#allocation14 + $0x98] sm:$0xff]
    %v1910 = vld [vmem:[#allocation14 + $0xa0] sm:$0xff]
    %v1911 = vld [vmem:[#allocation14 + $0xa8] sm:$0xff]
    %v1912 = vld [vmem:[#allocation14 + $0xb0] sm:$0xff]
    %v1913 = vld [vmem:[#allocation14 + $0xb8] sm:$0xff]
    %v1914 = vld [vmem:[#allocation14 + $0xc0] sm:$0xff]
    %v1915 = vld [vmem:[#allocation14 + $0xc8] sm:$0xff]
    %v1916 = vld [vmem:[#allocation14 + $0xd0] sm:$0xff]
    %v1917 = vld [vmem:[#allocation14 + $0xd8] sm:$0xff]
    %v1918 = vld [vmem:[#allocation14 + $0xe0] sm:$0xff]
    %v1919 = vld [vmem:[#allocation14 + $0xe8] sm:$0xff]
    %v1920 = vld [vmem:[#allocation14 + $0xf0] sm:$0xff]
    %v1921 = vld [vmem:[#allocation14 + $0xf8] sm:$0xff]
    %v1922 = vld [vmem:[#allocation14 + $0x100] sm:$0xff]
    %v1923 = vld [vmem:[#allocation14 + $0x108] sm:$0xff]
    %v1924 = vld [vmem:[#allocation14 + $0x110] sm:$0xff]
    %v1925 = vld [vmem:[#allocation14 + $0x118] sm:$0xff]
    %v1926 = vld [vmem:[#allocation14 + $0x120] sm:$0xff]
    %v1927 = vld [vmem:[#allocation14 + $0x128] sm:$0xff]
    %v1928 = vld [vmem:[#allocation14 + $0x130] sm:$0xff]
    %v1929 = vld [vmem:[#allocation14 + $0x138] sm:$0xff]
    %v1930 = vld [vmem:[#allocation14 + $0x140] sm:$0xff]
    %v1931 = vld [vmem:[#allocation14 + $0x148] sm:$0xff]
    %v1932 = vld [vmem:[#allocation14 + $0x150] sm:$0xff]
    %v1933 = vld [vmem:[#allocation14 + $0x158] sm:$0xff]
    %v1934 = vld [vmem:[#allocation14 + $0x160] sm:$0xff]
    %v1935 = vld [vmem:[#allocation14 + $0x168] sm:$0xff]
    %v1936 = vld [vmem:[#allocation14 + $0x170] sm:$0xff]
    %v1937 = vld [vmem:[#allocation14 + $0x178] sm:$0xff]
    %v1938 = vld [vmem:[#allocation14 + $0x180] sm:$0xff]
    %v1939 = vld [vmem:[#allocation14 + $0x188] sm:$0xff]
    %v1940 = vld [vmem:[#allocation14 + $0x190] sm:$0xff]
    %v1941 = vld [vmem:[#allocation14 + $0x198] sm:$0xff]
    %v1942 = vld [vmem:[#allocation14 + $0x1a0] sm:$0xff]
    %v1943 = vld [vmem:[#allocation14 + $0x1a8] sm:$0xff]
    %v1944 = vld [vmem:[#allocation14 + $0x1b0] sm:$0xff]
    %v1945 = vld [vmem:[#allocation14 + $0x1b8] sm:$0xff]
    %v1946 = vld [vmem:[#allocation14 + $0x1c0] sm:$0xff]
    %v1947 = vld [vmem:[#allocation14 + $0x1c8] sm:$0xff]
    %v1948 = vld [vmem:[#allocation14 + $0x1d0] sm:$0xff]
    %v1949 = vld [vmem:[#allocation14 + $0x1d8] sm:$0xff]
    %v1950 = vld [vmem:[#allocation14 + $0x1e0] sm:$0xff]
    %v1951 = vld [vmem:[#allocation14 + $0x1e8] sm:$0xff]
    %v1952 = vld [vmem:[#allocation14 + $0x1f0] sm:$0xff]
    %v1953 = vld [vmem:[#allocation14 + $0x1f8] sm:$0xff]
    %v1954 = vld [vmem:[#allocation14 + $0x200] sm:$0xff]
    %v1955 = vld [vmem:[#allocation14 + $0x208] sm:$0xff]
    %v1956 = vld [vmem:[#allocation14 + $0x210] sm:$0xff]
    %v1957 = vld [vmem:[#allocation14 + $0x218] sm:$0xff]
    %v1958 = vld [vmem:[#allocation14 + $0x220] sm:$0xff]
    %v1959 = vld [vmem:[#allocation14 + $0x228] sm:$0xff]
    %v1960 = vld [vmem:[#allocation14 + $0x230] sm:$0xff]
    %v1961 = vld [vmem:[#allocation14 + $0x238] sm:$0xff]
    %v1962 = vld [vmem:[#allocation14 + $0x240] sm:$0xff]
    %v1963 = vld [vmem:[#allocation14 + $0x248] sm:$0xff]
    %v1964 = vld [vmem:[#allocation14 + $0x250] sm:$0xff]
    %v1965 = vld [vmem:[#allocation14 + $0x258] sm:$0xff]
    %v1966 = vld [vmem:[#allocation14 + $0x260] sm:$0xff]
    %v1967 = vld [vmem:[#allocation14 + $0x268] sm:$0xff]
    %v1968 = vld [vmem:[#allocation14 + $0x270] sm:$0xff]
    %v1969 = vld [vmem:[#allocation14 + $0x278] sm:$0xff]
    %v1970 = vld [vmem:[#allocation14 + $0x280] sm:$0xff]
    %v1971 = vld [vmem:[#allocation14 + $0x288] sm:$0xff]
    %v1972 = vld [vmem:[#allocation14 + $0x290] sm:$0xff]
    %v1973 = vld [vmem:[#allocation14 + $0x298] sm:$0xff]
    %v1974 = vld [vmem:[#allocation14 + $0x2a0] sm:$0xff]
    %v1975 = vld [vmem:[#allocation14 + $0x2a8] sm:$0xff]
    %v1976 = vld [vmem:[#allocation14 + $0x2b0] sm:$0xff]
    %v1977 = vld [vmem:[#allocation14 + $0x2b8] sm:$0xff]
    %v1978 = vld [vmem:[#allocation14 + $0x2c0] sm:$0xff]
    %v1979 = vld [vmem:[#allocation14 + $0x2c8] sm:$0xff]
    %v1980 = vld [vmem:[#allocation14 + $0x2d0] sm:$0xff]
    %v1981 = vld [vmem:[#allocation14 + $0x2d8] sm:$0xff]
    %v1982 = vld [vmem:[#allocation14 + $0x2e0] sm:$0xff]
    %v1983 = vld [vmem:[#allocation14 + $0x2e8] sm:$0xff]
    %v1984 = vld [vmem:[#allocation14 + $0x2f0] sm:$0xff]
    %v1985 = vld [vmem:[#allocation14 + $0x2f8] sm:$0xff]
    %v1986 = vld [vmem:[#allocation14 + $0x300] sm:$0xff]
    %v1987 = vld [vmem:[#allocation14 + $0x308] sm:$0xff]
    %v1988 = vld [vmem:[#allocation14 + $0x310] sm:$0xff]
    %v1989 = vld [vmem:[#allocation14 + $0x318] sm:$0xff]
    %v1990 = vld [vmem:[#allocation14 + $0x320] sm:$0xff]
    %v1991 = vld [vmem:[#allocation14 + $0x328] sm:$0xff]
    %v1992 = vld [vmem:[#allocation14 + $0x330] sm:$0xff]
    %v1993 = vld [vmem:[#allocation14 + $0x338] sm:$0xff]
    %v1994 = vld [vmem:[#allocation14 + $0x340] sm:$0xff]
    %v1995 = vld [vmem:[#allocation14 + $0x348] sm:$0xff]
    %v1996 = vld [vmem:[#allocation14 + $0x350] sm:$0xff]
    %v1997 = vld [vmem:[#allocation14 + $0x358] sm:$0xff]
    %v1998 = vld [vmem:[#allocation14 + $0x360] sm:$0xff]
    %v1999 = vld [vmem:[#allocation14 + $0x368] sm:$0xff]
    %v2000 = vld [vmem:[#allocation14 + $0x370] sm:$0xff]
    %v2001 = vld [vmem:[#allocation14 + $0x378] sm:$0xff]
    %v2002 = vld [vmem:[#allocation14 + $0x380] sm:$0xff]
    %v2003 = vld [vmem:[#allocation14 + $0x388] sm:$0xff]
    %v2004 = vld [vmem:[#allocation14 + $0x390] sm:$0xff]
    %v2005 = vld [vmem:[#allocation14 + $0x398] sm:$0xff]
    %v2006 = vld [vmem:[#allocation14 + $0x3a0] sm:$0xff]
    %v2007 = vld [vmem:[#allocation14 + $0x3a8] sm:$0xff]
    %v2008 = vld [vmem:[#allocation14 + $0x3b0] sm:$0xff]
    %v2009 = vld [vmem:[#allocation14 + $0x3b8] sm:$0xff]
    %v2010 = vld [vmem:[#allocation14 + $0x3c0] sm:$0xff]
    %v2011 = vld [vmem:[#allocation14 + $0x3c8] sm:$0xff]
    %v2012 = vld [vmem:[#allocation14 + $0x3d0] sm:$0xff]
    %v2013 = vld [vmem:[#allocation14 + $0x3d8] sm:$0xff]
    %v2014 = vld [vmem:[#allocation14 + $0x3e0] sm:$0xff]
    %v2015 = vld [vmem:[#allocation14 + $0x3e8] sm:$0xff]
    %v2016 = vld [vmem:[#allocation14 + $0x3f0] sm:$0xff]
    %v2017 = vld [vmem:[#allocation14 + $0x3f8] sm:$0xff]
    %2018 = vmatprep.subr.mxu0 %v1891
    %2019 = vmatpush1.msra.mxu0 %v1890
    %2020 = vmatprep.subr.mxu0 %v1893
    %2021 = vmatpush1.msra.mxu0 %v1892
    %2022 = vmatprep.subr.mxu0 %v1895
    %2023 = vmatpush1.msra.mxu0 %v1894
    %2024 = vmatprep.subr.mxu0 %v1897
    %2025 = vmatpush1.msra.mxu0 %v1896
    %2026 = vmatprep.subr.mxu0 %v1899
    %2027 = vmatpush1.msra.mxu0 %v1898
    %2028 = vmatprep.subr.mxu0 %v1901
    %2029 = vmatpush1.msra.mxu0 %v1900
    %2030 = vmatprep.subr.mxu0 %v1903
    %2031 = vmatpush1.msra.mxu0 %v1902
    %2032 = vmatprep.subr.mxu0 %v1905
    %2033 = vmatpush1.msra.mxu0 %v1904
    %2034 = vmatprep.subr.mxu0 %v1907
    %2035 = vmatpush1.msra.mxu0 %v1906
    %2036 = vmatprep.subr.mxu0 %v1909
    %2037 = vmatpush1.msra.mxu0 %v1908
    %2038 = vmatprep.subr.mxu0 %v1911
    %2039 = vmatpush1.msra.mxu0 %v1910
    %2040 = vmatprep.subr.mxu0 %v1913
    %2041 = vmatpush1.msra.mxu0 %v1912
    %2042 = vmatprep.subr.mxu0 %v1915
    %2043 = vmatpush1.msra.mxu0 %v1914
    %2044 = vmatprep.subr.mxu0 %v1917
    %2045 = vmatpush1.msra.mxu0 %v1916
    %2046 = vmatprep.subr.mxu0 %v1919
    %2047 = vmatpush1.msra.mxu0 %v1918
    %2048 = vmatprep.subr.mxu0 %v1921
    %2049 = vmatpush1.msra.mxu0 %v1920
    %2050 = vmatprep.subr.mxu0 %v1923
    %2051 = vmatpush1.msra.mxu0 %v1922
    %2052 = vmatprep.subr.mxu0 %v1925
    %2053 = vmatpush1.msra.mxu0 %v1924
    %2054 = vmatprep.subr.mxu0 %v1927
    %2055 = vmatpush1.msra.mxu0 %v1926
    %2056 = vmatprep.subr.mxu0 %v1929
    %2057 = vmatpush1.msra.mxu0 %v1928
    %2058 = vmatprep.subr.mxu0 %v1931
    %2059 = vmatpush1.msra.mxu0 %v1930
    %2060 = vmatprep.subr.mxu0 %v1933
    %2061 = vmatpush1.msra.mxu0 %v1932
    %2062 = vmatprep.subr.mxu0 %v1935
    %2063 = vmatpush1.msra.mxu0 %v1934
    %2064 = vmatprep.subr.mxu0 %v1937
    %2065 = vmatpush1.msra.mxu0 %v1936
    %2066 = vmatprep.subr.mxu0 %v1939
    %2067 = vmatpush1.msra.mxu0 %v1938
    %2068 = vmatprep.subr.mxu0 %v1941
    %2069 = vmatpush1.msra.mxu0 %v1940
    %2070 = vmatprep.subr.mxu0 %v1943
    %2071 = vmatpush1.msra.mxu0 %v1942
    %2072 = vmatprep.subr.mxu0 %v1945
    %2073 = vmatpush1.msra.mxu0 %v1944
    %2074 = vmatprep.subr.mxu0 %v1947
    %2075 = vmatpush1.msra.mxu0 %v1946
    %2076 = vmatprep.subr.mxu0 %v1949
    %2077 = vmatpush1.msra.mxu0 %v1948
    %2078 = vmatprep.subr.mxu0 %v1951
    %2079 = vmatpush1.msra.mxu0 %v1950
    %2080 = vmatprep.subr.mxu0 %v1953
    %2081 = vmatpush1.msra.mxu0 %v1952
    %2082 = vmatprep.mubr.f32.mxu0 %v1761
    %2083 = vmatmul.mubr.f32.gmra.mrb[0].mxu0 %v1760
    %v2084 = vpop.f32.mrb[0].mxu0
    %v2085 = vadd.f32 0.0, %v2084
    %v2086 = vpop.f32.mrb[0].mxu0
    %v2087 = vadd.f32 0.0, %v2086
    %2088 = vmatprep.mubr.f32.mxu0 %v1763
    %2089 = vmatmul.mubr.f32.gmra.mrb[0].mxu0 %v1762
    %v2090 = vpop.f32.mrb[0].mxu0
    %v2091 = vadd.f32 0.0, %v2090
    %v2092 = vpop.f32.mrb[0].mxu0
    %v2093 = vadd.f32 0.0, %v2092
    %2094 = vmatprep.mubr.f32.mxu0 %v1765
    %2095 = vmatmul.mubr.f32.gmra.mrb[0].mxu0 %v1764
    %v2096 = vpop.f32.mrb[0].mxu0
    %v2097 = vadd.f32 0.0, %v2096
    %v2098 = vpop.f32.mrb[0].mxu0
    %v2099 = vadd.f32 0.0, %v2098
    %2100 = vmatprep.mubr.f32.mxu0 %v1767
    %2101 = vmatmul.mubr.f32.gmra.mrb[0].mxu0 %v1766
    %v2102 = vpop.f32.mrb[0].mxu0
    %v2103 = vadd.f32 0.0, %v2102
    %v2104 = vpop.f32.mrb[0].mxu0
    %v2105 = vadd.f32 0.0, %v2104
    %2106 = vdwg.mxu0
    %2107 = vmatprep.subr.mxu0 %v1955
    %2108 = vmatpush1.msra.mxu0 %v1954
    %2109 = vmatprep.subr.mxu0 %v1957
    %2110 = vmatpush1.msra.mxu0 %v1956
    %2111 = vmatprep.subr.mxu0 %v1959
    %2112 = vmatpush1.msra.mxu0 %v1958
    %2113 = vmatprep.subr.mxu0 %v1961
    %2114 = vmatpush1.msra.mxu0 %v1960
    %2115 = vmatprep.subr.mxu0 %v1963
    %2116 = vmatpush1.msra.mxu0 %v1962
    %2117 = vmatprep.subr.mxu0 %v1965
    %2118 = vmatpush1.msra.mxu0 %v1964
    %2119 = vmatprep.subr.mxu0 %v1967
    %2120 = vmatpush1.msra.mxu0 %v1966
    %2121 = vmatprep.subr.mxu0 %v1969
    %2122 = vmatpush1.msra.mxu0 %v1968
    %2123 = vmatprep.subr.mxu0 %v1971
    %2124 = vmatpush1.msra.mxu0 %v1970
    %2125 = vmatprep.subr.mxu0 %v1973
    %2126 = vmatpush1.msra.mxu0 %v1972
    %2127 = vmatprep.subr.mxu0 %v1975
    %2128 = vmatpush1.msra.mxu0 %v1974
    %2129 = vmatprep.subr.mxu0 %v1977
    %2130 = vmatpush1.msra.mxu0 %v1976
    %2131 = vmatprep.subr.mxu0 %v1979
    %2132 = vmatpush1.msra.mxu0 %v1978
    %2133 = vmatprep.subr.mxu0 %v1981
    %2134 = vmatpush1.msra.mxu0 %v1980
    %2135 = vmatprep.subr.mxu0 %v1983
    %2136 = vmatpush1.msra.mxu0 %v1982
    %2137 = vmatprep.subr.mxu0 %v1985
    %2138 = vmatpush1.msra.mxu0 %v1984
    %2139 = vmatprep.subr.mxu0 %v1987
    %2140 = vmatpush1.msra.mxu0 %v1986
    %2141 = vmatprep.subr.mxu0 %v1989
    %2142 = vmatpush1.msra.mxu0 %v1988
    %2143 = vmatprep.subr.mxu0 %v1991
    %2144 = vmatpush1.msra.mxu0 %v1990
    %2145 = vmatprep.subr.mxu0 %v1993
    %2146 = vmatpush1.msra.mxu0 %v1992
    %2147 = vmatprep.subr.mxu0 %v1995
    %2148 = vmatpush1.msra.mxu0 %v1994
    %2149 = vmatprep.subr.mxu0 %v1997
    %2150 = vmatpush1.msra.mxu0 %v1996
    %2151 = vmatprep.subr.mxu0 %v1999
    %2152 = vmatpush1.msra.mxu0 %v1998
    %2153 = vmatprep.subr.mxu0 %v2001
    %2154 = vmatpush1.msra.mxu0 %v2000
    %2155 = vmatprep.subr.mxu0 %v2003
    %2156 = vmatpush1.msra.mxu0 %v2002
    %2157 = vmatprep.subr.mxu0 %v2005
    %2158 = vmatpush1.msra.mxu0 %v2004
    %2159 = vmatprep.subr.mxu0 %v2007
    %2160 = vmatpush1.msra.mxu0 %v2006
    %2161 = vmatprep.subr.mxu0 %v2009
    %2162 = vmatpush1.msra.mxu0 %v2008
    %2163 = vmatprep.subr.mxu0 %v2011
    %2164 = vmatpush1.msra.mxu0 %v2010
    %2165 = vmatprep.subr.mxu0 %v2013
    %2166 = vmatpush1.msra.mxu0 %v2012
    %2167 = vmatprep.subr.mxu0 %v2015
    %2168 = vmatpush1.msra.mxu0 %v2014
    %2169 = vmatprep.subr.mxu0 %v2017
    %2170 = vmatpush1.msra.mxu0 %v2016
    %2171 = vmatprep.mubr.f32.mxu0 %v1847
    %2172 = vmatmul.mubr.f32.gmra.mrb[0].mxu0 %v1846
    %v2173 = vpop.f32.mrb[0].mxu0
    %v2174 = vadd.f32 %v2085, %v2173
    %v2175 = vpop.f32.mrb[0].mxu0
    %v2176 = vadd.f32 %v2087, %v2175
    %2177 = vmatprep.mubr.f32.mxu0 %v1849
    %2178 = vmatmul.mubr.f32.gmra.mrb[0].mxu0 %v1848
    %v2179 = vpop.f32.mrb[0].mxu0
    %v2180 = vadd.f32 %v2091, %v2179
    %v2181 = vpop.f32.mrb[0].mxu0
    %v2182 = vadd.f32 %v2093, %v2181
    %2183 = vmatprep.mubr.f32.mxu0 %v1851
    %2184 = vmatmul.mubr.f32.gmra.mrb[0].mxu0 %v1850
    %v2185 = vpop.f32.mrb[0].mxu0
    %v2186 = vadd.f32 %v2097, %v2185
    %v2187 = vpop.f32.mrb[0].mxu0
    %v2188 = vadd.f32 %v2099, %v2187
    %2189 = vmatprep.mubr.f32.mxu0 %v1853
    %2190 = vmatmul.mubr.f32.gmra.mrb[0].mxu0 %v1852
    %v2191 = vpop.f32.mrb[0].mxu0
    %v2192 = vadd.f32 %v2103, %v2191
    %v2193 = vpop.f32.mrb[0].mxu0
    %v2194 = vadd.f32 %v2105, %v2193
    %2195 = vdwg.mxu0
    %v2196 = vld [vmem:[#allocation16] sm:$0xff]
    %v2197 = vld [vmem:[#allocation16 + $0x8] sm:$0xff]
    %v2198 = vld [vmem:[#allocation16 + $0x10] sm:$0xff]
    %v2199 = vld [vmem:[#allocation16 + $0x18] sm:$0xff]
    %v2200 = vld [vmem:[#allocation16 + $0x20] sm:$0xff]
    %v2201 = vld [vmem:[#allocation16 + $0x28] sm:$0xff]
    %v2202 = vld [vmem:[#allocation16 + $0x30] sm:$0xff]
    %v2203 = vld [vmem:[#allocation16 + $0x38] sm:$0xff]
    %v2204 = vld [vmem:[#allocation16 + $0x40] sm:$0xff]
    %v2205 = vld [vmem:[#allocation16 + $0x48] sm:$0xff]
    %v2206 = vld [vmem:[#allocation16 + $0x50] sm:$0xff]
    %v2207 = vld [vmem:[#allocation16 + $0x58] sm:$0xff]
    %v2208 = vld [vmem:[#allocation16 + $0x60] sm:$0xff]
    %v2209 = vld [vmem:[#allocation16 + $0x68] sm:$0xff]
    %v2210 = vld [vmem:[#allocation16 + $0x70] sm:$0xff]
    %v2211 = vld [vmem:[#allocation16 + $0x78] sm:$0xff]
    %v2212 = vld [vmem:[#allocation16 + $0x80] sm:$0xff]
    %v2213 = vld [vmem:[#allocation16 + $0x88] sm:$0xff]
    %v2214 = vld [vmem:[#allocation16 + $0x90] sm:$0xff]
    %v2215 = vld [vmem:[#allocation16 + $0x98] sm:$0xff]
    %v2216 = vld [vmem:[#allocation16 + $0xa0] sm:$0xff]
    %v2217 = vld [vmem:[#allocation16 + $0xa8] sm:$0xff]
    %v2218 = vld [vmem:[#allocation16 + $0xb0] sm:$0xff]
    %v2219 = vld [vmem:[#allocation16 + $0xb8] sm:$0xff]
    %v2220 = vld [vmem:[#allocation16 + $0xc0] sm:$0xff]
    %v2221 = vld [vmem:[#allocation16 + $0xc8] sm:$0xff]
    %v2222 = vld [vmem:[#allocation16 + $0xd0] sm:$0xff]
    %v2223 = vld [vmem:[#allocation16 + $0xd8] sm:$0xff]
    %v2224 = vld [vmem:[#allocation16 + $0xe0] sm:$0xff]
    %v2225 = vld [vmem:[#allocation16 + $0xe8] sm:$0xff]
    %v2226 = vld [vmem:[#allocation16 + $0xf0] sm:$0xff]
    %v2227 = vld [vmem:[#allocation16 + $0xf8] sm:$0xff]
    %v2228 = vld [vmem:[#allocation16 + $0x100] sm:$0xff]
    %v2229 = vld [vmem:[#allocation16 + $0x108] sm:$0xff]
    %v2230 = vld [vmem:[#allocation16 + $0x110] sm:$0xff]
    %v2231 = vld [vmem:[#allocation16 + $0x118] sm:$0xff]
    %v2232 = vld [vmem:[#allocation16 + $0x120] sm:$0xff]
    %v2233 = vld [vmem:[#allocation16 + $0x128] sm:$0xff]
    %v2234 = vld [vmem:[#allocation16 + $0x130] sm:$0xff]
    %v2235 = vld [vmem:[#allocation16 + $0x138] sm:$0xff]
    %v2236 = vld [vmem:[#allocation16 + $0x140] sm:$0xff]
    %v2237 = vld [vmem:[#allocation16 + $0x148] sm:$0xff]
    %v2238 = vld [vmem:[#allocation16 + $0x150] sm:$0xff]
    %v2239 = vld [vmem:[#allocation16 + $0x158] sm:$0xff]
    %v2240 = vld [vmem:[#allocation16 + $0x160] sm:$0xff]
    %v2241 = vld [vmem:[#allocation16 + $0x168] sm:$0xff]
    %v2242 = vld [vmem:[#allocation16 + $0x170] sm:$0xff]
    %v2243 = vld [vmem:[#allocation16 + $0x178] sm:$0xff]
    %v2244 = vld [vmem:[#allocation16 + $0x180] sm:$0xff]
    %v2245 = vld [vmem:[#allocation16 + $0x188] sm:$0xff]
    %v2246 = vld [vmem:[#allocation16 + $0x190] sm:$0xff]
    %v2247 = vld [vmem:[#allocation16 + $0x198] sm:$0xff]
    %v2248 = vld [vmem:[#allocation16 + $0x1a0] sm:$0xff]
    %v2249 = vld [vmem:[#allocation16 + $0x1a8] sm:$0xff]
    %v2250 = vld [vmem:[#allocation16 + $0x1b0] sm:$0xff]
    %v2251 = vld [vmem:[#allocation16 + $0x1b8] sm:$0xff]
    %v2252 = vld [vmem:[#allocation16 + $0x1c0] sm:$0xff]
    %v2253 = vld [vmem:[#allocation16 + $0x1c8] sm:$0xff]
    %v2254 = vld [vmem:[#allocation16 + $0x1d0] sm:$0xff]
    %v2255 = vld [vmem:[#allocation16 + $0x1d8] sm:$0xff]
    %v2256 = vld [vmem:[#allocation16 + $0x1e0] sm:$0xff]
    %v2257 = vld [vmem:[#allocation16 + $0x1e8] sm:$0xff]
    %v2258 = vld [vmem:[#allocation16 + $0x1f0] sm:$0xff]
    %v2259 = vld [vmem:[#allocation16 + $0x1f8] sm:$0xff]
    %v2260 = vld [vmem:[#allocation16 + $0x200] sm:$0xff]
    %v2261 = vld [vmem:[#allocation16 + $0x208] sm:$0xff]
    %v2262 = vld [vmem:[#allocation16 + $0x210] sm:$0xff]
    %v2263 = vld [vmem:[#allocation16 + $0x218] sm:$0xff]
    %v2264 = vld [vmem:[#allocation16 + $0x220] sm:$0xff]
    %v2265 = vld [vmem:[#allocation16 + $0x228] sm:$0xff]
    %v2266 = vld [vmem:[#allocation16 + $0x230] sm:$0xff]
    %v2267 = vld [vmem:[#allocation16 + $0x238] sm:$0xff]
    %v2268 = vld [vmem:[#allocation16 + $0x240] sm:$0xff]
    %v2269 = vld [vmem:[#allocation16 + $0x248] sm:$0xff]
    %v2270 = vld [vmem:[#allocation16 + $0x250] sm:$0xff]
    %v2271 = vld [vmem:[#allocation16 + $0x258] sm:$0xff]
    %v2272 = vld [vmem:[#allocation16 + $0x260] sm:$0xff]
    %v2273 = vld [vmem:[#allocation16 + $0x268] sm:$0xff]
    %v2274 = vld [vmem:[#allocation16 + $0x270] sm:$0xff]
    %v2275 = vld [vmem:[#allocation16 + $0x278] sm:$0xff]
    %v2276 = vld [vmem:[#allocation16 + $0x280] sm:$0xff]
    %v2277 = vld [vmem:[#allocation16 + $0x288] sm:$0xff]
    %v2278 = vld [vmem:[#allocation16 + $0x290] sm:$0xff]
    %v2279 = vld [vmem:[#allocation16 + $0x298] sm:$0xff]
    %v2280 = vld [vmem:[#allocation16 + $0x2a0] sm:$0xff]
    %v2281 = vld [vmem:[#allocation16 + $0x2a8] sm:$0xff]
    %v2282 = vld [vmem:[#allocation16 + $0x2b0] sm:$0xff]
    %v2283 = vld [vmem:[#allocation16 + $0x2b8] sm:$0xff]
    %v2284 = vld [vmem:[#allocation16 + $0x2c0] sm:$0xff]
    %v2285 = vld [vmem:[#allocation16 + $0x2c8] sm:$0xff]
    %v2286 = vld [vmem:[#allocation16 + $0x2d0] sm:$0xff]
    %v2287 = vld [vmem:[#allocation16 + $0x2d8] sm:$0xff]
    %v2288 = vld [vmem:[#allocation16 + $0x2e0] sm:$0xff]
    %v2289 = vld [vmem:[#allocation16 + $0x2e8] sm:$0xff]
    %v2290 = vld [vmem:[#allocation16 + $0x2f0] sm:$0xff]
    %v2291 = vld [vmem:[#allocation16 + $0x2f8] sm:$0xff]
    %v2292 = vld [vmem:[#allocation16 + $0x300] sm:$0xff]
    %v2293 = vld [vmem:[#allocation16 + $0x308] sm:$0xff]
    %v2294 = vld [vmem:[#allocation16 + $0x310] sm:$0xff]
    %v2295 = vld [vmem:[#allocation16 + $0x318] sm:$0xff]
    %v2296 = vld [vmem:[#allocation16 + $0x320] sm:$0xff]
    %v2297 = vld [vmem:[#allocation16 + $0x328] sm:$0xff]
    %v2298 = vld [vmem:[#allocation16 + $0x330] sm:$0xff]
    %v2299 = vld [vmem:[#allocation16 + $0x338] sm:$0xff]
    %v2300 = vld [vmem:[#allocation16 + $0x340] sm:$0xff]
    %v2301 = vld [vmem:[#allocation16 + $0x348] sm:$0xff]
    %v2302 = vld [vmem:[#allocation16 + $0x350] sm:$0xff]
    %v2303 = vld [vmem:[#allocation16 + $0x358] sm:$0xff]
    %v2304 = vld [vmem:[#allocation16 + $0x360] sm:$0xff]
    %v2305 = vld [vmem:[#allocation16 + $0x368] sm:$0xff]
    %v2306 = vld [vmem:[#allocation16 + $0x370] sm:$0xff]
    %v2307 = vld [vmem:[#allocation16 + $0x378] sm:$0xff]
    %v2308 = vld [vmem:[#allocation16 + $0x380] sm:$0xff]
    %v2309 = vld [vmem:[#allocation16 + $0x388] sm:$0xff]
    %v2310 = vld [vmem:[#allocation16 + $0x390] sm:$0xff]
    %v2311 = vld [vmem:[#allocation16 + $0x398] sm:$0xff]
    %v2312 = vld [vmem:[#allocation16 + $0x3a0] sm:$0xff]
    %v2313 = vld [vmem:[#allocation16 + $0x3a8] sm:$0xff]
    %v2314 = vld [vmem:[#allocation16 + $0x3b0] sm:$0xff]
    %v2315 = vld [vmem:[#allocation16 + $0x3b8] sm:$0xff]
    %v2316 = vld [vmem:[#allocation16 + $0x3c0] sm:$0xff]
    %v2317 = vld [vmem:[#allocation16 + $0x3c8] sm:$0xff]
    %v2318 = vld [vmem:[#allocation16 + $0x3d0] sm:$0xff]
    %v2319 = vld [vmem:[#allocation16 + $0x3d8] sm:$0xff]
    %v2320 = vld [vmem:[#allocation16 + $0x3e0] sm:$0xff]
    %v2321 = vld [vmem:[#allocation16 + $0x3e8] sm:$0xff]
    %v2322 = vld [vmem:[#allocation16 + $0x3f0] sm:$0xff]
    %v2323 = vld [vmem:[#allocation16 + $0x3f8] sm:$0xff]
    %2324 = vmatprep.subr.mxu0 %v2197
    %2325 = vmatpush1.msra.mxu0 %v2196
    %2326 = vmatprep.subr.mxu0 %v2199
    %2327 = vmatpush1.msra.mxu0 %v2198
    %2328 = vmatprep.subr.mxu0 %v2201
    %2329 = vmatpush1.msra.mxu0 %v2200
    %2330 = vmatprep.subr.mxu0 %v2203
    %2331 = vmatpush1.msra.mxu0 %v2202
    %2332 = vmatprep.subr.mxu0 %v2205
    %2333 = vmatpush1.msra.mxu0 %v2204
    %2334 = vmatprep.subr.mxu0 %v2207
    %2335 = vmatpush1.msra.mxu0 %v2206
    %2336 = vmatprep.subr.mxu0 %v2209
    %2337 = vmatpush1.msra.mxu0 %v2208
    %2338 = vmatprep.subr.mxu0 %v2211
    %2339 = vmatpush1.msra.mxu0 %v2210
    %2340 = vmatprep.subr.mxu0 %v2213
    %2341 = vmatpush1.msra.mxu0 %v2212
    %2342 = vmatprep.subr.mxu0 %v2215
    %2343 = vmatpush1.msra.mxu0 %v2214
    %2344 = vmatprep.subr.mxu0 %v2217
    %2345 = vmatpush1.msra.mxu0 %v2216
    %2346 = vmatprep.subr.mxu0 %v2219
    %2347 = vmatpush1.msra.mxu0 %v2218
    %2348 = vmatprep.subr.mxu0 %v2221
    %2349 = vmatpush1.msra.mxu0 %v2220
    %2350 = vmatprep.subr.mxu0 %v2223
    %2351 = vmatpush1.msra.mxu0 %v2222
    %2352 = vmatprep.subr.mxu0 %v2225
    %2353 = vmatpush1.msra.mxu0 %v2224
    %2354 = vmatprep.subr.mxu0 %v2227
    %2355 = vmatpush1.msra.mxu0 %v2226
    %2356 = vmatprep.subr.mxu0 %v2229
    %2357 = vmatpush1.msra.mxu0 %v2228
    %2358 = vmatprep.subr.mxu0 %v2231
    %2359 = vmatpush1.msra.mxu0 %v2230
    %2360 = vmatprep.subr.mxu0 %v2233
    %2361 = vmatpush1.msra.mxu0 %v2232
    %2362 = vmatprep.subr.mxu0 %v2235
    %2363 = vmatpush1.msra.mxu0 %v2234
    %2364 = vmatprep.subr.mxu0 %v2237
    %2365 = vmatpush1.msra.mxu0 %v2236
    %2366 = vmatprep.subr.mxu0 %v2239
    %2367 = vmatpush1.msra.mxu0 %v2238
    %2368 = vmatprep.subr.mxu0 %v2241
    %2369 = vmatpush1.msra.mxu0 %v2240
    %2370 = vmatprep.subr.mxu0 %v2243
    %2371 = vmatpush1.msra.mxu0 %v2242
    %2372 = vmatprep.subr.mxu0 %v2245
    %2373 = vmatpush1.msra.mxu0 %v2244
    %2374 = vmatprep.subr.mxu0 %v2247
    %2375 = vmatpush1.msra.mxu0 %v2246
    %2376 = vmatprep.subr.mxu0 %v2249
    %2377 = vmatpush1.msra.mxu0 %v2248
    %2378 = vmatprep.subr.mxu0 %v2251
    %2379 = vmatpush1.msra.mxu0 %v2250
    %2380 = vmatprep.subr.mxu0 %v2253
    %2381 = vmatpush1.msra.mxu0 %v2252
    %2382 = vmatprep.subr.mxu0 %v2255
    %2383 = vmatpush1.msra.mxu0 %v2254
    %2384 = vmatprep.subr.mxu0 %v2257
    %2385 = vmatpush1.msra.mxu0 %v2256
    %2386 = vmatprep.subr.mxu0 %v2259
    %2387 = vmatpush1.msra.mxu0 %v2258
    %2388 = vmatprep.mubr.f32.mxu0 %v1883
    %2389 = vmatmul.mubr.f32.gmra.mrb[0].mxu0 %v1882
    %v2390 = vpop.f32.mrb[0].mxu0
    %v2391 = vadd.f32 0.0, %v2390
    %v2392 = vpop.f32.mrb[0].mxu0
    %v2393 = vadd.f32 0.0, %v2392
    %2394 = vmatprep.mubr.f32.mxu0 %v1885
    %2395 = vmatmul.mubr.f32.gmra.mrb[0].mxu0 %v1884
    %v2396 = vpop.f32.mrb[0].mxu0
    %v2397 = vadd.f32 0.0, %v2396
    %v2398 = vpop.f32.mrb[0].mxu0
    %v2399 = vadd.f32 0.0, %v2398
    %2400 = vmatprep.mubr.f32.mxu0 %v1887
    %2401 = vmatmul.mubr.f32.gmra.mrb[0].mxu0 %v1886
    %v2402 = vpop.f32.mrb[0].mxu0
    %v2403 = vadd.f32 0.0, %v2402
    %v2404 = vpop.f32.mrb[0].mxu0
    %v2405 = vadd.f32 0.0, %v2404
    %2406 = vmatprep.mubr.f32.mxu0 %v1889
    %2407 = vmatmul.mubr.f32.gmra.mrb[0].mxu0 %v1888
    %v2408 = vpop.f32.mrb[0].mxu0
    %v2409 = vadd.f32 0.0, %v2408
    %v2410 = vpop.f32.mrb[0].mxu0
    %v2411 = vadd.f32 0.0, %v2410
    %2412 = vdwg.mxu0
    %2413 = vmatprep.subr.mxu0 %v2261
    %2414 = vmatpush1.msra.mxu0 %v2260
    %2415 = vmatprep.subr.mxu0 %v2263
    %2416 = vmatpush1.msra.mxu0 %v2262
    %2417 = vmatprep.subr.mxu0 %v2265
    %2418 = vmatpush1.msra.mxu0 %v2264
    %2419 = vmatprep.subr.mxu0 %v2267
    %2420 = vmatpush1.msra.mxu0 %v2266
    %2421 = vmatprep.subr.mxu0 %v2269
    %2422 = vmatpush1.msra.mxu0 %v2268
    %2423 = vmatprep.subr.mxu0 %v2271
    %2424 = vmatpush1.msra.mxu0 %v2270
    %2425 = vmatprep.subr.mxu0 %v2273
    %2426 = vmatpush1.msra.mxu0 %v2272
    %2427 = vmatprep.subr.mxu0 %v2275
    %2428 = vmatpush1.msra.mxu0 %v2274
    %2429 = vmatprep.subr.mxu0 %v2277
    %2430 = vmatpush1.msra.mxu0 %v2276
    %2431 = vmatprep.subr.mxu0 %v2279
    %2432 = vmatpush1.msra.mxu0 %v2278
    %2433 = vmatprep.subr.mxu0 %v2281
    %2434 = vmatpush1.msra.mxu0 %v2280
    %2435 = vmatprep.subr.mxu0 %v2283
    %2436 = vmatpush1.msra.mxu0 %v2282
    %2437 = vmatprep.subr.mxu0 %v2285
    %2438 = vmatpush1.msra.mxu0 %v2284
    %2439 = vmatprep.subr.mxu0 %v2287
    %2440 = vmatpush1.msra.mxu0 %v2286
    %2441 = vmatprep.subr.mxu0 %v2289
    %2442 = vmatpush1.msra.mxu0 %v2288
    %2443 = vmatprep.subr.mxu0 %v2291
    %2444 = vmatpush1.msra.mxu0 %v2290
    %2445 = vmatprep.subr.mxu0 %v2293
    %2446 = vmatpush1.msra.mxu0 %v2292
    %2447 = vmatprep.subr.mxu0 %v2295
    %2448 = vmatpush1.msra.mxu0 %v2294
    %2449 = vmatprep.subr.mxu0 %v2297
    %2450 = vmatpush1.msra.mxu0 %v2296
    %2451 = vmatprep.subr.mxu0 %v2299
    %2452 = vmatpush1.msra.mxu0 %v2298
    %2453 = vmatprep.subr.mxu0 %v2301
    %2454 = vmatpush1.msra.mxu0 %v2300
    %2455 = vmatprep.subr.mxu0 %v2303
    %2456 = vmatpush1.msra.mxu0 %v2302
    %2457 = vmatprep.subr.mxu0 %v2305
    %2458 = vmatpush1.msra.mxu0 %v2304
    %2459 = vmatprep.subr.mxu0 %v2307
    %2460 = vmatpush1.msra.mxu0 %v2306
    %2461 = vmatprep.subr.mxu0 %v2309
    %2462 = vmatpush1.msra.mxu0 %v2308
    %2463 = vmatprep.subr.mxu0 %v2311
    %2464 = vmatpush1.msra.mxu0 %v2310
    %2465 = vmatprep.subr.mxu0 %v2313
    %2466 = vmatpush1.msra.mxu0 %v2312
    %2467 = vmatprep.subr.mxu0 %v2315
    %2468 = vmatpush1.msra.mxu0 %v2314
    %2469 = vmatprep.subr.mxu0 %v2317
    %2470 = vmatpush1.msra.mxu0 %v2316
    %2471 = vmatprep.subr.mxu0 %v2319
    %2472 = vmatpush1.msra.mxu0 %v2318
    %2473 = vmatprep.subr.mxu0 %v2321
    %2474 = vmatpush1.msra.mxu0 %v2320
    %2475 = vmatprep.subr.mxu0 %v2323
    %2476 = vmatpush1.msra.mxu0 %v2322
    %2477 = vmatprep.mubr.f32.mxu0 %v1761
    %2478 = vmatmul.mubr.f32.gmra.mrb[0].mxu0 %v1760
    %v2479 = vpop.f32.mrb[0].mxu0
    %v2480 = vadd.f32 %v2391, %v2479
    %v2481 = vpop.f32.mrb[0].mxu0
    %v2482 = vadd.f32 %v2393, %v2481
    %2483 = vmatprep.mubr.f32.mxu0 %v1763
    %2484 = vmatmul.mubr.f32.gmra.mrb[0].mxu0 %v1762
    %v2485 = vpop.f32.mrb[0].mxu0
    %v2486 = vadd.f32 %v2397, %v2485
    %v2487 = vpop.f32.mrb[0].mxu0
    %v2488 = vadd.f32 %v2399, %v2487
    %2489 = vmatprep.mubr.f32.mxu0 %v1765
    %2490 = vmatmul.mubr.f32.gmra.mrb[0].mxu0 %v1764
    %v2491 = vpop.f32.mrb[0].mxu0
    %v2492 = vadd.f32 %v2403, %v2491
    %v2493 = vpop.f32.mrb[0].mxu0
    %v2494 = vadd.f32 %v2405, %v2493
    %2495 = vmatprep.mubr.f32.mxu0 %v1767
    %2496 = vmatmul.mubr.f32.gmra.mrb[0].mxu0 %v1766
    %v2497 = vpop.f32.mrb[0].mxu0
    %v2498 = vadd.f32 %v2409, %v2497
    %v2499 = vpop.f32.mrb[0].mxu0
    %v2500 = vadd.f32 %v2411, %v2499
    %2501 = vdwg.mxu0
    %v2502 = vld [vmem:[#allocation17] sm:$0xff]
    %v2503 = vld [vmem:[#allocation17 + $0x8] sm:$0xff]
    %v2504 = vld [vmem:[#allocation17 + $0x10] sm:$0xff]
    %v2505 = vld [vmem:[#allocation17 + $0x18] sm:$0xff]
    %v2506 = vld [vmem:[#allocation17 + $0x20] sm:$0xff]
    %v2507 = vld [vmem:[#allocation17 + $0x28] sm:$0xff]
    %v2508 = vld [vmem:[#allocation17 + $0x30] sm:$0xff]
    %v2509 = vld [vmem:[#allocation17 + $0x38] sm:$0xff]
    %vm2510 = vcmask 523264
    %v2512 = vsel %vm2510, %v2502, 0
    %v2515 = vsel %vm2510, %v2503, 0
    %v2518 = vsel %vm2510, %v2504, 0
    %v2521 = vsel %vm2510, %v2505, 0
    %v2524 = vsel %vm2510, %v2506, 0
    %v2527 = vsel %vm2510, %v2507, 0
    %v2530 = vsel %vm2510, %v2508, 0
    %v2533 = vsel %vm2510, %v2509, 0
    %2535 = vmatprep.subr.mxu0 %v2176
    %2536 = vmatpush1.msra.mxu0 %v2174
    %2537 = vmatprep.subr.mxu0 %v2182
    %2538 = vmatpush1.msra.mxu0 %v2180
    %2539 = vmatprep.subr.mxu0 %v2188
    %2540 = vmatpush1.msra.mxu0 %v2186
    %2541 = vmatprep.subr.mxu0 %v2194
    %2542 = vmatpush1.msra.mxu0 %v2192
    %2543 = vmatprep.subr.mxu0 %v2482
    %2544 = vmatpush1.msra.mxu0 %v2480
    %2545 = vmatprep.subr.mxu0 %v2488
    %2546 = vmatpush1.msra.mxu0 %v2486
    %2547 = vmatprep.subr.mxu0 %v2494
    %2548 = vmatpush1.msra.mxu0 %v2492
    %2549 = vmatprep.subr.mxu0 %v2500
    %2550 = vmatpush1.msra.mxu0 %v2498
    %2551 = vmatprep.subr.mxu0 0.0
    %2552 = vmatpush1.msra.mxu0 0.0
    %2553 = vmatprep.subr.mxu0 0.0
    %2554 = vmatpush1.msra.mxu0 0.0
    %2555 = vmatprep.subr.mxu0 0.0
    %2556 = vmatpush1.msra.mxu0 0.0
    %2557 = vmatprep.subr.mxu0 0.0
    %2558 = vmatpush1.msra.mxu0 0.0
    %2559 = vmatprep.subr.mxu0 0.0
    %2560 = vmatpush1.msra.mxu0 0.0
    %2561 = vmatprep.subr.mxu0 0.0
    %2562 = vmatpush1.msra.mxu0 0.0
    %2563 = vmatprep.subr.mxu0 0.0
    %2564 = vmatpush1.msra.mxu0 0.0
    %2565 = vmatprep.subr.mxu0 0.0
    %2566 = vmatpush1.msra.mxu0 0.0
    %2567 = vmatprep.subr.mxu0 0.0
    %2568 = vmatpush1.msra.mxu0 0.0
    %2569 = vmatprep.subr.mxu0 0.0
    %2570 = vmatpush1.msra.mxu0 0.0
    %2571 = vmatprep.subr.mxu0 0.0
    %2572 = vmatpush1.msra.mxu0 0.0
    %2573 = vmatprep.subr.mxu0 0.0
    %2574 = vmatpush1.msra.mxu0 0.0
    %2575 = vmatprep.subr.mxu0 0.0
    %2576 = vmatpush1.msra.mxu0 0.0
    %2577 = vmatprep.subr.mxu0 0.0
    %2578 = vmatpush1.msra.mxu0 0.0
    %2579 = vmatprep.subr.mxu0 0.0
    %2580 = vmatpush1.msra.mxu0 0.0
    %2581 = vmatprep.subr.mxu0 0.0
    %2582 = vmatpush1.msra.mxu0 0.0
    %2583 = vmatprep.subr.mxu0 0.0
    %2584 = vmatpush1.msra.mxu0 0.0
    %2585 = vmatprep.subr.mxu0 0.0
    %2586 = vmatpush1.msra.mxu0 0.0
    %2587 = vmatprep.subr.mxu0 0.0
    %2588 = vmatpush1.msra.mxu0 0.0
    %2589 = vmatprep.subr.mxu0 0.0
    %2590 = vmatpush1.msra.mxu0 0.0
    %2591 = vmatprep.subr.mxu0 0.0
    %2592 = vmatpush1.msra.mxu0 0.0
    %2593 = vmatprep.subr.mxu0 0.0
    %2594 = vmatpush1.msra.mxu0 0.0
    %2595 = vmatprep.subr.mxu0 0.0
    %2596 = vmatpush1.msra.mxu0 0.0
    %2597 = vmatprep.subr.mxu0 0.0
    %2598 = vmatpush1.msra.mxu0 0.0
    %2599 = vmatprep.mubr.f32.mxu0 0.0
    %2600 = vmatmul.mubr.f32.gmra.mrb[0].mxu0 %v2512
    %v2601 = vpop.f32.mrb[0].mxu0
    %v2602 = vadd.f32 0.0, %v2601
    %v2603 = vpop.f32.mrb[0].mxu0
    %v2604 = vadd.f32 0.0, %v2603
    %2605 = vmatprep.mubr.f32.mxu0 0.0
    %2606 = vmatmul.mubr.f32.gmra.mrb[0].mxu0 %v2515
    %v2607 = vpop.f32.mrb[0].mxu0
    %v2608 = vadd.f32 0.0, %v2607
    %v2609 = vpop.f32.mrb[0].mxu0
    %v2610 = vadd.f32 0.0, %v2609
    %2611 = vmatprep.mubr.f32.mxu0 0.0
    %2612 = vmatmul.mubr.f32.gmra.mrb[0].mxu0 %v2518
    %v2613 = vpop.f32.mrb[0].mxu0
    %v2614 = vadd.f32 0.0, %v2613
    %v2615 = vpop.f32.mrb[0].mxu0
    %v2616 = vadd.f32 0.0, %v2615
    %2617 = vmatprep.mubr.f32.mxu0 0.0
    %2618 = vmatmul.mubr.f32.gmra.mrb[0].mxu0 %v2521
    %v2619 = vpop.f32.mrb[0].mxu0
    %v2620 = vadd.f32 0.0, %v2619
    %v2621 = vpop.f32.mrb[0].mxu0
    %v2622 = vadd.f32 0.0, %v2621
    %2623 = vmatprep.mubr.f32.mxu0 0.0
    %2624 = vmatmul.mubr.f32.gmra.mrb[0].mxu0 %v2524
    %v2625 = vpop.f32.mrb[0].mxu0
    %v2626 = vadd.f32 0.0, %v2625
    %v2627 = vpop.f32.mrb[0].mxu0
    %v2628 = vadd.f32 0.0, %v2627
    %2629 = vmatprep.mubr.f32.mxu0 0.0
    %2630 = vmatmul.mubr.f32.gmra.mrb[0].mxu0 %v2527
    %v2631 = vpop.f32.mrb[0].mxu0
    %v2632 = vadd.f32 0.0, %v2631
    %v2633 = vpop.f32.mrb[0].mxu0
    %v2634 = vadd.f32 0.0, %v2633
    %2635 = vmatprep.mubr.f32.mxu0 0.0
    %2636 = vmatmul.mubr.f32.gmra.mrb[0].mxu0 %v2530
    %v2637 = vpop.f32.mrb[0].mxu0
    %v2638 = vadd.f32 0.0, %v2637
    %v2639 = vpop.f32.mrb[0].mxu0
    %v2640 = vadd.f32 0.0, %v2639
    %2641 = vmatprep.mubr.f32.mxu0 0.0
    %2642 = vmatmul.mubr.f32.gmra.mrb[0].mxu0 %v2533
    %v2643 = vpop.f32.mrb[0].mxu0
    %v2644 = vadd.f32 0.0, %v2643
    %v2645 = vpop.f32.mrb[0].mxu0
    %v2646 = vadd.f32 0.0, %v2645
    %2647 = vdwg.mxu0
    %v2648 = vadd.f32 %v2602, %v2608
    %v2649 = vadd.f32 %v2648, %v2614
    %v2650 = vadd.f32 %v2649, %v2620
    %v2651 = vadd.f32 %v2650, %v2626
    %v2652 = vadd.f32 %v2651, %v2632
    %v2653 = vadd.f32 %v2652, %v2638
    %v2654 = vadd.f32 %v2653, %v2644
    %v2655 = vrot.slane %v2654, 4
    %v2656 = vadd.f32 %v2654, %v2655
    %v2657 = vrot.slane %v2656, 2
    %v2658 = vadd.f32 %v2656, %v2657
    %v2659 = vrot.slane %v2658, 1
    %v2660 = vadd.f32 %v2658, %v2659
    %v2661 = vadd.f32 %v2604, %v2610
    %v2662 = vadd.f32 %v2661, %v2616
    %v2663 = vadd.f32 %v2662, %v2622
    %v2664 = vadd.f32 %v2663, %v2628
    %v2665 = vadd.f32 %v2664, %v2634
    %v2666 = vadd.f32 %v2665, %v2640
    %v2667 = vadd.f32 %v2666, %v2646
    %v2668 = vrot.slane %v2667, 4
    %v2669 = vadd.f32 %v2667, %v2668
    %v2670 = vrot.slane %v2669, 2
    %v2671 = vadd.f32 %v2669, %v2670
    %v2672 = vrot.slane %v2671, 1
    %v2673 = vadd.f32 %v2671, %v2672
    %v2674 = vmul.f32 %v2602, %v2602
    %v2675 = vmul.f32 %v2604, %v2604
    %v2676 = vmul.f32 %v2608, %v2608
    %v2677 = vmul.f32 %v2610, %v2610
    %v2678 = vmul.f32 %v2614, %v2614
    %v2679 = vmul.f32 %v2616, %v2616
    %v2680 = vmul.f32 %v2620, %v2620
    %v2681 = vmul.f32 %v2622, %v2622
    %v2682 = vmul.f32 %v2626, %v2626
    %v2683 = vmul.f32 %v2628, %v2628
    %v2684 = vmul.f32 %v2632, %v2632
    %v2685 = vmul.f32 %v2634, %v2634
    %v2686 = vmul.f32 %v2638, %v2638
    %v2687 = vmul.f32 %v2640, %v2640
    %v2688 = vmul.f32 %v2644, %v2644
    %v2689 = vmul.f32 %v2646, %v2646
    %v2690 = vadd.f32 %v2674, %v2676
    %v2691 = vadd.f32 %v2690, %v2678
    %v2692 = vadd.f32 %v2691, %v2680
    %v2693 = vadd.f32 %v2692, %v2682
    %v2694 = vadd.f32 %v2693, %v2684
    %v2695 = vadd.f32 %v2694, %v2686
    %v2696 = vadd.f32 %v2695, %v2688
    %v2697 = vrot.slane %v2696, 4
    %v2698 = vadd.f32 %v2696, %v2697
    %v2699 = vrot.slane %v2698, 2
    %v2700 = vadd.f32 %v2698, %v2699
    %v2701 = vrot.slane %v2700, 1
    %v2702 = vadd.f32 %v2700, %v2701
    %v2703 = vadd.f32 %v2675, %v2677
    %v2704 = vadd.f32 %v2703, %v2679
    %v2705 = vadd.f32 %v2704, %v2681
    %v2706 = vadd.f32 %v2705, %v2683
    %v2707 = vadd.f32 %v2706, %v2685
    %v2708 = vadd.f32 %v2707, %v2687
    %v2709 = vadd.f32 %v2708, %v2689
    %v2710 = vrot.slane %v2709, 4
    %v2711 = vadd.f32 %v2709, %v2710
    %v2712 = vrot.slane %v2711, 2
    %v2713 = vadd.f32 %v2711, %v2712
    %v2714 = vrot.slane %v2713, 1
    %v2715 = vadd.f32 %v2713, %v2714
    %v2716 = vld [vmem:[#allocation19] sm:$0xff]
    %v2717 = vld [vmem:[#allocation19 + $0x8] sm:$0xff]
    %v2718 = vld [vmem:[#allocation19 + $0x10] sm:$0xff]
    %v2719 = vld [vmem:[#allocation19 + $0x18] sm:$0xff]
    %v2720 = vld [vmem:[#allocation19 + $0x20] sm:$0xff]
    %v2721 = vld [vmem:[#allocation19 + $0x28] sm:$0xff]
    %v2722 = vld [vmem:[#allocation19 + $0x30] sm:$0xff]
    %v2723 = vld [vmem:[#allocation19 + $0x38] sm:$0xff]
    %v2724 = vld [vmem:[#allocation19 + $0x40] sm:$0xff]
    %v2725 = vld [vmem:[#allocation19 + $0x48] sm:$0xff]
    %v2726 = vld [vmem:[#allocation19 + $0x50] sm:$0xff]
    %v2727 = vld [vmem:[#allocation19 + $0x58] sm:$0xff]
    %v2728 = vld [vmem:[#allocation19 + $0x60] sm:$0xff]
    %v2729 = vld [vmem:[#allocation19 + $0x68] sm:$0xff]
    %v2730 = vld [vmem:[#allocation19 + $0x70] sm:$0xff]
    %v2731 = vld [vmem:[#allocation19 + $0x78] sm:$0xff]
    %v2732 = vld [vmem:[#allocation19 + $0x80] sm:$0xff]
    %v2733 = vld [vmem:[#allocation19 + $0x88] sm:$0xff]
    %v2734 = vld [vmem:[#allocation19 + $0x90] sm:$0xff]
    %v2735 = vld [vmem:[#allocation19 + $0x98] sm:$0xff]
    %v2736 = vld [vmem:[#allocation19 + $0xa0] sm:$0xff]
    %v2737 = vld [vmem:[#allocation19 + $0xa8] sm:$0xff]
    %v2738 = vld [vmem:[#allocation19 + $0xb0] sm:$0xff]
    %v2739 = vld [vmem:[#allocation19 + $0xb8] sm:$0xff]
    %v2740 = vld [vmem:[#allocation19 + $0xc0] sm:$0xff]
    %v2741 = vld [vmem:[#allocation19 + $0xc8] sm:$0xff]
    %v2742 = vld [vmem:[#allocation19 + $0xd0] sm:$0xff]
    %v2743 = vld [vmem:[#allocation19 + $0xd8] sm:$0xff]
    %v2744 = vld [vmem:[#allocation19 + $0xe0] sm:$0xff]
    %v2745 = vld [vmem:[#allocation19 + $0xe8] sm:$0xff]
    %v2746 = vld [vmem:[#allocation19 + $0xf0] sm:$0xff]
    %v2747 = vld [vmem:[#allocation19 + $0xf8] sm:$0xff]
    %v2748 = vld [vmem:[#allocation19 + $0x100] sm:$0xff]
    %v2749 = vld [vmem:[#allocation19 + $0x108] sm:$0xff]
    %v2750 = vld [vmem:[#allocation19 + $0x110] sm:$0xff]
    %v2751 = vld [vmem:[#allocation19 + $0x118] sm:$0xff]
    %v2752 = vld [vmem:[#allocation19 + $0x120] sm:$0xff]
    %v2753 = vld [vmem:[#allocation19 + $0x128] sm:$0xff]
    %v2754 = vld [vmem:[#allocation19 + $0x130] sm:$0xff]
    %v2755 = vld [vmem:[#allocation19 + $0x138] sm:$0xff]
    %v2756 = vld [vmem:[#allocation19 + $0x140] sm:$0xff]
    %v2757 = vld [vmem:[#allocation19 + $0x148] sm:$0xff]
    %v2758 = vld [vmem:[#allocation19 + $0x150] sm:$0xff]
    %v2759 = vld [vmem:[#allocation19 + $0x158] sm:$0xff]
    %v2760 = vld [vmem:[#allocation19 + $0x160] sm:$0xff]
    %v2761 = vld [vmem:[#allocation19 + $0x168] sm:$0xff]
    %v2762 = vld [vmem:[#allocation19 + $0x170] sm:$0xff]
    %v2763 = vld [vmem:[#allocation19 + $0x178] sm:$0xff]
    %v2764 = vld [vmem:[#allocation19 + $0x180] sm:$0xff]
    %v2765 = vld [vmem:[#allocation19 + $0x188] sm:$0xff]
    %v2766 = vld [vmem:[#allocation19 + $0x190] sm:$0xff]
    %v2767 = vld [vmem:[#allocation19 + $0x198] sm:$0xff]
    %v2768 = vld [vmem:[#allocation19 + $0x1a0] sm:$0xff]
    %v2769 = vld [vmem:[#allocation19 + $0x1a8] sm:$0xff]
    %v2770 = vld [vmem:[#allocation19 + $0x1b0] sm:$0xff]
    %v2771 = vld [vmem:[#allocation19 + $0x1b8] sm:$0xff]
    %v2772 = vld [vmem:[#allocation19 + $0x1c0] sm:$0xff]
    %v2773 = vld [vmem:[#allocation19 + $0x1c8] sm:$0xff]
    %v2774 = vld [vmem:[#allocation19 + $0x1d0] sm:$0xff]
    %v2775 = vld [vmem:[#allocation19 + $0x1d8] sm:$0xff]
    %v2776 = vld [vmem:[#allocation19 + $0x1e0] sm:$0xff]
    %v2777 = vld [vmem:[#allocation19 + $0x1e8] sm:$0xff]
    %v2778 = vld [vmem:[#allocation19 + $0x1f0] sm:$0xff]
    %v2779 = vld [vmem:[#allocation19 + $0x1f8] sm:$0xff]
    %2780 = vmatprep.subr.mxu0 %v2717
    %2781 = vmatpush1.msra.mxu0 %v2716
    %2782 = vmatprep.subr.mxu0 %v2719
    %2783 = vmatpush1.msra.mxu0 %v2718
    %2784 = vmatprep.subr.mxu0 %v2721
    %2785 = vmatpush1.msra.mxu0 %v2720
    %2786 = vmatprep.subr.mxu0 %v2723
    %2787 = vmatpush1.msra.mxu0 %v2722
    %2788 = vmatprep.subr.mxu0 %v2725
    %2789 = vmatpush1.msra.mxu0 %v2724
    %2790 = vmatprep.subr.mxu0 %v2727
    %2791 = vmatpush1.msra.mxu0 %v2726
    %2792 = vmatprep.subr.mxu0 %v2729
    %2793 = vmatpush1.msra.mxu0 %v2728
    %2794 = vmatprep.subr.mxu0 %v2731
    %2795 = vmatpush1.msra.mxu0 %v2730
    %2796 = vmatprep.subr.mxu0 %v2733
    %2797 = vmatpush1.msra.mxu0 %v2732
    %2798 = vmatprep.subr.mxu0 %v2735
    %2799 = vmatpush1.msra.mxu0 %v2734
    %2800 = vmatprep.subr.mxu0 %v2737
    %2801 = vmatpush1.msra.mxu0 %v2736
    %2802 = vmatprep.subr.mxu0 %v2739
    %2803 = vmatpush1.msra.mxu0 %v2738
    %2804 = vmatprep.subr.mxu0 %v2741
    %2805 = vmatpush1.msra.mxu0 %v2740
    %2806 = vmatprep.subr.mxu0 %v2743
    %2807 = vmatpush1.msra.mxu0 %v2742
    %2808 = vmatprep.subr.mxu0 %v2745
    %2809 = vmatpush1.msra.mxu0 %v2744
    %2810 = vmatprep.subr.mxu0 %v2747
    %2811 = vmatpush1.msra.mxu0 %v2746
    %2812 = vmatprep.subr.mxu0 %v2749
    %2813 = vmatpush1.msra.mxu0 %v2748
    %2814 = vmatprep.subr.mxu0 %v2751
    %2815 = vmatpush1.msra.mxu0 %v2750
    %2816 = vmatprep.subr.mxu0 %v2753
    %2817 = vmatpush1.msra.mxu0 %v2752
    %2818 = vmatprep.subr.mxu0 %v2755
    %2819 = vmatpush1.msra.mxu0 %v2754
    %2820 = vmatprep.subr.mxu0 %v2757
    %2821 = vmatpush1.msra.mxu0 %v2756
    %2822 = vmatprep.subr.mxu0 %v2759
    %2823 = vmatpush1.msra.mxu0 %v2758
    %2824 = vmatprep.subr.mxu0 %v2761
    %2825 = vmatpush1.msra.mxu0 %v2760
    %2826 = vmatprep.subr.mxu0 %v2763
    %2827 = vmatpush1.msra.mxu0 %v2762
    %2828 = vmatprep.subr.mxu0 %v2765
    %2829 = vmatpush1.msra.mxu0 %v2764
    %2830 = vmatprep.subr.mxu0 %v2767
    %2831 = vmatpush1.msra.mxu0 %v2766
    %2832 = vmatprep.subr.mxu0 %v2769
    %2833 = vmatpush1.msra.mxu0 %v2768
    %2834 = vmatprep.subr.mxu0 %v2771
    %2835 = vmatpush1.msra.mxu0 %v2770
    %2836 = vmatprep.subr.mxu0 %v2773
    %2837 = vmatpush1.msra.mxu0 %v2772
    %2838 = vmatprep.subr.mxu0 %v2775
    %2839 = vmatpush1.msra.mxu0 %v2774
    %2840 = vmatprep.subr.mxu0 %v2777
    %2841 = vmatpush1.msra.mxu0 %v2776
    %2842 = vmatprep.subr.mxu0 %v2779
    %2843 = vmatpush1.msra.mxu0 %v2778
    %2844 = vmatprep.mubr.f32.mxu0 %v2673
    %2845 = vmatmul.mubr.f32.gmra.mrb[0].mxu0 %v2660
    %v2846 = vpop.f32.mrb[0].mxu0
    %v2847 = vadd.f32 0.0, %v2846
    %v2848 = vpop.f32.mrb[0].mxu0
    %v2849 = vadd.f32 0.0, %v2848
    %2850 = vdwg.mxu0
    %v2851 = vmul.f32 %v2847, 0.00048828125
    %v2852 = vmul.f32 %v2849, 0.00048828125
    %2853 = vmatprep.subr.mxu0 %v2717
    %2854 = vmatpush1.msra.mxu0 %v2716
    %2855 = vmatprep.subr.mxu0 %v2719
    %2856 = vmatpush1.msra.mxu0 %v2718
    %2857 = vmatprep.subr.mxu0 %v2721
    %2858 = vmatpush1.msra.mxu0 %v2720
    %2859 = vmatprep.subr.mxu0 %v2723
    %2860 = vmatpush1.msra.mxu0 %v2722
    %2861 = vmatprep.subr.mxu0 %v2725
    %2862 = vmatpush1.msra.mxu0 %v2724
    %2863 = vmatprep.subr.mxu0 %v2727
    %2864 = vmatpush1.msra.mxu0 %v2726
    %2865 = vmatprep.subr.mxu0 %v2729
    %2866 = vmatpush1.msra.mxu0 %v2728
    %2867 = vmatprep.subr.mxu0 %v2731
    %2868 = vmatpush1.msra.mxu0 %v2730
    %2869 = vmatprep.subr.mxu0 %v2733
    %2870 = vmatpush1.msra.mxu0 %v2732
    %2871 = vmatprep.subr.mxu0 %v2735
    %2872 = vmatpush1.msra.mxu0 %v2734
    %2873 = vmatprep.subr.mxu0 %v2737
    %2874 = vmatpush1.msra.mxu0 %v2736
    %2875 = vmatprep.subr.mxu0 %v2739
    %2876 = vmatpush1.msra.mxu0 %v2738
    %2877 = vmatprep.subr.mxu0 %v2741
    %2878 = vmatpush1.msra.mxu0 %v2740
    %2879 = vmatprep.subr.mxu0 %v2743
    %2880 = vmatpush1.msra.mxu0 %v2742
    %2881 = vmatprep.subr.mxu0 %v2745
    %2882 = vmatpush1.msra.mxu0 %v2744
    %2883 = vmatprep.subr.mxu0 %v2747
    %2884 = vmatpush1.msra.mxu0 %v2746
    %2885 = vmatprep.subr.mxu0 %v2749
    %2886 = vmatpush1.msra.mxu0 %v2748
    %2887 = vmatprep.subr.mxu0 %v2751
    %2888 = vmatpush1.msra.mxu0 %v2750
    %2889 = vmatprep.subr.mxu0 %v2753
    %2890 = vmatpush1.msra.mxu0 %v2752
    %2891 = vmatprep.subr.mxu0 %v2755
    %2892 = vmatpush1.msra.mxu0 %v2754
    %2893 = vmatprep.subr.mxu0 %v2757
    %2894 = vmatpush1.msra.mxu0 %v2756
    %2895 = vmatprep.subr.mxu0 %v2759
    %2896 = vmatpush1.msra.mxu0 %v2758
    %2897 = vmatprep.subr.mxu0 %v2761
    %2898 = vmatpush1.msra.mxu0 %v2760
    %2899 = vmatprep.subr.mxu0 %v2763
    %2900 = vmatpush1.msra.mxu0 %v2762
    %2901 = vmatprep.subr.mxu0 %v2765
    %2902 = vmatpush1.msra.mxu0 %v2764
    %2903 = vmatprep.subr.mxu0 %v2767
    %2904 = vmatpush1.msra.mxu0 %v2766
    %2905 = vmatprep.subr.mxu0 %v2769
    %2906 = vmatpush1.msra.mxu0 %v2768
    %2907 = vmatprep.subr.mxu0 %v2771
    %2908 = vmatpush1.msra.mxu0 %v2770
    %2909 = vmatprep.subr.mxu0 %v2773
    %2910 = vmatpush1.msra.mxu0 %v2772
    %2911 = vmatprep.subr.mxu0 %v2775
    %2912 = vmatpush1.msra.mxu0 %v2774
    %2913 = vmatprep.subr.mxu0 %v2777
    %2914 = vmatpush1.msra.mxu0 %v2776
    %2915 = vmatprep.subr.mxu0 %v2779
    %2916 = vmatpush1.msra.mxu0 %v2778
    %2917 = vmatprep.mubr.f32.mxu0 %v2715
    %2918 = vmatmul.mubr.f32.gmra.mrb[0].mxu0 %v2702
    %v2919 = vpop.f32.mrb[0].mxu0
    %v2920 = vadd.f32 0.0, %v2919
    %v2921 = vpop.f32.mrb[0].mxu0
    %v2922 = vadd.f32 0.0, %v2921
    %2923 = vdwg.mxu0
    %v2924 = vmul.f32 %v2920, 0.00048828125
    %v2925 = vmul.f32 %v2922, 0.00048828125
    %v2926 = vmul.f32 %v2851, %v2851
    %v2927 = vmul.f32 %v2852, %v2852
    %v2928 = vsub.f32 %v2924, %v2926
    %v2929 = vsub.f32 %v2925, %v2927
    %v2930 = vld [vmem:[%s15] sm:$0x3]
    %v2931 = vadd.f32 %v2928, 1e-05
    %v2932 = vadd.f32 %v2929, 1e-05
    %v2933 = vrsqrt.pop %v2931
    %v2934 = vrsqrt.pop %v2932
    %v2937 = vcombine.low %v2933, %v2934
    %v2939 = vunpack.c.l.s4 1966171168
    %v2940 = vunpack.c.0.s8 %v2939
    %v2941 = vlaneseq
    %v2942 = vshrl.u32 %v2941, 7
    %v2943 = vsub.s32 %v2940, %v2942
    %v2944 = vrot.slane %v2937, %v2943
    %v2946 = vunpack.c.l.s4 1966171168
    %v2947 = vunpack.c.0.s8 %v2946
    %v2948 = vlaneseq
    %v2949 = vshrl.u32 %v2948, 7
    %v2950 = vsub.s32 %v2947, %v2949
    %v2951 = vrot.slane %v2944, %v2950
    %v2953 = vmul.f32 %v2930, %v2951
    %v2954 = vlaneseq
    %v2955 = vshrl.u32 %v2954, 7
    %v2956 = vsub.s32 0, %v2955
    %v2957 = vrot.slane %v2851, %v2956
    %v2958 = vlaneseq
    %v2959 = vshrl.u32 %v2958, 7
    %v2960 = vsub.s32 0, %v2959
    %v2961 = vrot.slane %v2852, %v2960
    %v2962 = vsub.f32 %v2602, %v2957
    %v2963 = vsub.f32 %v2604, %v2961
    %v2964 = vsub.f32 %v2608, %v2957
    %v2965 = vsub.f32 %v2610, %v2961
    %v2966 = vsub.f32 %v2614, %v2957
    %v2967 = vsub.f32 %v2616, %v2961
    %v2968 = vsub.f32 %v2620, %v2957
    %v2969 = vsub.f32 %v2622, %v2961
    %v2970 = vsub.f32 %v2626, %v2957
    %v2971 = vsub.f32 %v2628, %v2961
    %v2972 = vsub.f32 %v2632, %v2957
    %v2973 = vsub.f32 %v2634, %v2961
    %v2974 = vsub.f32 %v2638, %v2957
    %v2975 = vsub.f32 %v2640, %v2961
    %v2976 = vsub.f32 %v2644, %v2957
    %v2977 = vsub.f32 %v2646, %v2961
    %v2979 = vlaneseq
    %v2980 = vshrl.u32 %v2979, 7
    %v2981 = vsub.s32 0, %v2980
    %v2982 = vrot.slane %v2953, %v2981
    %v2983 = vlaneseq
    %v2984 = vshrl.u32 %v2983, 7
    %v2985 = vsub.s32 1, %v2984
    %v2986 = vrot.slane %v2953, %v2985
    %v2989 = vmul.f32 %v2962, %v2982
    %v2990 = vmul.f32 %v2963, %v2986
    %v2991 = vmul.f32 %v2964, %v2982
    %v2992 = vmul.f32 %v2965, %v2986
    %v2993 = vmul.f32 %v2966, %v2982
    %v2994 = vmul.f32 %v2967, %v2986
    %v2995 = vmul.f32 %v2968, %v2982
    %v2996 = vmul.f32 %v2969, %v2986
    %v2997 = vmul.f32 %v2970, %v2982
    %v2998 = vmul.f32 %v2971, %v2986
    %v2999 = vmul.f32 %v2972, %v2982
    %v3000 = vmul.f32 %v2973, %v2986
    %v3001 = vmul.f32 %v2974, %v2982
    %v3002 = vmul.f32 %v2975, %v2986
    %v3003 = vmul.f32 %v2976, %v2982
    %v3004 = vmul.f32 %v2977, %v2986
    %v3005 = vld [vmem:[%s16] sm:$0x3]
    %v3007 = vlaneseq
    %v3008 = vshrl.u32 %v3007, 7
    %v3009 = vsub.s32 0, %v3008
    %v3010 = vrot.slane %v3005, %v3009
    %v3011 = vlaneseq
    %v3012 = vshrl.u32 %v3011, 7
    %v3013 = vsub.s32 1, %v3012
    %v3014 = vrot.slane %v3005, %v3013
    %v3017 = vadd.f32 %v2989, %v3010
    %v3018 = vadd.f32 %v2990, %v3014
    %v3019 = vadd.f32 %v2991, %v3010
    %v3020 = vadd.f32 %v2992, %v3014
    %v3021 = vadd.f32 %v2993, %v3010
    %v3022 = vadd.f32 %v2994, %v3014
    %v3023 = vadd.f32 %v2995, %v3010
    %v3024 = vadd.f32 %v2996, %v3014
    %v3025 = vadd.f32 %v2997, %v3010
    %v3026 = vadd.f32 %v2998, %v3014
    %v3027 = vadd.f32 %v2999, %v3010
    %v3028 = vadd.f32 %v3000, %v3014
    %v3029 = vadd.f32 %v3001, %v3010
    %v3030 = vadd.f32 %v3002, %v3014
    %v3031 = vadd.f32 %v3003, %v3010
    %v3032 = vadd.f32 %v3004, %v3014
    %v3033 = vmax.f32 %v3017, 0.0
    %v3034 = vmax.f32 %v3018, 0.0
    %v3035 = vmax.f32 %v3019, 0.0
    %v3036 = vmax.f32 %v3020, 0.0
    %v3037 = vmax.f32 %v3021, 0.0
    %v3038 = vmax.f32 %v3022, 0.0
    %v3039 = vmax.f32 %v3023, 0.0
    %v3040 = vmax.f32 %v3024, 0.0
    %v3041 = vmax.f32 %v3025, 0.0
    %v3042 = vmax.f32 %v3026, 0.0
    %v3043 = vmax.f32 %v3027, 0.0
    %v3044 = vmax.f32 %v3028, 0.0
    %v3045 = vmax.f32 %v3029, 0.0
    %v3046 = vmax.f32 %v3030, 0.0
    %v3047 = vmax.f32 %v3031, 0.0
    %v3048 = vmax.f32 %v3032, 0.0
    %v3049 = vadd.s32 %v689, 32
    %v3050 = vadd.s32 %v689, 40
    %v3051 = vadd.s32 %v689, 48
    %v3052 = vadd.s32 %v689, 56
    %vm3053 = vcmp.lt.s32.totalorder %v689, 0
    %v3054 = vsub.s32 0, %v689
    %v3055 = vsel %vm3053, %v3054, %v689
    %v3056 = vshrl.u32 %v3055, 5
    %v3057 = vand.u32 %v3055, 31
    %v3058 = vsub.s32 0, %v3057
    %v3059 = vsel %vm3053, %v3058, %v3057
    %vm3060 = vcmp.lt.s32.totalorder %v690, 0
    %v3061 = vsub.s32 0, %v690
    %v3062 = vsel %vm3060, %v3061, %v690
    %v3063 = vshrl.u32 %v3062, 5
    %v3064 = vand.u32 %v3062, 31
    %v3065 = vsub.s32 0, %v3064
    %v3066 = vsel %vm3060, %v3065, %v3064
    %vm3067 = vcmp.lt.s32.totalorder %v1768, 0
    %v3068 = vsub.s32 0, %v1768
    %v3069 = vsel %vm3067, %v3068, %v1768
    %v3070 = vshrl.u32 %v3069, 5
    %v3071 = vand.u32 %v3069, 31
    %v3072 = vsub.s32 0, %v3071
    %v3073 = vsel %vm3067, %v3072, %v3071
    %vm3074 = vcmp.lt.s32.totalorder %v1769, 0
    %v3075 = vsub.s32 0, %v1769
    %v3076 = vsel %vm3074, %v3075, %v1769
    %v3077 = vshrl.u32 %v3076, 5
    %v3078 = vand.u32 %v3076, 31
    %v3079 = vsub.s32 0, %v3078
    %v3080 = vsel %vm3074, %v3079, %v3078
    %vm3081 = vcmp.lt.s32.totalorder %v3049, 0
    %v3082 = vsub.s32 0, %v3049
    %v3083 = vsel %vm3081, %v3082, %v3049
    %v3084 = vshrl.u32 %v3083, 5
    %v3085 = vand.u32 %v3083, 31
    %v3086 = vsub.s32 0, %v3085
    %v3087 = vsel %vm3081, %v3086, %v3085
    %vm3088 = vcmp.lt.s32.totalorder %v3050, 0
    %v3089 = vsub.s32 0, %v3050
    %v3090 = vsel %vm3088, %v3089, %v3050
    %v3091 = vshrl.u32 %v3090, 5
    %v3092 = vand.u32 %v3090, 31
    %v3093 = vsub.s32 0, %v3092
    %v3094 = vsel %vm3088, %v3093, %v3092
    %vm3095 = vcmp.lt.s32.totalorder %v3051, 0
    %v3096 = vsub.s32 0, %v3051
    %v3097 = vsel %vm3095, %v3096, %v3051
    %v3098 = vshrl.u32 %v3097, 5
    %v3099 = vand.u32 %v3097, 31
    %v3100 = vsub.s32 0, %v3099
    %v3101 = vsel %vm3095, %v3100, %v3099
    %vm3102 = vcmp.lt.s32.totalorder %v3052, 0
    %v3103 = vsub.s32 0, %v3052
    %v3104 = vsel %vm3102, %v3103, %v3052
    %v3105 = vshrl.u32 %v3104, 5
    %v3106 = vand.u32 %v3104, 31
    %v3107 = vsub.s32 0, %v3106
    %v3108 = vsel %vm3102, %v3107, %v3106
    %vm3109 = vcmp.ne.s32.totalorder %v3059, 0
    %vm3110 = vcmp.ne.s32.totalorder %v3066, 0
    %vm3111 = vcmp.ne.s32.totalorder %v3073, 0
    %vm3112 = vcmp.ne.s32.totalorder %v3080, 0
    %vm3113 = vcmp.ne.s32.totalorder %v3087, 0
    %vm3114 = vcmp.ne.s32.totalorder %v3094, 0
    %vm3115 = vcmp.ne.s32.totalorder %v3101, 0
    %vm3116 = vcmp.ne.s32.totalorder %v3108, 0
    %vm3117 = vcmp.lt.s32.totalorder %v3059, 0
    %vm3118 = vcmp.lt.s32.totalorder %v3066, 0
    %vm3119 = vcmp.lt.s32.totalorder %v3073, 0
    %vm3120 = vcmp.lt.s32.totalorder %v3080, 0
    %vm3121 = vcmp.lt.s32.totalorder %v3087, 0
    %vm3122 = vcmp.lt.s32.totalorder %v3094, 0
    %vm3123 = vcmp.lt.s32.totalorder %v3101, 0
    %vm3124 = vcmp.lt.s32.totalorder %v3108, 0
    %vm3125 = vmand %vm3117, %vm3109
    %vm3126 = vmand %vm3118, %vm3110
    %vm3127 = vmand %vm3119, %vm3111
    %vm3128 = vmand %vm3120, %vm3112
    %vm3129 = vmand %vm3121, %vm3113
    %vm3130 = vmand %vm3122, %vm3114
    %vm3131 = vmand %vm3123, %vm3115
    %vm3132 = vmand %vm3124, %vm3116
    %v3133 = vadd.s32 %v3059, 32
    %v3134 = vadd.s32 %v3066, 32
    %v3135 = vadd.s32 %v3073, 32
    %v3136 = vadd.s32 %v3080, 32
    %v3137 = vadd.s32 %v3087, 32
    %v3138 = vadd.s32 %v3094, 32
    %v3139 = vadd.s32 %v3101, 32
    %v3140 = vadd.s32 %v3108, 32
    %v3141 = vsel %vm3125, %v3133, %v3059
    %v3142 = vsel %vm3126, %v3134, %v3066
    %v3143 = vsel %vm3127, %v3135, %v3073
    %v3144 = vsel %vm3128, %v3136, %v3080
    %v3145 = vsel %vm3129, %v3137, %v3087
    %v3146 = vsel %vm3130, %v3138, %v3094
    %v3147 = vsel %vm3131, %v3139, %v3101
    %v3148 = vsel %vm3132, %v3140, %v3108
    %v3149 = vrot.slane %v3033, 7
    %v3150 = vrot.slane %v3034, 7
    %v3151 = vrot.slane %v3035, 7
    %v3152 = vrot.slane %v3036, 7
    %v3153 = vrot.slane %v3037, 7
    %v3154 = vrot.slane %v3038, 7
    %v3155 = vrot.slane %v3039, 7
    %v3156 = vrot.slane %v3040, 7
    %v3157 = vrot.slane %v3041, 7
    %v3158 = vrot.slane %v3042, 7
    %v3159 = vrot.slane %v3043, 7
    %v3160 = vrot.slane %v3044, 7
    %v3161 = vrot.slane %v3045, 7
    %v3162 = vrot.slane %v3046, 7
    %v3163 = vrot.slane %v3047, 7
    %v3164 = vrot.slane %v3048, 7
    %v3165 = vsel %vm719, %v3161, %v3163
    %v3166 = vsel %vm719, %v3162, %v3164
    %v3167 = vsel %vm719, %v3159, %v3161
    %v3168 = vsel %vm719, %v3160, %v3162
    %v3169 = vsel %vm719, %v3157, %v3159
    %v3170 = vsel %vm719, %v3158, %v3160
    %v3171 = vsel %vm719, %v3155, %v3157
    %v3172 = vsel %vm719, %v3156, %v3158
    %v3173 = vsel %vm719, %v3153, %v3155
    %v3174 = vsel %vm719, %v3154, %v3156
    %v3175 = vsel %vm719, %v3151, %v3153
    %v3176 = vsel %vm719, %v3152, %v3154
    %v3177 = vsel %vm719, %v3149, %v3151
    %v3178 = vsel %vm719, %v3150, %v3152
    %v3179 = vsel %vm719, %v3163, %v3149
    %v3180 = vsel %vm719, %v3164, %v3150
    %vm3181 = vcmp.ne.s32.totalorder %v3141, 0
    %vm3182 = vcmp.ne.s32.totalorder %v3142, 0
    %vm3183 = vcmp.ne.s32.totalorder %v3143, 0
    %vm3184 = vcmp.ne.s32.totalorder %v3144, 0
    %vm3185 = vcmp.ne.s32.totalorder %v3145, 0
    %vm3186 = vcmp.ne.s32.totalorder %v3146, 0
    %vm3187 = vcmp.ne.s32.totalorder %v3147, 0
    %vm3188 = vcmp.ne.s32.totalorder %v3148, 0
    %v3189 = vsel %vm3181, 1, 0
    %v3190 = vsel %vm3182, 1, 0
    %v3191 = vsel %vm3183, 1, 0
    %v3192 = vsel %vm3184, 1, 0
    %v3193 = vsel %vm3185, 1, 0
    %v3194 = vsel %vm3186, 1, 0
    %v3195 = vsel %vm3187, 1, 0
    %v3196 = vsel %vm3188, 1, 0
    %v3197 = vcvt.s32.f32 %v3189
    %v3198 = vcvt.s32.f32 %v3190
    %v3199 = vcvt.s32.f32 %v3191
    %v3200 = vcvt.s32.f32 %v3192
    %v3201 = vcvt.s32.f32 %v3193
    %v3202 = vcvt.s32.f32 %v3194
    %v3203 = vcvt.s32.f32 %v3195
    %v3204 = vcvt.s32.f32 %v3196
    %v3205 = vmul.f32 %v3179, %v3197
    %v3206 = vmul.f32 %v3180, %v3197
    %v3207 = vmul.f32 %v3177, %v3198
    %v3208 = vmul.f32 %v3178, %v3198
    %v3209 = vmul.f32 %v3175, %v3199
    %v3210 = vmul.f32 %v3176, %v3199
    %v3211 = vmul.f32 %v3173, %v3200
    %v3212 = vmul.f32 %v3174, %v3200
    %v3213 = vmul.f32 %v3171, %v3201
    %v3214 = vmul.f32 %v3172, %v3201
    %v3215 = vmul.f32 %v3169, %v3202
    %v3216 = vmul.f32 %v3170, %v3202
    %v3217 = vmul.f32 %v3167, %v3203
    %v3218 = vmul.f32 %v3168, %v3203
    %v3219 = vmul.f32 %v3165, %v3204
    %v3220 = vmul.f32 %v3166, %v3204
    %v3221 = vrot.slane %v3033, 1
    %v3222 = vrot.slane %v3034, 1
    %v3223 = vrot.slane %v3035, 1
    %v3224 = vrot.slane %v3036, 1
    %v3225 = vrot.slane %v3037, 1
    %v3226 = vrot.slane %v3038, 1
    %v3227 = vrot.slane %v3039, 1
    %v3228 = vrot.slane %v3040, 1
    %v3229 = vrot.slane %v3041, 1
    %v3230 = vrot.slane %v3042, 1
    %v3231 = vrot.slane %v3043, 1
    %v3232 = vrot.slane %v3044, 1
    %v3233 = vrot.slane %v3045, 1
    %v3234 = vrot.slane %v3046, 1
    %v3235 = vrot.slane %v3047, 1
    %v3236 = vrot.slane %v3048, 1
    %v3237 = vsel %vm738, %v3233, %v3235
    %v3238 = vsel %vm738, %v3234, %v3236
    %v3239 = vsel %vm738, %v3231, %v3233
    %v3240 = vsel %vm738, %v3232, %v3234
    %v3241 = vsel %vm738, %v3229, %v3231
    %v3242 = vsel %vm738, %v3230, %v3232
    %v3243 = vsel %vm738, %v3227, %v3229
    %v3244 = vsel %vm738, %v3228, %v3230
    %v3245 = vsel %vm738, %v3225, %v3227
    %v3246 = vsel %vm738, %v3226, %v3228
    %v3247 = vsel %vm738, %v3223, %v3225
    %v3248 = vsel %vm738, %v3224, %v3226
    %v3249 = vsel %vm738, %v3221, %v3223
    %v3250 = vsel %vm738, %v3222, %v3224
    %v3251 = vsel %vm738, %v3235, %v3221
    %v3252 = vsel %vm738, %v3236, %v3222
    %vm3253 = vcmp.ne.s32.totalorder %v3141, 31
    %vm3254 = vcmp.ne.s32.totalorder %v3142, 31
    %vm3255 = vcmp.ne.s32.totalorder %v3143, 31
    %vm3256 = vcmp.ne.s32.totalorder %v3144, 31
    %vm3257 = vcmp.ne.s32.totalorder %v3145, 31
    %vm3258 = vcmp.ne.s32.totalorder %v3146, 31
    %vm3259 = vcmp.ne.s32.totalorder %v3147, 31
    %vm3260 = vcmp.ne.s32.totalorder %v3148, 31
    %v3261 = vsel %vm3253, 1, 0
    %v3262 = vsel %vm3254, 1, 0
    %v3263 = vsel %vm3255, 1, 0
    %v3264 = vsel %vm3256, 1, 0
    %v3265 = vsel %vm3257, 1, 0
    %v3266 = vsel %vm3258, 1, 0
    %v3267 = vsel %vm3259, 1, 0
    %v3268 = vsel %vm3260, 1, 0
    %v3269 = vcvt.s32.f32 %v3261
    %v3270 = vcvt.s32.f32 %v3262
    %v3271 = vcvt.s32.f32 %v3263
    %v3272 = vcvt.s32.f32 %v3264
    %v3273 = vcvt.s32.f32 %v3265
    %v3274 = vcvt.s32.f32 %v3266
    %v3275 = vcvt.s32.f32 %v3267
    %v3276 = vcvt.s32.f32 %v3268
    %v3277 = vmul.f32 %v3249, %v3269
    %v3278 = vmul.f32 %v3250, %v3269
    %v3279 = vmul.f32 %v3247, %v3270
    %v3280 = vmul.f32 %v3248, %v3270
    %v3281 = vmul.f32 %v3245, %v3271
    %v3282 = vmul.f32 %v3246, %v3271
    %v3283 = vmul.f32 %v3243, %v3272
    %v3284 = vmul.f32 %v3244, %v3272
    %v3285 = vmul.f32 %v3241, %v3273
    %v3286 = vmul.f32 %v3242, %v3273
    %v3287 = vmul.f32 %v3239, %v3274
    %v3288 = vmul.f32 %v3240, %v3274
    %v3289 = vmul.f32 %v3237, %v3275
    %v3290 = vmul.f32 %v3238, %v3275
    %v3291 = vmul.f32 %v3251, %v3276
    %v3292 = vmul.f32 %v3252, %v3276
    %v3293 = vld [vmem:[#allocation20] sm:$0xff]
    %v3294 = vld [vmem:[#allocation20 + $0x8] sm:$0xff]
    %v3295 = vld [vmem:[#allocation20 + $0x10] sm:$0xff]
    %v3296 = vld [vmem:[#allocation20 + $0x18] sm:$0xff]
    %v3297 = vld [vmem:[#allocation20 + $0x20] sm:$0xff]
    %v3298 = vld [vmem:[#allocation20 + $0x28] sm:$0xff]
    %v3299 = vld [vmem:[#allocation20 + $0x30] sm:$0xff]
    %v3300 = vld [vmem:[#allocation20 + $0x38] sm:$0xff]
    %v3301 = vld [vmem:[#allocation20 + $0x40] sm:$0xff]
    %v3302 = vld [vmem:[#allocation20 + $0x48] sm:$0xff]
    %v3303 = vld [vmem:[#allocation20 + $0x50] sm:$0xff]
    %v3304 = vld [vmem:[#allocation20 + $0x58] sm:$0xff]
    %v3305 = vld [vmem:[#allocation20 + $0x60] sm:$0xff]
    %v3306 = vld [vmem:[#allocation20 + $0x68] sm:$0xff]
    %v3307 = vld [vmem:[#allocation20 + $0x70] sm:$0xff]
    %v3308 = vld [vmem:[#allocation20 + $0x78] sm:$0xff]
    %v3309 = vld [vmem:[#allocation20 + $0x80] sm:$0xff]
    %v3310 = vld [vmem:[#allocation20 + $0x88] sm:$0xff]
    %v3311 = vld [vmem:[#allocation20 + $0x90] sm:$0xff]
    %v3312 = vld [vmem:[#allocation20 + $0x98] sm:$0xff]
    %v3313 = vld [vmem:[#allocation20 + $0xa0] sm:$0xff]
    %v3314 = vld [vmem:[#allocation20 + $0xa8] sm:$0xff]
    %v3315 = vld [vmem:[#allocation20 + $0xb0] sm:$0xff]
    %v3316 = vld [vmem:[#allocation20 + $0xb8] sm:$0xff]
    %v3317 = vld [vmem:[#allocation20 + $0xc0] sm:$0xff]
    %v3318 = vld [vmem:[#allocation20 + $0xc8] sm:$0xff]
    %v3319 = vld [vmem:[#allocation20 + $0xd0] sm:$0xff]
    %v3320 = vld [vmem:[#allocation20 + $0xd8] sm:$0xff]
    %v3321 = vld [vmem:[#allocation20 + $0xe0] sm:$0xff]
    %v3322 = vld [vmem:[#allocation20 + $0xe8] sm:$0xff]
    %v3323 = vld [vmem:[#allocation20 + $0xf0] sm:$0xff]
    %v3324 = vld [vmem:[#allocation20 + $0xf8] sm:$0xff]
    %v3325 = vld [vmem:[#allocation20 + $0x100] sm:$0xff]
    %v3326 = vld [vmem:[#allocation20 + $0x108] sm:$0xff]
    %v3327 = vld [vmem:[#allocation20 + $0x110] sm:$0xff]
    %v3328 = vld [vmem:[#allocation20 + $0x118] sm:$0xff]
    %v3329 = vld [vmem:[#allocation20 + $0x120] sm:$0xff]
    %v3330 = vld [vmem:[#allocation20 + $0x128] sm:$0xff]
    %v3331 = vld [vmem:[#allocation20 + $0x130] sm:$0xff]
    %v3332 = vld [vmem:[#allocation20 + $0x138] sm:$0xff]
    %v3333 = vld [vmem:[#allocation20 + $0x140] sm:$0xff]
    %v3334 = vld [vmem:[#allocation20 + $0x148] sm:$0xff]
    %v3335 = vld [vmem:[#allocation20 + $0x150] sm:$0xff]
    %v3336 = vld [vmem:[#allocation20 + $0x158] sm:$0xff]
    %v3337 = vld [vmem:[#allocation20 + $0x160] sm:$0xff]
    %v3338 = vld [vmem:[#allocation20 + $0x168] sm:$0xff]
    %v3339 = vld [vmem:[#allocation20 + $0x170] sm:$0xff]
    %v3340 = vld [vmem:[#allocation20 + $0x178] sm:$0xff]
    %v3341 = vld [vmem:[#allocation20 + $0x180] sm:$0xff]
    %v3342 = vld [vmem:[#allocation20 + $0x188] sm:$0xff]
    %v3343 = vld [vmem:[#allocation20 + $0x190] sm:$0xff]
    %v3344 = vld [vmem:[#allocation20 + $0x198] sm:$0xff]
    %v3345 = vld [vmem:[#allocation20 + $0x1a0] sm:$0xff]
    %v3346 = vld [vmem:[#allocation20 + $0x1a8] sm:$0xff]
    %v3347 = vld [vmem:[#allocation20 + $0x1b0] sm:$0xff]
    %v3348 = vld [vmem:[#allocation20 + $0x1b8] sm:$0xff]
    %v3349 = vld [vmem:[#allocation20 + $0x1c0] sm:$0xff]
    %v3350 = vld [vmem:[#allocation20 + $0x1c8] sm:$0xff]
    %v3351 = vld [vmem:[#allocation20 + $0x1d0] sm:$0xff]
    %v3352 = vld [vmem:[#allocation20 + $0x1d8] sm:$0xff]
    %v3353 = vld [vmem:[#allocation20 + $0x1e0] sm:$0xff]
    %v3354 = vld [vmem:[#allocation20 + $0x1e8] sm:$0xff]
    %v3355 = vld [vmem:[#allocation20 + $0x1f0] sm:$0xff]
    %v3356 = vld [vmem:[#allocation20 + $0x1f8] sm:$0xff]
    %v3357 = vld [vmem:[#allocation20 + $0x200] sm:$0xff]
    %v3358 = vld [vmem:[#allocation20 + $0x208] sm:$0xff]
    %v3359 = vld [vmem:[#allocation20 + $0x210] sm:$0xff]
    %v3360 = vld [vmem:[#allocation20 + $0x218] sm:$0xff]
    %v3361 = vld [vmem:[#allocation20 + $0x220] sm:$0xff]
    %v3362 = vld [vmem:[#allocation20 + $0x228] sm:$0xff]
    %v3363 = vld [vmem:[#allocation20 + $0x230] sm:$0xff]
    %v3364 = vld [vmem:[#allocation20 + $0x238] sm:$0xff]
    %v3365 = vld [vmem:[#allocation20 + $0x240] sm:$0xff]
    %v3366 = vld [vmem:[#allocation20 + $0x248] sm:$0xff]
    %v3367 = vld [vmem:[#allocation20 + $0x250] sm:$0xff]
    %v3368 = vld [vmem:[#allocation20 + $0x258] sm:$0xff]
    %v3369 = vld [vmem:[#allocation20 + $0x260] sm:$0xff]
    %v3370 = vld [vmem:[#allocation20 + $0x268] sm:$0xff]
    %v3371 = vld [vmem:[#allocation20 + $0x270] sm:$0xff]
    %v3372 = vld [vmem:[#allocation20 + $0x278] sm:$0xff]
    %v3373 = vld [vmem:[#allocation20 + $0x280] sm:$0xff]
    %v3374 = vld [vmem:[#allocation20 + $0x288] sm:$0xff]
    %v3375 = vld [vmem:[#allocation20 + $0x290] sm:$0xff]
    %v3376 = vld [vmem:[#allocation20 + $0x298] sm:$0xff]
    %v3377 = vld [vmem:[#allocation20 + $0x2a0] sm:$0xff]
    %v3378 = vld [vmem:[#allocation20 + $0x2a8] sm:$0xff]
    %v3379 = vld [vmem:[#allocation20 + $0x2b0] sm:$0xff]
    %v3380 = vld [vmem:[#allocation20 + $0x2b8] sm:$0xff]
    %v3381 = vld [vmem:[#allocation20 + $0x2c0] sm:$0xff]
    %v3382 = vld [vmem:[#allocation20 + $0x2c8] sm:$0xff]
    %v3383 = vld [vmem:[#allocation20 + $0x2d0] sm:$0xff]
    %v3384 = vld [vmem:[#allocation20 + $0x2d8] sm:$0xff]
    %v3385 = vld [vmem:[#allocation20 + $0x2e0] sm:$0xff]
    %v3386 = vld [vmem:[#allocation20 + $0x2e8] sm:$0xff]
    %v3387 = vld [vmem:[#allocation20 + $0x2f0] sm:$0xff]
    %v3388 = vld [vmem:[#allocation20 + $0x2f8] sm:$0xff]
    %v3389 = vld [vmem:[#allocation20 + $0x300] sm:$0xff]
    %v3390 = vld [vmem:[#allocation20 + $0x308] sm:$0xff]
    %v3391 = vld [vmem:[#allocation20 + $0x310] sm:$0xff]
    %v3392 = vld [vmem:[#allocation20 + $0x318] sm:$0xff]
    %v3393 = vld [vmem:[#allocation20 + $0x320] sm:$0xff]
    %v3394 = vld [vmem:[#allocation20 + $0x328] sm:$0xff]
    %v3395 = vld [vmem:[#allocation20 + $0x330] sm:$0xff]
    %v3396 = vld [vmem:[#allocation20 + $0x338] sm:$0xff]
    %v3397 = vld [vmem:[#allocation20 + $0x340] sm:$0xff]
    %v3398 = vld [vmem:[#allocation20 + $0x348] sm:$0xff]
    %v3399 = vld [vmem:[#allocation20 + $0x350] sm:$0xff]
    %v3400 = vld [vmem:[#allocation20 + $0x358] sm:$0xff]
    %v3401 = vld [vmem:[#allocation20 + $0x360] sm:$0xff]
    %v3402 = vld [vmem:[#allocation20 + $0x368] sm:$0xff]
    %v3403 = vld [vmem:[#allocation20 + $0x370] sm:$0xff]
    %v3404 = vld [vmem:[#allocation20 + $0x378] sm:$0xff]
    %v3405 = vld [vmem:[#allocation20 + $0x380] sm:$0xff]
    %v3406 = vld [vmem:[#allocation20 + $0x388] sm:$0xff]
    %v3407 = vld [vmem:[#allocation20 + $0x390] sm:$0xff]
    %v3408 = vld [vmem:[#allocation20 + $0x398] sm:$0xff]
    %v3409 = vld [vmem:[#allocation20 + $0x3a0] sm:$0xff]
    %v3410 = vld [vmem:[#allocation20 + $0x3a8] sm:$0xff]
    %v3411 = vld [vmem:[#allocation20 + $0x3b0] sm:$0xff]
    %v3412 = vld [vmem:[#allocation20 + $0x3b8] sm:$0xff]
    %v3413 = vld [vmem:[#allocation20 + $0x3c0] sm:$0xff]
    %v3414 = vld [vmem:[#allocation20 + $0x3c8] sm:$0xff]
    %v3415 = vld [vmem:[#allocation20 + $0x3d0] sm:$0xff]
    %v3416 = vld [vmem:[#allocation20 + $0x3d8] sm:$0xff]
    %v3417 = vld [vmem:[#allocation20 + $0x3e0] sm:$0xff]
    %v3418 = vld [vmem:[#allocation20 + $0x3e8] sm:$0xff]
    %v3419 = vld [vmem:[#allocation20 + $0x3f0] sm:$0xff]
    %v3420 = vld [vmem:[#allocation20 + $0x3f8] sm:$0xff]
    %v3421 = vld [vmem:[%s18] sm:$0x1]
    %v3423 = vlaneseq
    %v3424 = vshrl.u32 %v3423, 7
    %v3425 = vsub.s32 0, %v3424
    %v3426 = vrot.slane %v3421, %v3425
    %3428 = vmatprep.subr.mxu0 0.0
    %3429 = vmatpush1.msra.mxu0 %v3293
    %3430 = vmatprep.subr.mxu0 0.0
    %3431 = vmatpush1.msra.mxu0 %v3294
    %3432 = vmatprep.subr.mxu0 0.0
    %3433 = vmatpush1.msra.mxu0 %v3295
    %3434 = vmatprep.subr.mxu0 0.0
    %3435 = vmatpush1.msra.mxu0 %v3296
    %3436 = vmatprep.subr.mxu0 0.0
    %3437 = vmatpush1.msra.mxu0 %v3297
    %3438 = vmatprep.subr.mxu0 0.0
    %3439 = vmatpush1.msra.mxu0 %v3298
    %3440 = vmatprep.subr.mxu0 0.0
    %3441 = vmatpush1.msra.mxu0 %v3299
    %3442 = vmatprep.subr.mxu0 0.0
    %3443 = vmatpush1.msra.mxu0 %v3300
    %3444 = vmatprep.subr.mxu0 0.0
    %3445 = vmatpush1.msra.mxu0 %v3301
    %3446 = vmatprep.subr.mxu0 0.0
    %3447 = vmatpush1.msra.mxu0 %v3302
    %3448 = vmatprep.subr.mxu0 0.0
    %3449 = vmatpush1.msra.mxu0 %v3303
    %3450 = vmatprep.subr.mxu0 0.0
    %3451 = vmatpush1.msra.mxu0 %v3304
    %3452 = vmatprep.subr.mxu0 0.0
    %3453 = vmatpush1.msra.mxu0 %v3305
    %3454 = vmatprep.subr.mxu0 0.0
    %3455 = vmatpush1.msra.mxu0 %v3306
    %3456 = vmatprep.subr.mxu0 0.0
    %3457 = vmatpush1.msra.mxu0 %v3307
    %3458 = vmatprep.subr.mxu0 0.0
    %3459 = vmatpush1.msra.mxu0 %v3308
    %3460 = vmatprep.subr.mxu0 0.0
    %3461 = vmatpush1.msra.mxu0 %v3309
    %3462 = vmatprep.subr.mxu0 0.0
    %3463 = vmatpush1.msra.mxu0 %v3310
    %3464 = vmatprep.subr.mxu0 0.0
    %3465 = vmatpush1.msra.mxu0 %v3311
    %3466 = vmatprep.subr.mxu0 0.0
    %3467 = vmatpush1.msra.mxu0 %v3312
    %3468 = vmatprep.subr.mxu0 0.0
    %3469 = vmatpush1.msra.mxu0 %v3313
    %3470 = vmatprep.subr.mxu0 0.0
    %3471 = vmatpush1.msra.mxu0 %v3314
    %3472 = vmatprep.subr.mxu0 0.0
    %3473 = vmatpush1.msra.mxu0 %v3315
    %3474 = vmatprep.subr.mxu0 0.0
    %3475 = vmatpush1.msra.mxu0 %v3316
    %3476 = vmatprep.subr.mxu0 0.0
    %3477 = vmatpush1.msra.mxu0 %v3317
    %3478 = vmatprep.subr.mxu0 0.0
    %3479 = vmatpush1.msra.mxu0 %v3318
    %3480 = vmatprep.subr.mxu0 0.0
    %3481 = vmatpush1.msra.mxu0 %v3319
    %3482 = vmatprep.subr.mxu0 0.0
    %3483 = vmatpush1.msra.mxu0 %v3320
    %3484 = vmatprep.subr.mxu0 0.0
    %3485 = vmatpush1.msra.mxu0 %v3321
    %3486 = vmatprep.subr.mxu0 0.0
    %3487 = vmatpush1.msra.mxu0 %v3322
    %3488 = vmatprep.subr.mxu0 0.0
    %3489 = vmatpush1.msra.mxu0 %v3323
    %3490 = vmatprep.subr.mxu0 0.0
    %3491 = vmatpush1.msra.mxu0 %v3324
    %3492 = vmatprep.mubr.f32.mxu0 %v3034
    %3493 = vmatmul.mubr.f32.gmra.mrb[0].mxu0 %v3033
    %v3494 = vpop.f32.mrb[0].mxu0
    %v3495 = vadd.f32 %v3426, %v3494
    %v3496 = vpop.f32.mrb[0].mxu0
    %3497 = vmatprep.mubr.f32.mxu0 %v3036
    %3498 = vmatmul.mubr.f32.gmra.mrb[0].mxu0 %v3035
    %v3499 = vpop.f32.mrb[0].mxu0
    %v3500 = vadd.f32 %v3426, %v3499
    %v3501 = vpop.f32.mrb[0].mxu0
    %3502 = vmatprep.mubr.f32.mxu0 %v3038
    %3503 = vmatmul.mubr.f32.gmra.mrb[0].mxu0 %v3037
    %v3504 = vpop.f32.mrb[0].mxu0
    %v3505 = vadd.f32 %v3426, %v3504
    %v3506 = vpop.f32.mrb[0].mxu0
    %3507 = vmatprep.mubr.f32.mxu0 %v3040
    %3508 = vmatmul.mubr.f32.gmra.mrb[0].mxu0 %v3039
    %v3509 = vpop.f32.mrb[0].mxu0
    %v3510 = vadd.f32 %v3426, %v3509
    %v3511 = vpop.f32.mrb[0].mxu0
    %3512 = vmatprep.mubr.f32.mxu0 %v3042
    %3513 = vmatmul.mubr.f32.gmra.mrb[0].mxu0 %v3041
    %v3514 = vpop.f32.mrb[0].mxu0
    %v3515 = vadd.f32 %v3426, %v3514
    %v3516 = vpop.f32.mrb[0].mxu0
    %3517 = vmatprep.mubr.f32.mxu0 %v3044
    %3518 = vmatmul.mubr.f32.gmra.mrb[0].mxu0 %v3043
    %v3519 = vpop.f32.mrb[0].mxu0
    %v3520 = vadd.f32 %v3426, %v3519
    %v3521 = vpop.f32.mrb[0].mxu0
    %3522 = vmatprep.mubr.f32.mxu0 %v3046
    %3523 = vmatmul.mubr.f32.gmra.mrb[0].mxu0 %v3045
    %v3524 = vpop.f32.mrb[0].mxu0
    %v3525 = vadd.f32 %v3426, %v3524
    %v3526 = vpop.f32.mrb[0].mxu0
    %3527 = vmatprep.mubr.f32.mxu0 %v3048
    %3528 = vmatmul.mubr.f32.gmra.mrb[0].mxu0 %v3047
    %v3529 = vpop.f32.mrb[0].mxu0
    %v3530 = vadd.f32 %v3426, %v3529
    %v3531 = vpop.f32.mrb[0].mxu0
    %3532 = vdwg.mxu0
    %3533 = vmatprep.subr.mxu0 0.0
    %3534 = vmatpush1.msra.mxu0 %v3325
    %3535 = vmatprep.subr.mxu0 0.0
    %3536 = vmatpush1.msra.mxu0 %v3326
    %3537 = vmatprep.subr.mxu0 0.0
    %3538 = vmatpush1.msra.mxu0 %v3327
    %3539 = vmatprep.subr.mxu0 0.0
    %3540 = vmatpush1.msra.mxu0 %v3328
    %3541 = vmatprep.subr.mxu0 0.0
    %3542 = vmatpush1.msra.mxu0 %v3329
    %3543 = vmatprep.subr.mxu0 0.0
    %3544 = vmatpush1.msra.mxu0 %v3330
    %3545 = vmatprep.subr.mxu0 0.0
    %3546 = vmatpush1.msra.mxu0 %v3331
    %3547 = vmatprep.subr.mxu0 0.0
    %3548 = vmatpush1.msra.mxu0 %v3332
    %3549 = vmatprep.subr.mxu0 0.0
    %3550 = vmatpush1.msra.mxu0 %v3333
    %3551 = vmatprep.subr.mxu0 0.0
    %3552 = vmatpush1.msra.mxu0 %v3334
    %3553 = vmatprep.subr.mxu0 0.0
    %3554 = vmatpush1.msra.mxu0 %v3335
    %3555 = vmatprep.subr.mxu0 0.0
    %3556 = vmatpush1.msra.mxu0 %v3336
    %3557 = vmatprep.subr.mxu0 0.0
    %3558 = vmatpush1.msra.mxu0 %v3337
    %3559 = vmatprep.subr.mxu0 0.0
    %3560 = vmatpush1.msra.mxu0 %v3338
    %3561 = vmatprep.subr.mxu0 0.0
    %3562 = vmatpush1.msra.mxu0 %v3339
    %3563 = vmatprep.subr.mxu0 0.0
    %3564 = vmatpush1.msra.mxu0 %v3340
    %3565 = vmatprep.subr.mxu0 0.0
    %3566 = vmatpush1.msra.mxu0 %v3341
    %3567 = vmatprep.subr.mxu0 0.0
    %3568 = vmatpush1.msra.mxu0 %v3342
    %3569 = vmatprep.subr.mxu0 0.0
    %3570 = vmatpush1.msra.mxu0 %v3343
    %3571 = vmatprep.subr.mxu0 0.0
    %3572 = vmatpush1.msra.mxu0 %v3344
    %3573 = vmatprep.subr.mxu0 0.0
    %3574 = vmatpush1.msra.mxu0 %v3345
    %3575 = vmatprep.subr.mxu0 0.0
    %3576 = vmatpush1.msra.mxu0 %v3346
    %3577 = vmatprep.subr.mxu0 0.0
    %3578 = vmatpush1.msra.mxu0 %v3347
    %3579 = vmatprep.subr.mxu0 0.0
    %3580 = vmatpush1.msra.mxu0 %v3348
    %3581 = vmatprep.subr.mxu0 0.0
    %3582 = vmatpush1.msra.mxu0 %v3349
    %3583 = vmatprep.subr.mxu0 0.0
    %3584 = vmatpush1.msra.mxu0 %v3350
    %3585 = vmatprep.subr.mxu0 0.0
    %3586 = vmatpush1.msra.mxu0 %v3351
    %3587 = vmatprep.subr.mxu0 0.0
    %3588 = vmatpush1.msra.mxu0 %v3352
    %3589 = vmatprep.subr.mxu0 0.0
    %3590 = vmatpush1.msra.mxu0 %v3353
    %3591 = vmatprep.subr.mxu0 0.0
    %3592 = vmatpush1.msra.mxu0 %v3354
    %3593 = vmatprep.subr.mxu0 0.0
    %3594 = vmatpush1.msra.mxu0 %v3355
    %3595 = vmatprep.subr.mxu0 0.0
    %3596 = vmatpush1.msra.mxu0 %v3356
    %3597 = vmatprep.mubr.f32.mxu0 %v3206
    %3598 = vmatmul.mubr.f32.gmra.mrb[0].mxu0 %v3205
    %v3599 = vpop.f32.mrb[0].mxu0
    %v3600 = vadd.f32 %v3495, %v3599
    %v3601 = vpop.f32.mrb[0].mxu0
    %3602 = vmatprep.mubr.f32.mxu0 %v3208
    %3603 = vmatmul.mubr.f32.gmra.mrb[0].mxu0 %v3207
    %v3604 = vpop.f32.mrb[0].mxu0
    %v3605 = vadd.f32 %v3500, %v3604
    %v3606 = vpop.f32.mrb[0].mxu0
    %3607 = vmatprep.mubr.f32.mxu0 %v3210
    %3608 = vmatmul.mubr.f32.gmra.mrb[0].mxu0 %v3209
    %v3609 = vpop.f32.mrb[0].mxu0
    %v3610 = vadd.f32 %v3505, %v3609
    %v3611 = vpop.f32.mrb[0].mxu0
    %3612 = vmatprep.mubr.f32.mxu0 %v3212
    %3613 = vmatmul.mubr.f32.gmra.mrb[0].mxu0 %v3211
    %v3614 = vpop.f32.mrb[0].mxu0
    %v3615 = vadd.f32 %v3510, %v3614
    %v3616 = vpop.f32.mrb[0].mxu0
    %3617 = vmatprep.mubr.f32.mxu0 %v3214
    %3618 = vmatmul.mubr.f32.gmra.mrb[0].mxu0 %v3213
    %v3619 = vpop.f32.mrb[0].mxu0
    %v3620 = vadd.f32 %v3515, %v3619
    %v3621 = vpop.f32.mrb[0].mxu0
    %3622 = vmatprep.mubr.f32.mxu0 %v3216
    %3623 = vmatmul.mubr.f32.gmra.mrb[0].mxu0 %v3215
    %v3624 = vpop.f32.mrb[0].mxu0
    %v3625 = vadd.f32 %v3520, %v3624
    %v3626 = vpop.f32.mrb[0].mxu0
    %3627 = vmatprep.mubr.f32.mxu0 %v3218
    %3628 = vmatmul.mubr.f32.gmra.mrb[0].mxu0 %v3217
    %v3629 = vpop.f32.mrb[0].mxu0
    %v3630 = vadd.f32 %v3525, %v3629
    %v3631 = vpop.f32.mrb[0].mxu0
    %3632 = vmatprep.mubr.f32.mxu0 %v3220
    %3633 = vmatmul.mubr.f32.gmra.mrb[0].mxu0 %v3219
    %v3634 = vpop.f32.mrb[0].mxu0
    %v3635 = vadd.f32 %v3530, %v3634
    %v3636 = vpop.f32.mrb[0].mxu0
    %3637 = vdwg.mxu0
    %3638 = vmatprep.subr.mxu0 0.0
    %3639 = vmatpush1.msra.mxu0 %v3357
    %3640 = vmatprep.subr.mxu0 0.0
    %3641 = vmatpush1.msra.mxu0 %v3358
    %3642 = vmatprep.subr.mxu0 0.0
    %3643 = vmatpush1.msra.mxu0 %v3359
    %3644 = vmatprep.subr.mxu0 0.0
    %3645 = vmatpush1.msra.mxu0 %v3360
    %3646 = vmatprep.subr.mxu0 0.0
    %3647 = vmatpush1.msra.mxu0 %v3361
    %3648 = vmatprep.subr.mxu0 0.0
    %3649 = vmatpush1.msra.mxu0 %v3362
    %3650 = vmatprep.subr.mxu0 0.0
    %3651 = vmatpush1.msra.mxu0 %v3363
    %3652 = vmatprep.subr.mxu0 0.0
    %3653 = vmatpush1.msra.mxu0 %v3364
    %3654 = vmatprep.subr.mxu0 0.0
    %3655 = vmatpush1.msra.mxu0 %v3365
    %3656 = vmatprep.subr.mxu0 0.0
    %3657 = vmatpush1.msra.mxu0 %v3366
    %3658 = vmatprep.subr.mxu0 0.0
    %3659 = vmatpush1.msra.mxu0 %v3367
    %3660 = vmatprep.subr.mxu0 0.0
    %3661 = vmatpush1.msra.mxu0 %v3368
    %3662 = vmatprep.subr.mxu0 0.0
    %3663 = vmatpush1.msra.mxu0 %v3369
    %3664 = vmatprep.subr.mxu0 0.0
    %3665 = vmatpush1.msra.mxu0 %v3370
    %3666 = vmatprep.subr.mxu0 0.0
    %3667 = vmatpush1.msra.mxu0 %v3371
    %3668 = vmatprep.subr.mxu0 0.0
    %3669 = vmatpush1.msra.mxu0 %v3372
    %3670 = vmatprep.subr.mxu0 0.0
    %3671 = vmatpush1.msra.mxu0 %v3373
    %3672 = vmatprep.subr.mxu0 0.0
    %3673 = vmatpush1.msra.mxu0 %v3374
    %3674 = vmatprep.subr.mxu0 0.0
    %3675 = vmatpush1.msra.mxu0 %v3375
    %3676 = vmatprep.subr.mxu0 0.0
    %3677 = vmatpush1.msra.mxu0 %v3376
    %3678 = vmatprep.subr.mxu0 0.0
    %3679 = vmatpush1.msra.mxu0 %v3377
    %3680 = vmatprep.subr.mxu0 0.0
    %3681 = vmatpush1.msra.mxu0 %v3378
    %3682 = vmatprep.subr.mxu0 0.0
    %3683 = vmatpush1.msra.mxu0 %v3379
    %3684 = vmatprep.subr.mxu0 0.0
    %3685 = vmatpush1.msra.mxu0 %v3380
    %3686 = vmatprep.subr.mxu0 0.0
    %3687 = vmatpush1.msra.mxu0 %v3381
    %3688 = vmatprep.subr.mxu0 0.0
    %3689 = vmatpush1.msra.mxu0 %v3382
    %3690 = vmatprep.subr.mxu0 0.0
    %3691 = vmatpush1.msra.mxu0 %v3383
    %3692 = vmatprep.subr.mxu0 0.0
    %3693 = vmatpush1.msra.mxu0 %v3384
    %3694 = vmatprep.subr.mxu0 0.0
    %3695 = vmatpush1.msra.mxu0 %v3385
    %3696 = vmatprep.subr.mxu0 0.0
    %3697 = vmatpush1.msra.mxu0 %v3386
    %3698 = vmatprep.subr.mxu0 0.0
    %3699 = vmatpush1.msra.mxu0 %v3387
    %3700 = vmatprep.subr.mxu0 0.0
    %3701 = vmatpush1.msra.mxu0 %v3388
    %3702 = vmatprep.mubr.f32.mxu0 %v3278
    %3703 = vmatmul.mubr.f32.gmra.mrb[0].mxu0 %v3277
    %v3704 = vpop.f32.mrb[0].mxu0
    %v3705 = vadd.f32 %v3600, %v3704
    %v3706 = vpop.f32.mrb[0].mxu0
    %3707 = vmatprep.mubr.f32.mxu0 %v3280
    %3708 = vmatmul.mubr.f32.gmra.mrb[0].mxu0 %v3279
    %v3709 = vpop.f32.mrb[0].mxu0
    %v3710 = vadd.f32 %v3605, %v3709
    %v3711 = vpop.f32.mrb[0].mxu0
    %3712 = vmatprep.mubr.f32.mxu0 %v3282
    %3713 = vmatmul.mubr.f32.gmra.mrb[0].mxu0 %v3281
    %v3714 = vpop.f32.mrb[0].mxu0
    %v3715 = vadd.f32 %v3610, %v3714
    %v3716 = vpop.f32.mrb[0].mxu0
    %3717 = vmatprep.mubr.f32.mxu0 %v3284
    %3718 = vmatmul.mubr.f32.gmra.mrb[0].mxu0 %v3283
    %v3719 = vpop.f32.mrb[0].mxu0
    %v3720 = vadd.f32 %v3615, %v3719
    %v3721 = vpop.f32.mrb[0].mxu0
    %3722 = vmatprep.mubr.f32.mxu0 %v3286
    %3723 = vmatmul.mubr.f32.gmra.mrb[0].mxu0 %v3285
    %v3724 = vpop.f32.mrb[0].mxu0
    %v3725 = vadd.f32 %v3620, %v3724
    %v3726 = vpop.f32.mrb[0].mxu0
    %3727 = vmatprep.mubr.f32.mxu0 %v3288
    %3728 = vmatmul.mubr.f32.gmra.mrb[0].mxu0 %v3287
    %v3729 = vpop.f32.mrb[0].mxu0
    %v3730 = vadd.f32 %v3625, %v3729
    %v3731 = vpop.f32.mrb[0].mxu0
    %3732 = vmatprep.mubr.f32.mxu0 %v3290
    %3733 = vmatmul.mubr.f32.gmra.mrb[0].mxu0 %v3289
    %v3734 = vpop.f32.mrb[0].mxu0
    %v3735 = vadd.f32 %v3630, %v3734
    %v3736 = vpop.f32.mrb[0].mxu0
    %3737 = vmatprep.mubr.f32.mxu0 %v3292
    %3738 = vmatmul.mubr.f32.gmra.mrb[0].mxu0 %v3291
    %v3739 = vpop.f32.mrb[0].mxu0
    %v3740 = vadd.f32 %v3635, %v3739
    %v3741 = vpop.f32.mrb[0].mxu0
    %3742 = vdwg.mxu0
    %3743 = vmatprep.subr.mxu0 0.0
    %3744 = vmatpush1.msra.mxu0 %v3389
    %3745 = vmatprep.subr.mxu0 0.0
    %3746 = vmatpush1.msra.mxu0 %v3390
    %3747 = vmatprep.subr.mxu0 0.0
    %3748 = vmatpush1.msra.mxu0 %v3391
    %3749 = vmatprep.subr.mxu0 0.0
    %3750 = vmatpush1.msra.mxu0 %v3392
    %3751 = vmatprep.subr.mxu0 0.0
    %3752 = vmatpush1.msra.mxu0 %v3393
    %3753 = vmatprep.subr.mxu0 0.0
    %3754 = vmatpush1.msra.mxu0 %v3394
    %3755 = vmatprep.subr.mxu0 0.0
    %3756 = vmatpush1.msra.mxu0 %v3395
    %3757 = vmatprep.subr.mxu0 0.0
    %3758 = vmatpush1.msra.mxu0 %v3396
    %3759 = vmatprep.subr.mxu0 0.0
    %3760 = vmatpush1.msra.mxu0 %v3397
    %3761 = vmatprep.subr.mxu0 0.0
    %3762 = vmatpush1.msra.mxu0 %v3398
    %3763 = vmatprep.subr.mxu0 0.0
    %3764 = vmatpush1.msra.mxu0 %v3399
    %3765 = vmatprep.subr.mxu0 0.0
    %3766 = vmatpush1.msra.mxu0 %v3400
    %3767 = vmatprep.subr.mxu0 0.0
    %3768 = vmatpush1.msra.mxu0 %v3401
    %3769 = vmatprep.subr.mxu0 0.0
    %3770 = vmatpush1.msra.mxu0 %v3402
    %3771 = vmatprep.subr.mxu0 0.0
    %3772 = vmatpush1.msra.mxu0 %v3403
    %3773 = vmatprep.subr.mxu0 0.0
    %3774 = vmatpush1.msra.mxu0 %v3404
    %3775 = vmatprep.subr.mxu0 0.0
    %3776 = vmatpush1.msra.mxu0 %v3405
    %3777 = vmatprep.subr.mxu0 0.0
    %3778 = vmatpush1.msra.mxu0 %v3406
    %3779 = vmatprep.subr.mxu0 0.0
    %3780 = vmatpush1.msra.mxu0 %v3407
    %3781 = vmatprep.subr.mxu0 0.0
    %3782 = vmatpush1.msra.mxu0 %v3408
    %3783 = vmatprep.subr.mxu0 0.0
    %3784 = vmatpush1.msra.mxu0 %v3409
    %3785 = vmatprep.subr.mxu0 0.0
    %3786 = vmatpush1.msra.mxu0 %v3410
    %3787 = vmatprep.subr.mxu0 0.0
    %3788 = vmatpush1.msra.mxu0 %v3411
    %3789 = vmatprep.subr.mxu0 0.0
    %3790 = vmatpush1.msra.mxu0 %v3412
    %3791 = vmatprep.subr.mxu0 0.0
    %3792 = vmatpush1.msra.mxu0 %v3413
    %3793 = vmatprep.subr.mxu0 0.0
    %3794 = vmatpush1.msra.mxu0 %v3414
    %3795 = vmatprep.subr.mxu0 0.0
    %3796 = vmatpush1.msra.mxu0 %v3415
    %3797 = vmatprep.subr.mxu0 0.0
    %3798 = vmatpush1.msra.mxu0 %v3416
    %3799 = vmatprep.subr.mxu0 0.0
    %3800 = vmatpush1.msra.mxu0 %v3417
    %3801 = vmatprep.subr.mxu0 0.0
    %3802 = vmatpush1.msra.mxu0 %v3418
    %3803 = vmatprep.subr.mxu0 0.0
    %3804 = vmatpush1.msra.mxu0 %v3419
    %3805 = vmatprep.subr.mxu0 0.0
    %3806 = vmatpush1.msra.mxu0 %v3420
    %3807 = vmatprep.mubr.f32.mxu0 %v3034
    %3808 = vmatmul.mubr.f32.gmra.mrb[0].mxu0 %v3033
    %v3809 = vpop.f32.mrb[0].mxu0
    %v3810 = vadd.f32 %v3705, %v3809
    %v3811 = vpop.f32.mrb[0].mxu0
    %3812 = vmatprep.mubr.f32.mxu0 %v3036
    %3813 = vmatmul.mubr.f32.gmra.mrb[0].mxu0 %v3035
    %v3814 = vpop.f32.mrb[0].mxu0
    %v3815 = vadd.f32 %v3710, %v3814
    %v3816 = vpop.f32.mrb[0].mxu0
    %3817 = vmatprep.mubr.f32.mxu0 %v3038
    %3818 = vmatmul.mubr.f32.gmra.mrb[0].mxu0 %v3037
    %v3819 = vpop.f32.mrb[0].mxu0
    %v3820 = vadd.f32 %v3715, %v3819
    %v3821 = vpop.f32.mrb[0].mxu0
    %3822 = vmatprep.mubr.f32.mxu0 %v3040
    %3823 = vmatmul.mubr.f32.gmra.mrb[0].mxu0 %v3039
    %v3824 = vpop.f32.mrb[0].mxu0
    %v3825 = vadd.f32 %v3720, %v3824
    %v3826 = vpop.f32.mrb[0].mxu0
    %3827 = vmatprep.mubr.f32.mxu0 %v3042
    %3828 = vmatmul.mubr.f32.gmra.mrb[0].mxu0 %v3041
    %v3829 = vpop.f32.mrb[0].mxu0
    %v3830 = vadd.f32 %v3725, %v3829
    %v3831 = vpop.f32.mrb[0].mxu0
    %3832 = vmatprep.mubr.f32.mxu0 %v3044
    %3833 = vmatmul.mubr.f32.gmra.mrb[0].mxu0 %v3043
    %v3834 = vpop.f32.mrb[0].mxu0
    %v3835 = vadd.f32 %v3730, %v3834
    %v3836 = vpop.f32.mrb[0].mxu0
    %3837 = vmatprep.mubr.f32.mxu0 %v3046
    %3838 = vmatmul.mubr.f32.gmra.mrb[0].mxu0 %v3045
    %v3839 = vpop.f32.mrb[0].mxu0
    %v3840 = vadd.f32 %v3735, %v3839
    %v3841 = vpop.f32.mrb[0].mxu0
    %3842 = vmatprep.mubr.f32.mxu0 %v3048
    %3843 = vmatmul.mubr.f32.gmra.mrb[0].mxu0 %v3047
    %v3844 = vpop.f32.mrb[0].mxu0
    %v3845 = vadd.f32 %v3740, %v3844
    %v3846 = vpop.f32.mrb[0].mxu0
    %3847 = vdwg.mxu0
    %v3848 = vtanh.pop %v3810
    %v3849 = vtanh.pop %v3815
    %v3850 = vtanh.pop %v3820
    %v3851 = vtanh.pop %v3825
    %v3852 = vtanh.pop %v3830
    %v3853 = vtanh.pop %v3835
    %v3854 = vtanh.pop %v3840
    %v3855 = vtanh.pop %v3845
    %3856 = vst [vmem:[#allocation22] sm:$0xff] %v3848
    %3857 = vst [vmem:[#allocation22 + $0x8] sm:$0xff] %v3849
    %3858 = vst [vmem:[#allocation22 + $0x10] sm:$0xff] %v3850
    %3859 = vst [vmem:[#allocation22 + $0x18] sm:$0xff] %v3851
    %3860 = vst [vmem:[#allocation22 + $0x20] sm:$0xff] %v3852
    %3861 = vst [vmem:[#allocation22 + $0x28] sm:$0xff] %v3853
    %3862 = vst [vmem:[#allocation22 + $0x30] sm:$0xff] %v3854
    %3863 = vst [vmem:[#allocation22 + $0x38] sm:$0xff] %v3855
    // Predicated region
    $region126: #{tpu_custom_call.1} parent=1 // pred_check
      _
    $region127: #{tpu_custom_call.1} parent=1 // pred_check_branch
      %3865 = sbr.rel (0) target = $region129
    $region128: #{tpu_custom_call.1} parent=1 // pred_region
      %s3867 = ssub.s32 1024, 1024
      %3868 = vsyncadd [#allocation4], %s3867
      %s3869 = sshll.u32 [#allocation22], 4
      %s3870 = int_to_ptr.vmem [resolvable:$true] %s3869
      %3875 = dma.vmem_to_hbm [thread:$0]  %s3870, 1024, %s19, [#allocation4], 128, 128, 8
    $region129: #{tpu_custom_call.1} parent=1 // pred_fallthru
      _
    // Predicated region
    $region130: #{tpu_custom_call.1} parent=1 // pred_check
      _
    $region131: #{tpu_custom_call.1} parent=1 // pred_check_branch
      %3877 = sbr.rel (0) target = $region133
    $region132: #{tpu_custom_call.1} parent=1 // pred_region
      %3878 = dma.done [#allocation4], 1024
    $region133: #{tpu_custom_call.1} parent=1 // pred_fallthru
      _
    %3879 = vsyncpa [#allocation3], 1
    %3880 = vsyncpa [#allocation6], 1
    %3881 = vsyncpa [#allocation9], 1
    %3882 = vsyncpa [#allocation12], 1
    %3883 = vsyncpa [#allocation15], 1
    %3884 = vsyncpa [#allocation18], 1
    %3885 = vsyncpa [#allocation21], 1
    %3886 = vsyncpa [#allocation4], 1

</llo_original>
